<compile_context>
chip_gen: v7x
topology: tpu7x:2x2x1
jax: 0.10.0
libtpu: 0.0.40
codegen_flags: <defaults>
</compile_context>

<pallas_src>
import numpy as np
import jax
import jax.numpy as jnp
from jax.experimental import pallas as pl
from jax.experimental.pallas import tpu as pltpu

K = 3        # kernel size of both convs
P1 = 2       # Conv2d / ConvTranspose2d padding
C_IN = 3     # Conv2d in channels
C_MID = 16   # Conv2d out / ConvTranspose2d in channels
C_OUT = 8    # ConvTranspose2d out channels


def _round_up(n, m):
    return ((n + m - 1) // m) * m


def _dims(H, W):
    Hp = H + 2 * P1                      # height-padded input rows
    Ho1 = H + 2 * P1 - K + 1             # conv1 output height
    Wo1 = W + 2 * P1 - K + 1             # conv1 output width
    Ho2 = Ho1 - K + 1                    # conv-transpose (as valid conv) output height
    Wo2 = Wo1 - K + 1
    CW = C_IN * W                        # conv1 contraction width (channels folded in)
    N1 = Wo1 * C_MID                     # conv1 output columns (true)
    N1p = _round_up(N1, 128)             # lane-aligned padded column count
    N2 = Wo2 * C_OUT                     # conv2 output columns (lane-dense slab)
    return Hp, Ho1, Wo1, Ho2, Wo2, CW, N1, N1p, N2


def _make_kernel(H, W):
    Hp, Ho1, Wo1, Ho2, Wo2, CW, N1, N1p, N2 = _dims(H, W)

    def kernel(x_ref, wb1_ref, b1_ref, wb2_ref, b2_ref, o_ref, xp_ref, v1_ref):
        # x_ref  : (H, CW)          one image, layout [h, c*W + w]  (f32)
        # wb1_ref: (K, CW, N1p)     banded conv1 weights             (bf16)
        # b1_ref : (1, N1p)         tiled conv1 bias (zero in pad cols)
        # wb2_ref: (K, N1p, N2)     banded conv2 (transpose-conv) weights (bf16)
        # b2_ref : (1, N2)          tiled conv2 bias
        # o_ref  : (Ho2, N2)        lane-dense output slab (16 x 128)
        # xp_ref : (Hp, CW) bf16    height-zero-padded input scratch
        # v1_ref : (Ho1, N1p) bf16  conv1 output, stays in VMEM

        # ---- in-kernel height padding (width padding + channel contraction
        #      are folded into wb1); only the P1 pad rows get zeroed ----------
        xp_ref[0:P1, :] = jnp.zeros((P1, CW), xp_ref.dtype)
        xp_ref[P1 + H:Hp, :] = jnp.zeros((Hp - P1 - H, CW), xp_ref.dtype)
        xp_ref[P1:P1 + H, :] = x_ref[...].astype(xp_ref.dtype)

        # ---- conv1: Conv2d(3 -> 16, k=3, s=1, p=2), 3 fat dots (K-dim = C_IN*W)
        acc1 = jnp.dot(xp_ref[0:Ho1, :], wb1_ref[0],
                       preferred_element_type=jnp.float32)
        for ky in range(1, K):
            acc1 = acc1 + jnp.dot(xp_ref[ky:ky + Ho1, :], wb1_ref[ky],
                                  preferred_element_type=jnp.float32)
        # intermediate activation never leaves VMEM
        v1_ref[...] = (acc1 + b1_ref[...]).astype(v1_ref.dtype)

        # ---- conv2: ConvTranspose2d(16 -> 8, k=3, s=1, p=2) as a valid conv --
        acc2 = jnp.dot(v1_ref[0:Ho2, :], wb2_ref[0],
                       preferred_element_type=jnp.float32)
        for ky in range(1, K):
            acc2 = acc2 + jnp.dot(v1_ref[ky:ky + Ho2, :], wb2_ref[ky],
                                  preferred_element_type=jnp.float32)
        acc2 = acc2 + b2_ref[...]

        # ---- fused hard-sigmoid epilogue: clamp(x+3, 0, 6) / 6 ---------------
        o_ref[...] = (jnp.clip(acc2 + 3.0, 0.0, 6.0) * (1.0 / 6.0)).astype(o_ref.dtype)

    return kernel


def prepare_params(w1, b1, wt, bt, H, W):
    """One-time weight-layout prep (hoisted out of the hot path).

    w1: (C_MID, C_IN, K, K)   PyTorch Conv2d weight (OIHW)
    wt: (C_MID, C_OUT, K, K)  PyTorch ConvTranspose2d weight (Cin, Cout, K, K)
    Returns bf16 banded weight matrices + f32 tiled bias rows as device arrays.
    """
    _, _, Wo1, _, Wo2, CW, N1, N1p, N2 = _dims(H, W)

    w1np = np.asarray(w1, np.float32)
    wtnp = np.asarray(wt, np.float32)

    # conv1 band (channels folded into the contraction, width padding baked in):
    #   WB1[ky, c*W + wi, x*C_MID + co] = w1[co, c, ky, wi - x + P1]
    wb1 = np.zeros((K, CW, N1p), np.float32)
    for ky in range(K):
        for x in range(Wo1):
            for kx in range(K):
                wi = x + kx - P1
                if 0 <= wi < W:
                    for c in range(C_IN):
                        wb1[ky, c * W + wi, x * C_MID:(x + 1) * C_MID] = w1np[:, c, ky, kx]

    # ConvTranspose2d(s=1, p=2) == valid Conv2d with flipped, io-swapped kernel:
    #   w2[co, ci, ky, kx] = wt[ci, co, K-1-ky, K-1-kx],  padding = K-1-p = 0
    #   WB2[ky, xi*C_MID + ci, x*C_OUT + co] = w2[co, ci, ky, xi - x]
    wb2 = np.zeros((K, N1p, N2), np.float32)
    for ky in range(K):
        for x in range(Wo2):
            for kx in range(K):
                xi = x + kx
                if 0 <= xi < Wo1:
                    wb2[ky, xi * C_MID:(xi + 1) * C_MID,
                        x * C_OUT:(x + 1) * C_OUT] = wtnp[:, :, K - 1 - ky, K - 1 - kx]

    b1row = np.zeros((1, N1p), np.float32)
    b1row[0, :N1] = np.tile(np.asarray(b1, np.float32), Wo1)
    b2row = np.tile(np.asarray(bt, np.float32), Wo2)[None, :]

    # bf16 bands: halves weight HBM->VMEM DMA, full-rate MXU; f32 accumulation.
    return (jnp.asarray(wb1, jnp.bfloat16), jnp.asarray(b1row, jnp.float32),
            jnp.asarray(wb2, jnp.bfloat16), jnp.asarray(b2row, jnp.float32))


def make_forward(single_buffer_weights=True):
    """Builds the jitted forward: (N, C_IN, H, W) f32 -> (N, C_OUT, H, W) f32."""
    wmode = pl.Buffered(1) if single_buffer_weights else None

    def _forward(x_nchw, wb1, b1r, wb2, b2r):
        N, _, H, W = x_nchw.shape
        Hp, Ho1, _, Ho2, _, CW, _, N1p, N2 = _dims(H, W)
        kernel = _make_kernel(H, W)

        # Layout plumbing (wrapper-side): NCHW -> (N, H, C_IN*W) so conv1's
        # channel x width-tap contraction is one fat matmul K-dim.
        x2d = jnp.transpose(x_nchw, (0, 2, 1, 3)).reshape(N, H, CW)

        out2d = pl.pallas_call(
            kernel,
            out_shape=jax.ShapeDtypeStruct((N, Ho2, N2), jnp.float32),
            grid=(N,),
            in_specs=[
                # one image per grid step (batch dim squeezed)
                pl.BlockSpec((None, H, CW), lambda n: (n, 0, 0)),
                # constant weight/bias blocks: fetched once, VMEM-resident,
                # single-buffered (double-buffering a revisited block is waste)
                pl.BlockSpec((K, CW, N1p), lambda n: (0, 0, 0), pipeline_mode=wmode),
                pl.BlockSpec((1, N1p), lambda n: (0, 0), pipeline_mode=wmode),
                pl.BlockSpec((K, N1p, N2), lambda n: (0, 0, 0), pipeline_mode=wmode),
                pl.BlockSpec((1, N2), lambda n: (0, 0), pipeline_mode=wmode),
            ],
            out_specs=pl.BlockSpec((None, Ho2, N2), lambda n: (n, 0, 0)),
            scratch_shapes=[pltpu.VMEM((Hp, CW), jnp.bfloat16),     # padded input
                            pltpu.VMEM((Ho1, N1p), jnp.bfloat16)],  # conv1 output
            compiler_params=pltpu.CompilerParams(
                dimension_semantics=("parallel",)),  # batch axis -> both TCs on v7x
        )(x2d, wb1, b1r, wb2, b2r)

        # (N, Ho2, Wo2*C_OUT) with layout [n, y, x*C_OUT + co] -> NCHW (tiny op)
        return jnp.transpose(out2d.reshape(N, Ho2, -1, C_OUT), (0, 3, 1, 2))

    return jax.jit(_forward)


if __name__ == "__main__":
    key = jax.random.PRNGKey(0)
    k1, k2, k3, k4, k5 = jax.random.split(key, 5)

    # Small shapes consistent with the module (original used 1x3x64x64).
    N, H, W = 2, 16, 16
    x1 = jax.random.normal(k1, (N, 3, H, W), jnp.float32)
    w1 = jax.random.normal(k2, (16, 3, 3, 3), jnp.float32) * 0.1   # Conv2d (OIHW)
    b1 = jax.random.normal(k3, (16,), jnp.float32) * 0.1
    wt = jax.random.normal(k4, (16, 8, 3, 3), jnp.float32) * 0.1   # ConvTranspose2d (Cin,Cout,K,K)
    bt = jax.random.normal(k5, (8,), jnp.float32) * 0.1

    params = prepare_params(w1, b1, wt, bt, H, W)          # one-time weight prep

    try:
        model_forward = make_forward(single_buffer_weights=True)
        out = jax.block_until_ready(model_forward(x1, *params))
    except Exception:
        # Fallback for JAX builds where pl.Buffered(1) isn't supported in the
        # TPU pallas_call pipeline; default double-buffering is still correct.
        model_forward = make_forward(single_buffer_weights=False)
        out = jax.block_until_ready(model_forward(x1, *params))

    assert out.shape == (N, 8, H, W), out.shape

    # ---- pure-JAX f32 reference (independent of the kernel's math) ----
    v1_ref = jax.lax.conv_general_dilated(
        x1, w1, (1, 1), [(2, 2), (2, 2)],
        dimension_numbers=("NCHW", "OIHW", "NCHW")) + b1.reshape(1, -1, 1, 1)

    # ConvTranspose2d is the vjp (transpose) of the corresponding Conv2d.
    def conv_fwd(z):
        return jax.lax.conv_general_dilated(
            z, wt, (1, 1), [(2, 2), (2, 2)],
            dimension_numbers=("NCHW", "OIHW", "NCHW"))

    _, vjp_fn = jax.vjp(conv_fwd, jnp.zeros((N, 8, H, W), jnp.float32))
    (v2_ref,) = vjp_fn(v1_ref)
    v2_ref = v2_ref + bt.reshape(1, -1, 1, 1)
    v6_ref = jnp.clip(v2_ref + 3.0, 0.0, 6.0) / 6.0

    # bf16 weight bands / activations -> tolerance loosened vs f32 reference.
    max_err = float(jnp.max(jnp.abs(out - v6_ref)))
    assert max_err < 2e-2, f"mismatch vs reference, max abs err = {max_err}"

    print("KERNEL_OK")
</pallas_src>

<mosaic_0001>
module attributes {stable_mosaic.version = 11 : i64} {
  func.func @kernel(%arg0: i32, %arg1: memref<1x16x48xf32, #tpu.memory_space<vmem>>, %arg2: memref<3x48x384xbf16, #tpu.memory_space<vmem>>, %arg3: memref<1x384xf32, #tpu.memory_space<vmem>>, %arg4: memref<3x384x128xbf16, #tpu.memory_space<vmem>>, %arg5: memref<1x128xf32, #tpu.memory_space<vmem>>, %arg6: memref<1x16x128xf32, #tpu.memory_space<vmem>>, %arg7: memref<20x48xbf16, #tpu.memory_space<vmem>>, %arg8: memref<18x384xbf16, #tpu.memory_space<vmem>>) attributes {dimension_semantics = [#tpu.dimension_semantics<parallel>], iteration_bounds = array<i64: 2>, scalar_prefetch = 0 : i64, scratch_operands = 2 : i64, tpu.core_type = #tpu.core_type<tc>, window_params = [{transform_indices = @transform_0, window_bounds = array<i64: 1, 16, 48>}, {pipeline_mode = #tpu.pipeline_mode<synchronous>, transform_indices = @transform_1, window_bounds = array<i64: 3, 48, 384>}, {pipeline_mode = #tpu.pipeline_mode<synchronous>, transform_indices = @transform_2, window_bounds = array<i64: 1, 384>}, {pipeline_mode = #tpu.pipeline_mode<synchronous>, transform_indices = @transform_3, window_bounds = array<i64: 3, 384, 128>}, {pipeline_mode = #tpu.pipeline_mode<synchronous>, transform_indices = @transform_4, window_bounds = array<i64: 1, 128>}, {transform_indices = @transform_5, window_bounds = array<i64: 1, 16, 128>}]} {
    %cst = arith.constant 0.000000e+00 : bf16
    %0 = vector.broadcast %cst : bf16 to vector<2x48xbf16>
    %c0 = arith.constant 0 : index
    %c0_0 = arith.constant 0 : index
    %1 = vector.load %arg7[%c0, %c0_0] : memref<20x48xbf16, #tpu.memory_space<vmem>>, vector<2x48xbf16>
    tpu.vector_store %arg7[%c0, %c0_0], %0 {strides = array<i32>} : memref<20x48xbf16, #tpu.memory_space<vmem>>, vector<2x48xbf16>,
    %cst_1 = arith.constant 0.000000e+00 : bf16
    %2 = vector.broadcast %cst_1 : bf16 to vector<2x48xbf16>
    %c18 = arith.constant 18 : index
    %c0_2 = arith.constant 0 : index
    %3 = vector.load %arg7[%c18, %c0_2] : memref<20x48xbf16, #tpu.memory_space<vmem>>, vector<2x48xbf16>
    tpu.vector_store %arg7[%c18, %c0_2], %2 {strides = array<i32>} : memref<20x48xbf16, #tpu.memory_space<vmem>>, vector<2x48xbf16>,
    %c0_3 = arith.constant 0 : index
    %c0_4 = arith.constant 0 : index
    %c0_5 = arith.constant 0 : index
    %4 = vector.load %arg1[%c0_3, %c0_4, %c0_5] : memref<1x16x48xf32, #tpu.memory_space<vmem>>, vector<1x16x48xf32>
    %5 = vector.shape_cast %4 : vector<1x16x48xf32> to vector<16x48xf32>
    %6 = arith.truncf %5 : vector<16x48xf32> to vector<16x48xbf16>
    %c2 = arith.constant 2 : index
    %c0_6 = arith.constant 0 : index
    %7 = vector.load %arg7[%c2, %c0_6] : memref<20x48xbf16, #tpu.memory_space<vmem>>, vector<16x48xbf16>
    tpu.vector_store %arg7[%c2, %c0_6], %6 {strides = array<i32>} : memref<20x48xbf16, #tpu.memory_space<vmem>>, vector<16x48xbf16>,
    %c0_7 = arith.constant 0 : index
    %c0_8 = arith.constant 0 : index
    %8 = vector.load %arg7[%c0_7, %c0_8] : memref<20x48xbf16, #tpu.memory_space<vmem>>, vector<18x48xbf16>
    %c0_9 = arith.constant 0 : index
    %c0_10 = arith.constant 0 : index
    %c0_11 = arith.constant 0 : index
    %9 = vector.load %arg2[%c0_9, %c0_10, %c0_11] : memref<3x48x384xbf16, #tpu.memory_space<vmem>>, vector<1x48x384xbf16>
    %10 = vector.shape_cast %9 : vector<1x48x384xbf16> to vector<48x384xbf16>
    %cst_12 = arith.constant dense<0.000000e+00> : vector<18x384xf32>
    %11 = tpu.matmul %8, %10, %cst_12 {dimension_numbers = #tpu.dot_dimension_numbers<[1], [0], [0], [1], [0, 0, 1, 1], [], []>} : vector<18x48xbf16>, vector<48x384xbf16>, vector<18x384xf32> -> vector<18x384xf32>
    %c1 = arith.constant 1 : index
    %c0_13 = arith.constant 0 : index
    %12 = vector.load %arg7[%c1, %c0_13] : memref<20x48xbf16, #tpu.memory_space<vmem>>, vector<18x48xbf16>
    %c1_14 = arith.constant 1 : index
    %c0_15 = arith.constant 0 : index
    %c0_16 = arith.constant 0 : index
    %13 = vector.load %arg2[%c1_14, %c0_15, %c0_16] : memref<3x48x384xbf16, #tpu.memory_space<vmem>>, vector<1x48x384xbf16>
    %14 = vector.shape_cast %13 : vector<1x48x384xbf16> to vector<48x384xbf16>
    %cst_17 = arith.constant dense<0.000000e+00> : vector<18x384xf32>
    %15 = tpu.matmul %12, %14, %cst_17 {dimension_numbers = #tpu.dot_dimension_numbers<[1], [0], [0], [1], [0, 0, 1, 1], [], []>} : vector<18x48xbf16>, vector<48x384xbf16>, vector<18x384xf32> -> vector<18x384xf32>
    %16 = arith.addf %11, %15 : vector<18x384xf32>
    %c2_18 = arith.constant 2 : index
    %c0_19 = arith.constant 0 : index
    %17 = vector.load %arg7[%c2_18, %c0_19] : memref<20x48xbf16, #tpu.memory_space<vmem>>, vector<18x48xbf16>
    %c2_20 = arith.constant 2 : index
    %c0_21 = arith.constant 0 : index
    %c0_22 = arith.constant 0 : index
    %18 = vector.load %arg2[%c2_20, %c0_21, %c0_22] : memref<3x48x384xbf16, #tpu.memory_space<vmem>>, vector<1x48x384xbf16>
    %19 = vector.shape_cast %18 : vector<1x48x384xbf16> to vector<48x384xbf16>
    %cst_23 = arith.constant dense<0.000000e+00> : vector<18x384xf32>
    %20 = tpu.matmul %17, %19, %cst_23 {dimension_numbers = #tpu.dot_dimension_numbers<[1], [0], [0], [1], [0, 0, 1, 1], [], []>} : vector<18x48xbf16>, vector<48x384xbf16>, vector<18x384xf32> -> vector<18x384xf32>
    %21 = arith.addf %16, %20 : vector<18x384xf32>
    %c0_24 = arith.constant 0 : index
    %c0_25 = arith.constant 0 : index
    %22 = vector.load %arg3[%c0_24, %c0_25] : memref<1x384xf32, #tpu.memory_space<vmem>>, vector<1x384xf32>
    %23 = vector.broadcast %22 : vector<1x384xf32> to vector<18x384xf32>
    %24 = arith.addf %21, %23 : vector<18x384xf32>
    %25 = arith.truncf %24 : vector<18x384xf32> to vector<18x384xbf16>
    %c0_26 = arith.constant 0 : index
    %c0_27 = arith.constant 0 : index
    %26 = vector.load %arg8[%c0_26, %c0_27] : memref<18x384xbf16, #tpu.memory_space<vmem>>, vector<18x384xbf16>
    tpu.vector_store %arg8[%c0_26, %c0_27], %25 {strides = array<i32>} : memref<18x384xbf16, #tpu.memory_space<vmem>>, vector<18x384xbf16>,
    %c0_28 = arith.constant 0 : index
    %c0_29 = arith.constant 0 : index
    %27 = vector.load %arg8[%c0_28, %c0_29] : memref<18x384xbf16, #tpu.memory_space<vmem>>, vector<16x384xbf16>
    %c0_30 = arith.constant 0 : index
    %c0_31 = arith.constant 0 : index
    %c0_32 = arith.constant 0 : index
    %28 = vector.load %arg4[%c0_30, %c0_31, %c0_32] : memref<3x384x128xbf16, #tpu.memory_space<vmem>>, vector<1x384x128xbf16>
    %29 = vector.shape_cast %28 : vector<1x384x128xbf16> to vector<384x128xbf16>
    %cst_33 = arith.constant dense<0.000000e+00> : vector<16x128xf32>
    %30 = tpu.matmul %27, %29, %cst_33 {dimension_numbers = #tpu.dot_dimension_numbers<[1], [0], [0], [1], [0, 0, 1, 1], [], []>} : vector<16x384xbf16>, vector<384x128xbf16>, vector<16x128xf32> -> vector<16x128xf32>
    %c1_34 = arith.constant 1 : index
    %c0_35 = arith.constant 0 : index
    %31 = vector.load %arg8[%c1_34, %c0_35] : memref<18x384xbf16, #tpu.memory_space<vmem>>, vector<16x384xbf16>
    %c1_36 = arith.constant 1 : index
    %c0_37 = arith.constant 0 : index
    %c0_38 = arith.constant 0 : index
    %32 = vector.load %arg4[%c1_36, %c0_37, %c0_38] : memref<3x384x128xbf16, #tpu.memory_space<vmem>>, vector<1x384x128xbf16>
    %33 = vector.shape_cast %32 : vector<1x384x128xbf16> to vector<384x128xbf16>
    %cst_39 = arith.constant dense<0.000000e+00> : vector<16x128xf32>
    %34 = tpu.matmul %31, %33, %cst_39 {dimension_numbers = #tpu.dot_dimension_numbers<[1], [0], [0], [1], [0, 0, 1, 1], [], []>} : vector<16x384xbf16>, vector<384x128xbf16>, vector<16x128xf32> -> vector<16x128xf32>
    %35 = arith.addf %30, %34 : vector<16x128xf32>
    %c2_40 = arith.constant 2 : index
    %c0_41 = arith.constant 0 : index
    %36 = vector.load %arg8[%c2_40, %c0_41] : memref<18x384xbf16, #tpu.memory_space<vmem>>, vector<16x384xbf16>
    %c2_42 = arith.constant 2 : index
    %c0_43 = arith.constant 0 : index
    %c0_44 = arith.constant 0 : index
    %37 = vector.load %arg4[%c2_42, %c0_43, %c0_44] : memref<3x384x128xbf16, #tpu.memory_space<vmem>>, vector<1x384x128xbf16>
    %38 = vector.shape_cast %37 : vector<1x384x128xbf16> to vector<384x128xbf16>
    %cst_45 = arith.constant dense<0.000000e+00> : vector<16x128xf32>
    %39 = tpu.matmul %36, %38, %cst_45 {dimension_numbers = #tpu.dot_dimension_numbers<[1], [0], [0], [1], [0, 0, 1, 1], [], []>} : vector<16x384xbf16>, vector<384x128xbf16>, vector<16x128xf32> -> vector<16x128xf32>
    %40 = arith.addf %35, %39 : vector<16x128xf32>
    %c0_46 = arith.constant 0 : index
    %c0_47 = arith.constant 0 : index
    %41 = vector.load %arg5[%c0_46, %c0_47] : memref<1x128xf32, #tpu.memory_space<vmem>>, vector<1x128xf32>
    %42 = vector.broadcast %41 : vector<1x128xf32> to vector<16x128xf32>
    %43 = arith.addf %40, %42 : vector<16x128xf32>
    %cst_48 = arith.constant 3.000000e+00 : f32
    %44 = vector.broadcast %cst_48 : f32 to vector<16x128xf32>
    %45 = arith.addf %43, %44 : vector<16x128xf32>
    %cst_49 = arith.constant 0.000000e+00 : f32
    %cst_50 = arith.constant 6.000000e+00 : f32
    %46 = vector.broadcast %cst_49 : f32 to vector<16x128xf32>
    %47 = arith.maximumf %46, %45 : vector<16x128xf32>
    %48 = vector.broadcast %cst_50 : f32 to vector<16x128xf32>
    %49 = arith.minimumf %48, %47 : vector<16x128xf32>
    %cst_51 = arith.constant 0.166666672 : f32
    %50 = vector.broadcast %cst_51 : f32 to vector<16x128xf32>
    %51 = arith.mulf %49, %50 : vector<16x128xf32>
    %c0_52 = arith.constant 0 : index
    %c0_53 = arith.constant 0 : index
    %c0_54 = arith.constant 0 : index
    %52 = vector.load %arg6[%c0_52, %c0_53, %c0_54] : memref<1x16x128xf32, #tpu.memory_space<vmem>>, vector<1x16x128xf32>
    %53 = vector.shape_cast %52 : vector<1x16x128xf32> to vector<16x128xf32>
    %54 = vector.shape_cast %51 : vector<16x128xf32> to vector<1x16x128xf32>
    tpu.vector_store %arg6[%c0_52, %c0_53, %c0_54], %54 {strides = array<i32>} : memref<1x16x128xf32, #tpu.memory_space<vmem>>, vector<1x16x128xf32>,
    return
  }
  func.func @transform_0(%arg0: i32) -> (i32, i32, i32) {
    %c0_i32 = arith.constant 0 : i32
    %c0_i32_0 = arith.constant 0 : i32
    %c0_i32_1 = arith.constant 0 : i32
    return %arg0, %c0_i32, %c0_i32_0 : i32, i32, i32
  }
  func.func @transform_1(%arg0: i32) -> (i32, i32, i32) {
    %c0_i32 = arith.constant 0 : i32
    %c0_i32_0 = arith.constant 0 : i32
    %c0_i32_1 = arith.constant 0 : i32
    %c0_i32_2 = arith.constant 0 : i32
    return %c0_i32, %c0_i32_0, %c0_i32_1 : i32, i32, i32
  }
  func.func @transform_2(%arg0: i32) -> (i32, i32) {
    %c0_i32 = arith.constant 0 : i32
    %c0_i32_0 = arith.constant 0 : i32
    %c0_i32_1 = arith.constant 0 : i32
    return %c0_i32, %c0_i32_0 : i32, i32
  }
  func.func @transform_3(%arg0: i32) -> (i32, i32, i32) {
    %c0_i32 = arith.constant 0 : i32
    %c0_i32_0 = arith.constant 0 : i32
    %c0_i32_1 = arith.constant 0 : i32
    %c0_i32_2 = arith.constant 0 : i32
    return %c0_i32, %c0_i32_0, %c0_i32_1 : i32, i32, i32
  }
  func.func @transform_4(%arg0: i32) -> (i32, i32) {
    %c0_i32 = arith.constant 0 : i32
    %c0_i32_0 = arith.constant 0 : i32
    %c0_i32_1 = arith.constant 0 : i32
    return %c0_i32, %c0_i32_0 : i32, i32
  }
  func.func @transform_5(%arg0: i32) -> (i32, i32, i32) {
    %c0_i32 = arith.constant 0 : i32
    %c0_i32_0 = arith.constant 0 : i32
    %c0_i32_1 = arith.constant 0 : i32
    return %arg0, %c0_i32, %c0_i32_0 : i32, i32, i32
  }
}

module attributes {stable_mosaic.version = 11 : i64} {
  func.func @kernel(%arg0: i32, %arg1: memref<1x16x48xf32, #tpu.memory_space<vmem>>, %arg2: memref<3x48x384xbf16, #tpu.memory_space<vmem>>, %arg3: memref<1x384xf32, #tpu.memory_space<vmem>>, %arg4: memref<3x384x128xbf16, #tpu.memory_space<vmem>>, %arg5: memref<1x128xf32, #tpu.memory_space<vmem>>, %arg6: memref<1x16x128xf32, #tpu.memory_space<vmem>>, %arg7: memref<20x48xbf16, #tpu.memory_space<vmem>>, %arg8: memref<18x384xbf16, #tpu.memory_space<vmem>>) attributes {dimension_semantics = [#tpu.dimension_semantics<parallel>], iteration_bounds = array<i64: 2>, scalar_prefetch = 0 : i64, scratch_operands = 2 : i64, tpu.core_type = #tpu.core_type<tc>, window_params = [{transform_indices = @transform_0, window_bounds = array<i64: 1, 16, 48>}, {pipeline_mode = #tpu.pipeline_mode<synchronous>, transform_indices = @transform_1, window_bounds = array<i64: 3, 48, 384>}, {pipeline_mode = #tpu.pipeline_mode<synchronous>, transform_indices = @transform_2, window_bounds = array<i64: 1, 384>}, {pipeline_mode = #tpu.pipeline_mode<synchronous>, transform_indices = @transform_3, window_bounds = array<i64: 3, 384, 128>}, {pipeline_mode = #tpu.pipeline_mode<synchronous>, transform_indices = @transform_4, window_bounds = array<i64: 1, 128>}, {transform_indices = @transform_5, window_bounds = array<i64: 1, 16, 128>}]} {
    %cst = arith.constant 0.000000e+00 : bf16
    %0 = vector.broadcast %cst : bf16 to vector<2x48xbf16>
    %c0 = arith.constant 0 : index
    %c0_0 = arith.constant 0 : index
    %1 = vector.load %arg7[%c0, %c0_0] : memref<20x48xbf16, #tpu.memory_space<vmem>>, vector<2x48xbf16>
    tpu.vector_store %arg7[%c0, %c0_0], %0 {strides = array<i32>} : memref<20x48xbf16, #tpu.memory_space<vmem>>, vector<2x48xbf16>,
    %cst_1 = arith.constant 0.000000e+00 : bf16
    %2 = vector.broadcast %cst_1 : bf16 to vector<2x48xbf16>
    %c18 = arith.constant 18 : index
    %c0_2 = arith.constant 0 : index
    %3 = vector.load %arg7[%c18, %c0_2] : memref<20x48xbf16, #tpu.memory_space<vmem>>, vector<2x48xbf16>
    tpu.vector_store %arg7[%c18, %c0_2], %2 {strides = array<i32>} : memref<20x48xbf16, #tpu.memory_space<vmem>>, vector<2x48xbf16>,
    %c0_3 = arith.constant 0 : index
    %c0_4 = arith.constant 0 : index
    %c0_5 = arith.constant 0 : index
    %4 = vector.load %arg1[%c0_3, %c0_4, %c0_5] : memref<1x16x48xf32, #tpu.memory_space<vmem>>, vector<1x16x48xf32>
    %5 = vector.shape_cast %4 : vector<1x16x48xf32> to vector<16x48xf32>
    %6 = arith.truncf %5 : vector<16x48xf32> to vector<16x48xbf16>
    %c2 = arith.constant 2 : index
    %c0_6 = arith.constant 0 : index
    %7 = vector.load %arg7[%c2, %c0_6] : memref<20x48xbf16, #tpu.memory_space<vmem>>, vector<16x48xbf16>
    tpu.vector_store %arg7[%c2, %c0_6], %6 {strides = array<i32>} : memref<20x48xbf16, #tpu.memory_space<vmem>>, vector<16x48xbf16>,
    %c0_7 = arith.constant 0 : index
    %c0_8 = arith.constant 0 : index
    %8 = vector.load %arg7[%c0_7, %c0_8] : memref<20x48xbf16, #tpu.memory_space<vmem>>, vector<18x48xbf16>
    %c0_9 = arith.constant 0 : index
    %c0_10 = arith.constant 0 : index
    %c0_11 = arith.constant 0 : index
    %9 = vector.load %arg2[%c0_9, %c0_10, %c0_11] : memref<3x48x384xbf16, #tpu.memory_space<vmem>>, vector<1x48x384xbf16>
    %10 = vector.shape_cast %9 : vector<1x48x384xbf16> to vector<48x384xbf16>
    %cst_12 = arith.constant dense<0.000000e+00> : vector<18x384xf32>
    %11 = tpu.matmul %8, %10, %cst_12 {dimension_numbers = #tpu.dot_dimension_numbers<[1], [0], [0], [1], [0, 0, 1, 1], [], []>} : vector<18x48xbf16>, vector<48x384xbf16>, vector<18x384xf32> -> vector<18x384xf32>
    %c1 = arith.constant 1 : index
    %c0_13 = arith.constant 0 : index
    %12 = vector.load %arg7[%c1, %c0_13] : memref<20x48xbf16, #tpu.memory_space<vmem>>, vector<18x48xbf16>
    %c1_14 = arith.constant 1 : index
    %c0_15 = arith.constant 0 : index
    %c0_16 = arith.constant 0 : index
    %13 = vector.load %arg2[%c1_14, %c0_15, %c0_16] : memref<3x48x384xbf16, #tpu.memory_space<vmem>>, vector<1x48x384xbf16>
    %14 = vector.shape_cast %13 : vector<1x48x384xbf16> to vector<48x384xbf16>
    %cst_17 = arith.constant dense<0.000000e+00> : vector<18x384xf32>
    %15 = tpu.matmul %12, %14, %cst_17 {dimension_numbers = #tpu.dot_dimension_numbers<[1], [0], [0], [1], [0, 0, 1, 1], [], []>} : vector<18x48xbf16>, vector<48x384xbf16>, vector<18x384xf32> -> vector<18x384xf32>
    %16 = arith.addf %11, %15 : vector<18x384xf32>
    %c2_18 = arith.constant 2 : index
    %c0_19 = arith.constant 0 : index
    %17 = vector.load %arg7[%c2_18, %c0_19] : memref<20x48xbf16, #tpu.memory_space<vmem>>, vector<18x48xbf16>
    %c2_20 = arith.constant 2 : index
    %c0_21 = arith.constant 0 : index
    %c0_22 = arith.constant 0 : index
    %18 = vector.load %arg2[%c2_20, %c0_21, %c0_22] : memref<3x48x384xbf16, #tpu.memory_space<vmem>>, vector<1x48x384xbf16>
    %19 = vector.shape_cast %18 : vector<1x48x384xbf16> to vector<48x384xbf16>
    %cst_23 = arith.constant dense<0.000000e+00> : vector<18x384xf32>
    %20 = tpu.matmul %17, %19, %cst_23 {dimension_numbers = #tpu.dot_dimension_numbers<[1], [0], [0], [1], [0, 0, 1, 1], [], []>} : vector<18x48xbf16>, vector<48x384xbf16>, vector<18x384xf32> -> vector<18x384xf32>
    %21 = arith.addf %16, %20 : vector<18x384xf32>
    %c0_24 = arith.constant 0 : index
    %c0_25 = arith.constant 0 : index
    %22 = vector.load %arg3[%c0_24, %c0_25] : memref<1x384xf32, #tpu.memory_space<vmem>>, vector<1x384xf32>
    %23 = vector.broadcast %22 : vector<1x384xf32> to vector<18x384xf32>
    %24 = arith.addf %21, %23 : vector<18x384xf32>
    %25 = arith.truncf %24 : vector<18x384xf32> to vector<18x384xbf16>
    %c0_26 = arith.constant 0 : index
    %c0_27 = arith.constant 0 : index
    %26 = vector.load %arg8[%c0_26, %c0_27] : memref<18x384xbf16, #tpu.memory_space<vmem>>, vector<18x384xbf16>
    tpu.vector_store %arg8[%c0_26, %c0_27], %25 {strides = array<i32>} : memref<18x384xbf16, #tpu.memory_space<vmem>>, vector<18x384xbf16>,
    %c0_28 = arith.constant 0 : index
    %c0_29 = arith.constant 0 : index
    %27 = vector.load %arg8[%c0_28, %c0_29] : memref<18x384xbf16, #tpu.memory_space<vmem>>, vector<16x384xbf16>
    %c0_30 = arith.constant 0 : index
    %c0_31 = arith.constant 0 : index
    %c0_32 = arith.constant 0 : index
    %28 = vector.load %arg4[%c0_30, %c0_31, %c0_32] : memref<3x384x128xbf16, #tpu.memory_space<vmem>>, vector<1x384x128xbf16>
    %29 = vector.shape_cast %28 : vector<1x384x128xbf16> to vector<384x128xbf16>
    %cst_33 = arith.constant dense<0.000000e+00> : vector<16x128xf32>
    %30 = tpu.matmul %27, %29, %cst_33 {dimension_numbers = #tpu.dot_dimension_numbers<[1], [0], [0], [1], [0, 0, 1, 1], [], []>} : vector<16x384xbf16>, vector<384x128xbf16>, vector<16x128xf32> -> vector<16x128xf32>
    %c1_34 = arith.constant 1 : index
    %c0_35 = arith.constant 0 : index
    %31 = vector.load %arg8[%c1_34, %c0_35] : memref<18x384xbf16, #tpu.memory_space<vmem>>, vector<16x384xbf16>
    %c1_36 = arith.constant 1 : index
    %c0_37 = arith.constant 0 : index
    %c0_38 = arith.constant 0 : index
    %32 = vector.load %arg4[%c1_36, %c0_37, %c0_38] : memref<3x384x128xbf16, #tpu.memory_space<vmem>>, vector<1x384x128xbf16>
    %33 = vector.shape_cast %32 : vector<1x384x128xbf16> to vector<384x128xbf16>
    %cst_39 = arith.constant dense<0.000000e+00> : vector<16x128xf32>
    %34 = tpu.matmul %31, %33, %cst_39 {dimension_numbers = #tpu.dot_dimension_numbers<[1], [0], [0], [1], [0, 0, 1, 1], [], []>} : vector<16x384xbf16>, vector<384x128xbf16>, vector<16x128xf32> -> vector<16x128xf32>
    %35 = arith.addf %30, %34 : vector<16x128xf32>
    %c2_40 = arith.constant 2 : index
    %c0_41 = arith.constant 0 : index
    %36 = vector.load %arg8[%c2_40, %c0_41] : memref<18x384xbf16, #tpu.memory_space<vmem>>, vector<16x384xbf16>
    %c2_42 = arith.constant 2 : index
    %c0_43 = arith.constant 0 : index
    %c0_44 = arith.constant 0 : index
    %37 = vector.load %arg4[%c2_42, %c0_43, %c0_44] : memref<3x384x128xbf16, #tpu.memory_space<vmem>>, vector<1x384x128xbf16>
    %38 = vector.shape_cast %37 : vector<1x384x128xbf16> to vector<384x128xbf16>
    %cst_45 = arith.constant dense<0.000000e+00> : vector<16x128xf32>
    %39 = tpu.matmul %36, %38, %cst_45 {dimension_numbers = #tpu.dot_dimension_numbers<[1], [0], [0], [1], [0, 0, 1, 1], [], []>} : vector<16x384xbf16>, vector<384x128xbf16>, vector<16x128xf32> -> vector<16x128xf32>
    %40 = arith.addf %35, %39 : vector<16x128xf32>
    %c0_46 = arith.constant 0 : index
    %c0_47 = arith.constant 0 : index
    %41 = vector.load %arg5[%c0_46, %c0_47] : memref<1x128xf32, #tpu.memory_space<vmem>>, vector<1x128xf32>
    %42 = vector.broadcast %41 : vector<1x128xf32> to vector<16x128xf32>
    %43 = arith.addf %40, %42 : vector<16x128xf32>
    %cst_48 = arith.constant 3.000000e+00 : f32
    %44 = vector.broadcast %cst_48 : f32 to vector<16x128xf32>
    %45 = arith.addf %43, %44 : vector<16x128xf32>
    %cst_49 = arith.constant 0.000000e+00 : f32
    %cst_50 = arith.constant 6.000000e+00 : f32
    %46 = vector.broadcast %cst_49 : f32 to vector<16x128xf32>
    %47 = arith.maximumf %46, %45 : vector<16x128xf32>
    %48 = vector.broadcast %cst_50 : f32 to vector<16x128xf32>
    %49 = arith.minimumf %48, %47 : vector<16x128xf32>
    %cst_51 = arith.constant 0.166666672 : f32
    %50 = vector.broadcast %cst_51 : f32 to vector<16x128xf32>
    %51 = arith.mulf %49, %50 : vector<16x128xf32>
    %c0_52 = arith.constant 0 : index
    %c0_53 = arith.constant 0 : index
    %c0_54 = arith.constant 0 : index
    %52 = vector.load %arg6[%c0_52, %c0_53, %c0_54] : memref<1x16x128xf32, #tpu.memory_space<vmem>>, vector<1x16x128xf32>
    %53 = vector.shape_cast %52 : vector<1x16x128xf32> to vector<16x128xf32>
    %54 = vector.shape_cast %51 : vector<16x128xf32> to vector<1x16x128xf32>
    tpu.vector_store %arg6[%c0_52, %c0_53, %c0_54], %54 {strides = array<i32>} : memref<1x16x128xf32, #tpu.memory_space<vmem>>, vector<1x16x128xf32>,
    return
  }
  func.func @transform_0(%arg0: i32) -> (i32, i32, i32) {
    %c0_i32 = arith.constant 0 : i32
    %c0_i32_0 = arith.constant 0 : i32
    %c0_i32_1 = arith.constant 0 : i32
    return %arg0, %c0_i32, %c0_i32_0 : i32, i32, i32
  }
  func.func @transform_1(%arg0: i32) -> (i32, i32, i32) {
    %c0_i32 = arith.constant 0 : i32
    %c0_i32_0 = arith.constant 0 : i32
    %c0_i32_1 = arith.constant 0 : i32
    %c0_i32_2 = arith.constant 0 : i32
    return %c0_i32, %c0_i32_0, %c0_i32_1 : i32, i32, i32
  }
  func.func @transform_2(%arg0: i32) -> (i32, i32) {
    %c0_i32 = arith.constant 0 : i32
    %c0_i32_0 = arith.constant 0 : i32
    %c0_i32_1 = arith.constant 0 : i32
    return %c0_i32, %c0_i32_0 : i32, i32
  }
  func.func @transform_3(%arg0: i32) -> (i32, i32, i32) {
    %c0_i32 = arith.constant 0 : i32
    %c0_i32_0 = arith.constant 0 : i32
    %c0_i32_1 = arith.constant 0 : i32
    %c0_i32_2 = arith.constant 0 : i32
    return %c0_i32, %c0_i32_0, %c0_i32_1 : i32, i32, i32
  }
  func.func @transform_4(%arg0: i32) -> (i32, i32) {
    %c0_i32 = arith.constant 0 : i32
    %c0_i32_0 = arith.constant 0 : i32
    %c0_i32_1 = arith.constant 0 : i32
    return %c0_i32, %c0_i32_0 : i32, i32
  }
  func.func @transform_5(%arg0: i32) -> (i32, i32, i32) {
    %c0_i32 = arith.constant 0 : i32
    %c0_i32_0 = arith.constant 0 : i32
    %c0_i32_1 = arith.constant 0 : i32
    return %arg0, %c0_i32, %c0_i32_0 : i32, i32, i32
  }
}

</mosaic_0001>

<llo_original>
// kernel: _forward.1
$region0: #{_forward.1}
  #allocation0 [shape = 'u32[]', space=smem, size = 0x4, offset = 0x4, fixed_abs, tag = 'smem constant byte address 0x4 - core index']
  #allocation1 [shape = 'u32[144,128]{1,0:T(1,128)}', space=vmem, size = 0x12000, scoped, tag = 'internal scratch']
  #allocation2 [shape = 'bf16[20,48]{1,0:T(8,128)(2,1)}', space=vmem, size = 0x1800, scoped, tag = 'scratch operand']
  #allocation3 [shape = 'bf16[18,384]{1,0:T(8,128)(2,1)}', space=vmem, size = 0x4800, scoped, tag = 'scratch operand']
  %s0 = inlined_call_operand.vmem [shape: f32[2,16,48], index: 0, kind: input, shape index: {}]
  %s1 = inlined_call_operand.vmem [shape: bf16[3,48,384], index: 1, kind: input, shape index: {}]
  %s2 = inlined_call_operand.vmem [shape: f32[1,384], index: 2, kind: input, shape index: {}]
  %s3 = inlined_call_operand.hbm [shape: bf16[3,384,128], index: 3, kind: input, shape index: {}]
  %s4 = inlined_call_operand.vmem [shape: f32[1,128], index: 4, kind: input, shape index: {}]
  %s5 = inlined_call_operand.vmem [shape: f32[2,16,128], index: 5, kind: output, shape index: {}]
  %s6 = sld [smem:[#allocation0]]
  $region57: #{_forward.1} parent=0
    _
  %s8 = ssub.s32 1, %s6
  %s9 = scalar_select 0, %s8, %s6
  $region1: #{_forward.1} parent=0
    #allocation4 [shape = 'u8[294912]{0}', space=vmem, size = 0x48000, scoped, tag = 'input window, operand 3, single buffered']
    #allocation5 [shape = 's32[2]{0}', space=sflag, size = 0x8, scoped, tag = 'scoped memory for _forward.1']
    %10 = vsyncpa [#allocation5], 0
    loop: start=0, step=1, limit=4
    $region2: #{_forward.1} parent=1 // loop_pre_header
      _
    $region3: #{_forward.1} parent=1 // loop_header
      %s12 = sphi 0, %s16
      %p13 = scmp.ge.s32.totalorder %s12, 4
      %s22 = sphi 0, %s24
      %s25 = sphi 0, %s22
      %s26 = sphi 0, %s25
      %s42 = sphi 0, %s26
      %s46 = sphi 0, %s46
      %s48 = sphi 0, %s46
      %s49 = sphi 0, %s48
      %s63 = sphi 0, %s49
      %s67 = sphi 0, %s67
      %s69 = sphi 0, %s67
      %s70 = sphi 0, %s69
      %s84 = sphi 0, %s70
      %s88 = sphi 0, %s88
      %s90 = sphi 0, %s88
      %s91 = sphi 0, %s90
      %s105 = sphi 0, %s91
      %s109 = sphi 0, %s109
      %s111 = sphi 0, %s109
      %s112 = sphi 0, %s111
      %s126 = sphi 0, %s112
      %s132 = sphi 0, %s134
      %s135 = sphi 0, %s132
      %s136 = sphi 0, %s135
      %s152 = sphi 0, %s136
    $region4: #{_forward.1} parent=1 // loop_header_branch
      %15 = sbr.rel (%p13) target = $region8
    $region5: #{_forward.1} parent=1 // loop_body
      %s17 = ssub.s32 %s12, 1
      %s18 = ssub.s32 %s12, 2
      %s19 = sadd.s32 %s12, 1
      %s20 = ssub.s32 %s12, %s19
      %p21 = scmp.eq.s32.totalorder %s20, 0
      %s23 = sadd.s32 %s22, 1
      %s24 = scalar_select %p21, %s22, %s23
      %p27 = pneg %p21
      %p28 = scmp.eq.s32.totalorder %s12, 1
      %p29 = por %p27, %p28
      %p30 = scmp.ne.s32.totalorder %s22, %s25
      %p31 = scmp.eq.s32.totalorder %s12, 0
      %p32 = por %p30, %p31
      %p33 = scmp.ne.s32.totalorder %s22, %s25
      %p34 = scmp.eq.s32.totalorder %s17, 1
      %p35 = por %p33, %p34
      %p36 = scmp.ne.s32.totalorder %s25, %s26
      %p37 = scmp.eq.s32.totalorder %s17, 0
      %p38 = por %p36, %p37
      %p39 = scmp.ne.s32.totalorder %s25, %s26
      %p40 = scmp.eq.s32.totalorder %s18, 1
      %p41 = por %p39, %p40
      %p43 = scmp.ne.s32.totalorder %s26, %s42
      %p44 = scmp.eq.s32.totalorder %s18, 0
      %p45 = por %p43, %p44
      %s47 = sadd.s32 %s46, 1
      %p50 = scmp.eq.s32.totalorder %s12, 1
      %p51 = scmp.ne.s32.totalorder %s46, %s48
      %p52 = scmp.eq.s32.totalorder %s12, 0
      %p53 = por %p51, %p52
      %p54 = scmp.ne.s32.totalorder %s46, %s48
      %p55 = scmp.eq.s32.totalorder %s17, 1
      %p56 = por %p54, %p55
      %p57 = scmp.ne.s32.totalorder %s48, %s49
      %p58 = scmp.eq.s32.totalorder %s17, 0
      %p59 = por %p57, %p58
      %p60 = scmp.ne.s32.totalorder %s48, %s49
      %p61 = scmp.eq.s32.totalorder %s18, 1
      %p62 = por %p60, %p61
      %p64 = scmp.ne.s32.totalorder %s49, %s63
      %p65 = scmp.eq.s32.totalorder %s18, 0
      %p66 = por %p64, %p65
      %s68 = sadd.s32 %s67, 1
      %p71 = scmp.eq.s32.totalorder %s12, 1
      %p72 = scmp.ne.s32.totalorder %s67, %s69
      %p73 = scmp.eq.s32.totalorder %s12, 0
      %p74 = por %p72, %p73
      %p75 = scmp.ne.s32.totalorder %s67, %s69
      %p76 = scmp.eq.s32.totalorder %s17, 1
      %p77 = por %p75, %p76
      %p78 = scmp.ne.s32.totalorder %s69, %s70
      %p79 = scmp.eq.s32.totalorder %s17, 0
      %p80 = por %p78, %p79
      %p81 = scmp.ne.s32.totalorder %s69, %s70
      %p82 = scmp.eq.s32.totalorder %s18, 1
      %p83 = por %p81, %p82
      %p85 = scmp.ne.s32.totalorder %s70, %s84
      %p86 = scmp.eq.s32.totalorder %s18, 0
      %p87 = por %p85, %p86
      %s89 = sadd.s32 %s88, 1
      %p92 = scmp.eq.s32.totalorder %s12, 1
      %p93 = scmp.ne.s32.totalorder %s88, %s90
      %p94 = scmp.eq.s32.totalorder %s12, 0
      %p95 = por %p93, %p94
      %p96 = scmp.ne.s32.totalorder %s88, %s90
      %p97 = scmp.eq.s32.totalorder %s17, 1
      %p98 = por %p96, %p97
      %p99 = scmp.ne.s32.totalorder %s90, %s91
      %p100 = scmp.eq.s32.totalorder %s17, 0
      %p101 = por %p99, %p100
      %p102 = scmp.ne.s32.totalorder %s90, %s91
      %p103 = scmp.eq.s32.totalorder %s18, 1
      %p104 = por %p102, %p103
      %p106 = scmp.ne.s32.totalorder %s91, %s105
      %p107 = scmp.eq.s32.totalorder %s18, 0
      %p108 = por %p106, %p107
      %s110 = sadd.s32 %s109, 1
      %p113 = scmp.eq.s32.totalorder %s12, 1
      %p114 = scmp.ne.s32.totalorder %s109, %s111
      %p115 = scmp.eq.s32.totalorder %s12, 0
      %p116 = por %p114, %p115
      %p117 = scmp.ne.s32.totalorder %s109, %s111
      %p118 = scmp.eq.s32.totalorder %s17, 1
      %p119 = por %p117, %p118
      %p120 = scmp.ne.s32.totalorder %s111, %s112
      %p121 = scmp.eq.s32.totalorder %s17, 0
      %p122 = por %p120, %p121
      %p123 = scmp.ne.s32.totalorder %s111, %s112
      %p124 = scmp.eq.s32.totalorder %s18, 1
      %p125 = por %p123, %p124
      %p127 = scmp.ne.s32.totalorder %s112, %s126
      %p128 = scmp.eq.s32.totalorder %s18, 0
      %p129 = por %p127, %p128
      %s130 = ssub.s32 %s12, %s19
      %p131 = scmp.eq.s32.totalorder %s130, 0
      %s133 = sadd.s32 %s132, 1
      %s134 = scalar_select %p131, %s132, %s133
      %p137 = pneg %p131
      %p138 = scmp.eq.s32.totalorder %s12, 1
      %p139 = por %p137, %p138
      %p140 = scmp.ne.s32.totalorder %s132, %s135
      %p141 = scmp.eq.s32.totalorder %s12, 0
      %p142 = por %p140, %p141
      %p143 = scmp.ne.s32.totalorder %s132, %s135
      %p144 = scmp.eq.s32.totalorder %s17, 1
      %p145 = por %p143, %p144
      %p146 = scmp.ne.s32.totalorder %s135, %s136
      %p147 = scmp.eq.s32.totalorder %s17, 0
      %p148 = por %p146, %p147
      %p149 = scmp.ne.s32.totalorder %s135, %s136
      %p150 = scmp.eq.s32.totalorder %s18, 1
      %p151 = por %p149, %p150
      %p153 = scmp.ne.s32.totalorder %s136, %s152
      %p154 = scmp.eq.s32.totalorder %s18, 0
      %p155 = por %p153, %p154
      %p156 = scmp.le.s32.totalorder 1, %s12
      %p157 = scmp.lt.s32.totalorder %s12, 3
      %p158 = pnand %p156, %p157
      %p159 = pneg %p158
      // Predicated region
      $region9: #{_forward.1} parent=5 // pred_check
        _
      $region10: #{_forward.1} parent=5 // pred_check_branch
        %161 = sbr.rel (%p158) target = $region12
      $region11: #{_forward.1} parent=5 // pred_region
        %s162 = ssub.s32 %s12, 1
        // Predicated region
        $region13: #{_forward.1} parent=11 // pred_check
          %p163 = pneg %p59
        $region14: #{_forward.1} parent=11 // pred_check_branch
          %165 = sbr.rel (%p163) target = $region16
        $region15: #{_forward.1} parent=11 // pred_region
          _
        $region16: #{_forward.1} parent=11 // pred_fallthru
          _
        // Predicated region
        $region17: #{_forward.1} parent=11 // pred_check
          %p166 = pneg %p80
        $region18: #{_forward.1} parent=11 // pred_check_branch
          %168 = sbr.rel (%p166) target = $region20
        $region19: #{_forward.1} parent=11 // pred_region
          _
        $region20: #{_forward.1} parent=11 // pred_fallthru
          _
        // Predicated region
        $region21: #{_forward.1} parent=11 // pred_check
          %p169 = pneg %p101
        $region22: #{_forward.1} parent=11 // pred_check_branch
          %171 = sbr.rel (%p169) target = $region24
        $region23: #{_forward.1} parent=11 // pred_region
          %s173 = ssub.s32 9216, 9216
          %174 = vsyncadd [#allocation5], %s173
          %s175 = sshll.u32 [#allocation4], 4
          %s176 = int_to_ptr.vmem [resolvable:$true] %s175
          %181 = dma.hbm_to_vmem [thread:$0]  %s3, 9216, %s176, [#allocation5], 64, 64, 4
        $region24: #{_forward.1} parent=11 // pred_fallthru
          _
        // Predicated region
        $region25: #{_forward.1} parent=11 // pred_check
          %p182 = pneg %p122
        $region26: #{_forward.1} parent=11 // pred_check_branch
          %184 = sbr.rel (%p182) target = $region28
        $region27: #{_forward.1} parent=11 // pred_region
          _
        $region28: #{_forward.1} parent=11 // pred_fallthru
          _
      $region12: #{_forward.1} parent=5 // pred_fallthru
        _
      %p185 = scmp.lt.s32.totalorder %s12, 2
      // Predicated region
      $region29: #{_forward.1} parent=5 // pred_check
        %p186 = pneg %p185
      $region30: #{_forward.1} parent=5 // pred_check_branch
        %188 = sbr.rel (%p186) target = $region32
      $region31: #{_forward.1} parent=5 // pred_region
        // Predicated region
        $region33: #{_forward.1} parent=31 // pred_check
          %p189 = pneg %p32
        $region34: #{_forward.1} parent=31 // pred_check_branch
          %191 = sbr.rel (%p189) target = $region36
        $region35: #{_forward.1} parent=31 // pred_region
          %p192 = scmp.lt.s32.totalorder %s12, 1
          %s193 = scalar_select %p192, %s12, 1
          %s194 = smul.addr %s193, 2
          %s195 = smul.addr %s194, 8
          %s196 = scalar_lea.vmem %s0, %s195
        $region36: #{_forward.1} parent=31 // pred_fallthru
          _
      $region32: #{_forward.1} parent=5 // pred_fallthru
        _
      %p197 = scmp.le.s32.totalorder 1, %s12
      %p198 = scmp.lt.s32.totalorder %s12, 3
      %p199 = pnand %p197, %p198
      %p200 = pneg %p199
      // Predicated region
      $region37: #{_forward.1} parent=5 // pred_check
        _
      $region38: #{_forward.1} parent=5 // pred_check_branch
        %202 = sbr.rel (%p199) target = $region40
      $region39: #{_forward.1} parent=5 // pred_region
        %s203 = ssub.s32 %s12, 1
        // Predicated region
        $region41: #{_forward.1} parent=39 // pred_check
          %p204 = pneg %p101
        $region42: #{_forward.1} parent=39 // pred_check_branch
          %206 = sbr.rel (%p204) target = $region44
        $region43: #{_forward.1} parent=39 // pred_region
          %207 = dma.done [#allocation5], 9216
        $region44: #{_forward.1} parent=39 // pred_fallthru
          _
        %p208 = scmp.lt.s32.totalorder %s17, 1
        %s209 = scalar_select %p208, %s17, 1
        %s210 = smul.addr %s209, 2
        %s211 = smul.addr %s210, 8
        %s212 = scalar_lea.vmem %s0, %s211
        %p213 = pneg %p38
        %p214 = pneg %p35
        %p215 = pneg %p59
        %p216 = pneg %p56
        %p217 = pneg %p80
        %p218 = pneg %p77
        %p219 = pneg %p101
        %p220 = pneg %p98
        %p221 = pneg %p122
        %p222 = pneg %p119
        %p223 = pneg %p148
        %p224 = pneg %p145
        %p225 = scmp.lt.s32.totalorder %s17, 1
        %s226 = scalar_select %p225, %s17, 1
        %s227 = smul.addr %s226, 2
        %s228 = smul.addr %s227, 8
        %s229 = scalar_lea.vmem %s5, %s228
        %p230 = scmp.lt.s32.totalorder %s17, 1
        %s231 = scalar_select %p230, %s17, 1
        %s232 = smul.addr %s231, 2
        %s233 = smul.addr %s232, 8
        %s234 = scalar_lea.vmem %s0, %s233
        %p235 = scmp.lt.s32.totalorder %s17, 1
        %s236 = scalar_select %p235, %s17, 1
        %s237 = smul.addr %s236, 2
        %s238 = smul.addr %s237, 8
        %s239 = scalar_lea.vmem %s5, %s238
        %vm241 = vcmask 385024
        %242 = vst.msk [vmem:[#allocation2] sm:$0x1] %vm241, 0
        %vm243 = vcmask 386049
        %244 = vst.msk [vmem:[#allocation2 + $0x8] sm:$0x2] %vm243, 0
        %v245 = vld [vmem:[%s234] sm:$0xff]
        %v246 = vld [vmem:[%s234 + $0x8] sm:$0xff]
        %v247 = vpack.c.bf16 %v246, %v245
        %v249 = vunpack.c.l.b16 %v247
        %v250 = vunpack.c.h.b16 %v247
        %v251 = vpack.c.b16 %v249, %v249
        %v252 = vpack.c.b16 %v250, %v250
        %vm253 = vcmask 1040384
        %vm254 = vcmask 1044484
        %vm255 = vmor %vm253, %vm254
        %v256 = vrot.slane %v251, 7
        %v257 = vrot.slane %v256, 4
        %v258 = vrot.slane %v252, 7
        %v259 = vsel %vm255, %v257, %v258
        %v260 = vrot.slane %v258, 4
        %vm264 = vcmask 388097
        %265 = vst.msk [vmem:[#allocation2] sm:$0xe] %vm264, %v256
        %vm266 = vcmask 388096
        %267 = vst.msk [vmem:[#allocation2 + $0x4] sm:$0xf] %vm266, %v259
        %268 = vst.msk [vmem:[#allocation2 + $0x8] sm:$0x1] %vm241, %v260
        %v269 = vld [vmem:[#allocation2] sm:$0xf]
        %v270 = vld [vmem:[#allocation2 + $0x4] sm:$0xf]
        %v271 = vld [vmem:[#allocation2 + $0x8] sm:$0x1]
        %v272 = vld [vmem:[%s1] sm:$0xff]
        %v273 = vld [vmem:[%s1 + $0x8] sm:$0xf]
        %v274 = vld [vmem:[%s1 + $0xc] sm:$0xff]
        %v275 = vld [vmem:[%s1 + $0x14] sm:$0xf]
        %v276 = vld [vmem:[%s1 + $0x18] sm:$0xff]
        %v277 = vld [vmem:[%s1 + $0x20] sm:$0xf]
        %v278 = vld [vmem:[%s1 + $0x24] sm:$0xff]
        %v279 = vld [vmem:[%s1 + $0x2c] sm:$0xf]
        %v280 = vld [vmem:[%s1 + $0x30] sm:$0xff]
        %v281 = vld [vmem:[%s1 + $0x38] sm:$0xf]
        %v282 = vld [vmem:[%s1 + $0x3c] sm:$0xff]
        %v283 = vld [vmem:[%s1 + $0x44] sm:$0xf]
        %v284 = vld [vmem:[#allocation2 + $0x8] sm:$0x3]
        %s285 = scalar_lea.vmem %s1, 72
        %v286 = vld [vmem:[%s285] sm:$0xff]
        %v287 = vld [vmem:[%s285 + $0x8] sm:$0xf]
        %v288 = vld [vmem:[%s285 + $0xc] sm:$0xff]
        %v289 = vld [vmem:[%s285 + $0x14] sm:$0xf]
        %v290 = vld [vmem:[%s285 + $0x18] sm:$0xff]
        %v291 = vld [vmem:[%s285 + $0x20] sm:$0xf]
        %v292 = vld [vmem:[%s285 + $0x24] sm:$0xff]
        %v293 = vld [vmem:[%s285 + $0x2c] sm:$0xf]
        %v294 = vld [vmem:[%s285 + $0x30] sm:$0xff]
        %v295 = vld [vmem:[%s285 + $0x38] sm:$0xf]
        %v296 = vld [vmem:[%s285 + $0x3c] sm:$0xff]
        %v297 = vld [vmem:[%s285 + $0x44] sm:$0xf]
        %v301 = vunpack.c.l.b16 %v269
        %v302 = vunpack.c.l.b16 %v270
        %v303 = vunpack.c.l.b16 %v284
        %v304 = vpack.c.b16 %v302, %v301
        %v305 = vpack.c.b16 %v303, %v303
        %vm306 = vsmask.f32 7424
        %v308 = vshrl.u32 %v304, 16
        %v310 = vshll.u32 %v304, 16
        %v312 = vrot.slane %v310, 1
        %v313 = vor.u32 %v308, %v312
        %v315 = vshll.u32 %v305, 16
        %v317 = vrot.slane %v315, 1
        %v318 = vsel %vm306, %v313, %v317
        %v319 = vshrl.u32 %v305, 16
        %v321 = vor.u32 %v319, %v317
        %v334 = vunpack.c.l.b16 %v286
        %v335 = vunpack.c.h.b16 %v286
        %v336 = vunpack.c.l.b16 %v287
        %v337 = vunpack.c.l.b16 %v288
        %v338 = vunpack.c.h.b16 %v288
        %v339 = vunpack.c.l.b16 %v289
        %v340 = vunpack.c.l.b16 %v290
        %v341 = vunpack.c.h.b16 %v290
        %v342 = vunpack.c.l.b16 %v291
        %v343 = vunpack.c.l.b16 %v292
        %v344 = vunpack.c.h.b16 %v292
        %v345 = vunpack.c.l.b16 %v293
        %v346 = vunpack.c.l.b16 %v294
        %v347 = vunpack.c.h.b16 %v294
        %v348 = vunpack.c.l.b16 %v295
        %v349 = vunpack.c.l.b16 %v296
        %v350 = vunpack.c.h.b16 %v296
        %v351 = vunpack.c.l.b16 %v297
        %v352 = vpack.c.b16 %v337, %v334
        %v353 = vpack.c.b16 %v338, %v335
        %v354 = vpack.c.b16 %v339, %v336
        %v355 = vpack.c.b16 %v343, %v340
        %v356 = vpack.c.b16 %v344, %v341
        %v357 = vpack.c.b16 %v345, %v342
        %v358 = vpack.c.b16 %v349, %v346
        %v359 = vpack.c.b16 %v350, %v347
        %v360 = vpack.c.b16 %v351, %v348
        %vm370 = vcmask 392192
        %v372 = vsel %vm370, %v318, 0
        %v375 = vsel %vm370, %v321, 0
        %377 = vmatprep.subr.bf16.mxu0 %v353
        %378 = vmatpush1.bf16.msra.mxu0 %v352
        %379 = vmatprep.subr.bf16.mxu0 %v356
        %380 = vmatpush1.bf16.msra.mxu0 %v355
        %381 = vmatprep.subr.bf16.mxu0 %v359
        %382 = vmatpush1.bf16.msra.mxu0 %v358
        %383 = vmatprep.subr.bf16.mxu0 0
        %384 = vmatpush1.bf16.msra.mxu0 0
        %385 = vmatprep.subr.bf16.mxu0 0
        %386 = vmatpush1.bf16.msra.mxu0 0
        %387 = vmatprep.subr.bf16.mxu0 0
        %388 = vmatpush1.bf16.msra.mxu0 0
        %389 = vmatprep.subr.bf16.mxu0 0
        %390 = vmatpush1.bf16.msra.mxu0 0
        %391 = vmatprep.subr.bf16.mxu0 0
        %392 = vmatpush1.bf16.msra.mxu0 0
        %393 = vmatprep.subr.bf16.mxu0 0
        %394 = vmatpush1.bf16.msra.mxu0 0
        %395 = vmatprep.subr.bf16.mxu0 0
        %396 = vmatpush1.bf16.msra.mxu0 0
        %397 = vmatprep.subr.bf16.mxu0 0
        %398 = vmatpush1.bf16.msra.mxu0 0
        %399 = vmatprep.subr.bf16.mxu0 0
        %400 = vmatpush1.bf16.msra.mxu0 0
        %401 = vmatprep.subr.bf16.mxu0 0
        %402 = vmatpush1.bf16.msra.mxu0 0
        %403 = vmatprep.subr.bf16.mxu0 0
        %404 = vmatpush1.bf16.msra.mxu0 0
        %405 = vmatprep.subr.bf16.mxu0 0
        %406 = vmatpush1.bf16.msra.mxu0 0
        %407 = vmatprep.subr.bf16.mxu0 0
        %408 = vmatpush1.bf16.msra.mxu0 0
        %409 = vmatprep.mubr.bf16.mxu0 0
        %410 = vmatmul.mubr.bf16.gmra.mrb[0].mxu0 %v372
        %v411 = vpop.f32.mrb[0].mxu0
        %v412 = vadd.f32 0.0, %v411
        %v413 = vpop.f32.mrb[0].mxu0
        %v414 = vadd.f32 0.0, %v413
        %v415 = vpop.f32.mrb[0].mxu0
        %v416 = vadd.f32 0.0, %v415
        %v417 = vpop.f32.mrb[0].mxu0
        %v418 = vadd.f32 0.0, %v417
        %419 = vmatprep.mubr.bf16.mxu0 0
        %420 = vmatmul.mubr.bf16.gmra.mrb[0].mxu0 %v375
        %v421 = vpop.f32.mrb[0].mxu0
        %v422 = vadd.f32 0.0, %v421
        %v423 = vpop.f32.mrb[0].mxu0
        %v424 = vadd.f32 0.0, %v423
        %v425 = vpop.f32.mrb[0].mxu0
        %v426 = vpop.f32.mrb[0].mxu0
        %427 = vdwg.mxu0
        %428 = vmatprep.subr.bf16.mxu0 0
        %429 = vmatpush1.bf16.msra.mxu0 %v354
        %430 = vmatprep.subr.bf16.mxu0 0
        %431 = vmatpush1.bf16.msra.mxu0 %v357
        %432 = vmatprep.subr.bf16.mxu0 0
        %433 = vmatpush1.bf16.msra.mxu0 %v360
        %434 = vmatprep.subr.bf16.mxu0 0
        %435 = vmatpush1.bf16.msra.mxu0 0
        %436 = vmatprep.subr.bf16.mxu0 0
        %437 = vmatpush1.bf16.msra.mxu0 0
        %438 = vmatprep.subr.bf16.mxu0 0
        %439 = vmatpush1.bf16.msra.mxu0 0
        %440 = vmatprep.subr.bf16.mxu0 0
        %441 = vmatpush1.bf16.msra.mxu0 0
        %442 = vmatprep.subr.bf16.mxu0 0
        %443 = vmatpush1.bf16.msra.mxu0 0
        %444 = vmatprep.subr.bf16.mxu0 0
        %445 = vmatpush1.bf16.msra.mxu0 0
        %446 = vmatprep.subr.bf16.mxu0 0
        %447 = vmatpush1.bf16.msra.mxu0 0
        %448 = vmatprep.subr.bf16.mxu0 0
        %449 = vmatpush1.bf16.msra.mxu0 0
        %450 = vmatprep.subr.bf16.mxu0 0
        %451 = vmatpush1.bf16.msra.mxu0 0
        %452 = vmatprep.subr.bf16.mxu0 0
        %453 = vmatpush1.bf16.msra.mxu0 0
        %454 = vmatprep.subr.bf16.mxu0 0
        %455 = vmatpush1.bf16.msra.mxu0 0
        %456 = vmatprep.subr.bf16.mxu0 0
        %457 = vmatpush1.bf16.msra.mxu0 0
        %458 = vmatprep.subr.bf16.mxu0 0
        %459 = vmatpush1.bf16.msra.mxu0 0
        %460 = vmatprep.mubr.bf16.mxu0 0
        %461 = vmatmul.mubr.bf16.gmra.mrb[0].mxu0 %v372
        %v462 = vpop.f32.mrb[0].mxu0
        %v463 = vadd.f32 0.0, %v462
        %v464 = vpop.f32.mrb[0].mxu0
        %v465 = vpop.f32.mrb[0].mxu0
        %v466 = vadd.f32 0.0, %v465
        %v467 = vpop.f32.mrb[0].mxu0
        %468 = vmatprep.mubr.bf16.mxu0 0
        %469 = vmatmul.mubr.bf16.gmra.mrb[0].mxu0 %v375
        %v470 = vpop.f32.mrb[0].mxu0
        %v471 = vadd.f32 0.0, %v470
        %v472 = vpop.f32.mrb[0].mxu0
        %v473 = vpop.f32.mrb[0].mxu0
        %v474 = vpop.f32.mrb[0].mxu0
        %475 = vdwg.mxu0
        %v477 = vunpack.c.l.b16 %v271
        %v478 = vpack.c.b16 %v477, %v477
        %v491 = vunpack.c.l.b16 %v272
        %v492 = vunpack.c.h.b16 %v272
        %v493 = vunpack.c.l.b16 %v273
        %v494 = vunpack.c.l.b16 %v274
        %v495 = vunpack.c.h.b16 %v274
        %v496 = vunpack.c.l.b16 %v275
        %v497 = vunpack.c.l.b16 %v276
        %v498 = vunpack.c.h.b16 %v276
        %v499 = vunpack.c.l.b16 %v277
        %v500 = vunpack.c.l.b16 %v278
        %v501 = vunpack.c.h.b16 %v278
        %v502 = vunpack.c.l.b16 %v279
        %v503 = vunpack.c.l.b16 %v280
        %v504 = vunpack.c.h.b16 %v280
        %v505 = vunpack.c.l.b16 %v281
        %v506 = vunpack.c.l.b16 %v282
        %v507 = vunpack.c.h.b16 %v282
        %v508 = vunpack.c.l.b16 %v283
        %v509 = vpack.c.b16 %v494, %v491
        %v510 = vpack.c.b16 %v495, %v492
        %v511 = vpack.c.b16 %v496, %v493
        %v512 = vpack.c.b16 %v500, %v497
        %v513 = vpack.c.b16 %v501, %v498
        %v514 = vpack.c.b16 %v502, %v499
        %v515 = vpack.c.b16 %v506, %v503
        %v516 = vpack.c.b16 %v507, %v504
        %v517 = vpack.c.b16 %v508, %v505
        %v527 = vsel %vm370, %v304, 0
        %v530 = vsel %vm370, %v478, 0
        %532 = vmatprep.subr.bf16.mxu0 %v510
        %533 = vmatpush1.bf16.msra.mxu0 %v509
        %534 = vmatprep.subr.bf16.mxu0 %v513
        %535 = vmatpush1.bf16.msra.mxu0 %v512
        %536 = vmatprep.subr.bf16.mxu0 %v516
        %537 = vmatpush1.bf16.msra.mxu0 %v515
        %538 = vmatprep.subr.bf16.mxu0 0
        %539 = vmatpush1.bf16.msra.mxu0 0
        %540 = vmatprep.subr.bf16.mxu0 0
        %541 = vmatpush1.bf16.msra.mxu0 0
        %542 = vmatprep.subr.bf16.mxu0 0
        %543 = vmatpush1.bf16.msra.mxu0 0
        %544 = vmatprep.subr.bf16.mxu0 0
        %545 = vmatpush1.bf16.msra.mxu0 0
        %546 = vmatprep.subr.bf16.mxu0 0
        %547 = vmatpush1.bf16.msra.mxu0 0
        %548 = vmatprep.subr.bf16.mxu0 0
        %549 = vmatpush1.bf16.msra.mxu0 0
        %550 = vmatprep.subr.bf16.mxu0 0
        %551 = vmatpush1.bf16.msra.mxu0 0
        %552 = vmatprep.subr.bf16.mxu0 0
        %553 = vmatpush1.bf16.msra.mxu0 0
        %554 = vmatprep.subr.bf16.mxu0 0
        %555 = vmatpush1.bf16.msra.mxu0 0
        %556 = vmatprep.subr.bf16.mxu0 0
        %557 = vmatpush1.bf16.msra.mxu0 0
        %558 = vmatprep.subr.bf16.mxu0 0
        %559 = vmatpush1.bf16.msra.mxu0 0
        %560 = vmatprep.subr.bf16.mxu0 0
        %561 = vmatpush1.bf16.msra.mxu0 0
        %562 = vmatprep.subr.bf16.mxu0 0
        %563 = vmatpush1.bf16.msra.mxu0 0
        %564 = vmatprep.mubr.bf16.mxu0 0
        %565 = vmatmul.mubr.bf16.gmra.mrb[0].mxu0 %v527
        %v566 = vpop.f32.mrb[0].mxu0
        %v567 = vadd.f32 %v412, %v566
        %v568 = vpop.f32.mrb[0].mxu0
        %v569 = vadd.f32 %v414, %v568
        %v570 = vpop.f32.mrb[0].mxu0
        %v571 = vadd.f32 %v416, %v570
        %v572 = vpop.f32.mrb[0].mxu0
        %v573 = vadd.f32 %v418, %v572
        %574 = vmatprep.mubr.bf16.mxu0 0
        %575 = vmatmul.mubr.bf16.gmra.mrb[0].mxu0 %v530
        %v576 = vpop.f32.mrb[0].mxu0
        %v577 = vadd.f32 %v422, %v576
        %v578 = vpop.f32.mrb[0].mxu0
        %v579 = vadd.f32 %v424, %v578
        %v580 = vpop.f32.mrb[0].mxu0
        %v581 = vpop.f32.mrb[0].mxu0
        %582 = vdwg.mxu0
        %583 = vmatprep.subr.bf16.mxu0 0
        %584 = vmatpush1.bf16.msra.mxu0 %v511
        %585 = vmatprep.subr.bf16.mxu0 0
        %586 = vmatpush1.bf16.msra.mxu0 %v514
        %587 = vmatprep.subr.bf16.mxu0 0
        %588 = vmatpush1.bf16.msra.mxu0 %v517
        %589 = vmatprep.subr.bf16.mxu0 0
        %590 = vmatpush1.bf16.msra.mxu0 0
        %591 = vmatprep.subr.bf16.mxu0 0
        %592 = vmatpush1.bf16.msra.mxu0 0
        %593 = vmatprep.subr.bf16.mxu0 0
        %594 = vmatpush1.bf16.msra.mxu0 0
        %595 = vmatprep.subr.bf16.mxu0 0
        %596 = vmatpush1.bf16.msra.mxu0 0
        %597 = vmatprep.subr.bf16.mxu0 0
        %598 = vmatpush1.bf16.msra.mxu0 0
        %599 = vmatprep.subr.bf16.mxu0 0
        %600 = vmatpush1.bf16.msra.mxu0 0
        %601 = vmatprep.subr.bf16.mxu0 0
        %602 = vmatpush1.bf16.msra.mxu0 0
        %603 = vmatprep.subr.bf16.mxu0 0
        %604 = vmatpush1.bf16.msra.mxu0 0
        %605 = vmatprep.subr.bf16.mxu0 0
        %606 = vmatpush1.bf16.msra.mxu0 0
        %607 = vmatprep.subr.bf16.mxu0 0
        %608 = vmatpush1.bf16.msra.mxu0 0
        %609 = vmatprep.subr.bf16.mxu0 0
        %610 = vmatpush1.bf16.msra.mxu0 0
        %611 = vmatprep.subr.bf16.mxu0 0
        %612 = vmatpush1.bf16.msra.mxu0 0
        %613 = vmatprep.subr.bf16.mxu0 0
        %614 = vmatpush1.bf16.msra.mxu0 0
        %615 = vmatprep.mubr.bf16.mxu0 0
        %616 = vmatmul.mubr.bf16.gmra.mrb[0].mxu0 %v527
        %v617 = vpop.f32.mrb[0].mxu0
        %v618 = vadd.f32 %v463, %v617
        %v619 = vpop.f32.mrb[0].mxu0
        %v620 = vpop.f32.mrb[0].mxu0
        %v621 = vadd.f32 %v466, %v620
        %v622 = vpop.f32.mrb[0].mxu0
        %623 = vmatprep.mubr.bf16.mxu0 0
        %624 = vmatmul.mubr.bf16.gmra.mrb[0].mxu0 %v530
        %v625 = vpop.f32.mrb[0].mxu0
        %v626 = vadd.f32 %v471, %v625
        %v627 = vpop.f32.mrb[0].mxu0
        %v628 = vpop.f32.mrb[0].mxu0
        %v629 = vpop.f32.mrb[0].mxu0
        %630 = vdwg.mxu0
        %v631 = vld [vmem:[#allocation2] sm:$0xe]
        %s632 = scalar_lea.vmem %s1, 144
        %v633 = vld [vmem:[%s632] sm:$0xff]
        %v634 = vld [vmem:[%s632 + $0x8] sm:$0xf]
        %v635 = vld [vmem:[%s632 + $0xc] sm:$0xff]
        %v636 = vld [vmem:[%s632 + $0x14] sm:$0xf]
        %v637 = vld [vmem:[%s632 + $0x18] sm:$0xff]
        %v638 = vld [vmem:[%s632 + $0x20] sm:$0xf]
        %v639 = vld [vmem:[%s632 + $0x24] sm:$0xff]
        %v640 = vld [vmem:[%s632 + $0x2c] sm:$0xf]
        %v641 = vld [vmem:[%s632 + $0x30] sm:$0xff]
        %v642 = vld [vmem:[%s632 + $0x38] sm:$0xf]
        %v643 = vld [vmem:[%s632 + $0x3c] sm:$0xff]
        %v644 = vld [vmem:[%s632 + $0x44] sm:$0xf]
        %v646 = vunpack.c.l.b16 %v631
        %v647 = vpack.c.b16 %v302, %v646
        %vm648 = vcmask 1046528
        %v649 = vrot.slane %v647, 1
        %v650 = vrot.slane %v305, 1
        %v651 = vsel %vm648, %v649, %v650
        %v664 = vunpack.c.l.b16 %v633
        %v665 = vunpack.c.h.b16 %v633
        %v666 = vunpack.c.l.b16 %v634
        %v667 = vunpack.c.l.b16 %v635
        %v668 = vunpack.c.h.b16 %v635
        %v669 = vunpack.c.l.b16 %v636
        %v670 = vunpack.c.l.b16 %v637
        %v671 = vunpack.c.h.b16 %v637
        %v672 = vunpack.c.l.b16 %v638
        %v673 = vunpack.c.l.b16 %v639
        %v674 = vunpack.c.h.b16 %v639
        %v675 = vunpack.c.l.b16 %v640
        %v676 = vunpack.c.l.b16 %v641
        %v677 = vunpack.c.h.b16 %v641
        %v678 = vunpack.c.l.b16 %v642
        %v679 = vunpack.c.l.b16 %v643
        %v680 = vunpack.c.h.b16 %v643
        %v681 = vunpack.c.l.b16 %v644
        %v682 = vpack.c.b16 %v667, %v664
        %v683 = vpack.c.b16 %v668, %v665
        %v684 = vpack.c.b16 %v669, %v666
        %v685 = vpack.c.b16 %v673, %v670
        %v686 = vpack.c.b16 %v674, %v671
        %v687 = vpack.c.b16 %v675, %v672
        %v688 = vpack.c.b16 %v679, %v676
        %v689 = vpack.c.b16 %v680, %v677
        %v690 = vpack.c.b16 %v681, %v678
        %v701 = vsel %vm370, %v651, 0
        %v704 = vsel %vm370, %v650, 0
        %706 = vmatprep.subr.bf16.mxu0 %v683
        %707 = vmatpush1.bf16.msra.mxu0 %v682
        %708 = vmatprep.subr.bf16.mxu0 %v686
        %709 = vmatpush1.bf16.msra.mxu0 %v685
        %710 = vmatprep.subr.bf16.mxu0 %v689
        %711 = vmatpush1.bf16.msra.mxu0 %v688
        %712 = vmatprep.subr.bf16.mxu0 0
        %713 = vmatpush1.bf16.msra.mxu0 0
        %714 = vmatprep.subr.bf16.mxu0 0
        %715 = vmatpush1.bf16.msra.mxu0 0
        %716 = vmatprep.subr.bf16.mxu0 0
        %717 = vmatpush1.bf16.msra.mxu0 0
        %718 = vmatprep.subr.bf16.mxu0 0
        %719 = vmatpush1.bf16.msra.mxu0 0
        %720 = vmatprep.subr.bf16.mxu0 0
        %721 = vmatpush1.bf16.msra.mxu0 0
        %722 = vmatprep.subr.bf16.mxu0 0
        %723 = vmatpush1.bf16.msra.mxu0 0
        %724 = vmatprep.subr.bf16.mxu0 0
        %725 = vmatpush1.bf16.msra.mxu0 0
        %726 = vmatprep.subr.bf16.mxu0 0
        %727 = vmatpush1.bf16.msra.mxu0 0
        %728 = vmatprep.subr.bf16.mxu0 0
        %729 = vmatpush1.bf16.msra.mxu0 0
        %730 = vmatprep.subr.bf16.mxu0 0
        %731 = vmatpush1.bf16.msra.mxu0 0
        %732 = vmatprep.subr.bf16.mxu0 0
        %733 = vmatpush1.bf16.msra.mxu0 0
        %734 = vmatprep.subr.bf16.mxu0 0
        %735 = vmatpush1.bf16.msra.mxu0 0
        %736 = vmatprep.subr.bf16.mxu0 0
        %737 = vmatpush1.bf16.msra.mxu0 0
        %738 = vmatprep.mubr.bf16.mxu0 0
        %739 = vmatmul.mubr.bf16.gmra.mrb[0].mxu0 %v701
        %v740 = vpop.f32.mrb[0].mxu0
        %v741 = vadd.f32 0.0, %v740
        %v742 = vpop.f32.mrb[0].mxu0
        %v743 = vadd.f32 0.0, %v742
        %v744 = vpop.f32.mrb[0].mxu0
        %v745 = vadd.f32 0.0, %v744
        %v746 = vpop.f32.mrb[0].mxu0
        %v747 = vadd.f32 0.0, %v746
        %748 = vmatprep.mubr.bf16.mxu0 0
        %749 = vmatmul.mubr.bf16.gmra.mrb[0].mxu0 %v704
        %v750 = vpop.f32.mrb[0].mxu0
        %v751 = vadd.f32 0.0, %v750
        %v752 = vpop.f32.mrb[0].mxu0
        %v753 = vadd.f32 0.0, %v752
        %v754 = vpop.f32.mrb[0].mxu0
        %v755 = vpop.f32.mrb[0].mxu0
        %756 = vdwg.mxu0
        %757 = vmatprep.subr.bf16.mxu0 0
        %758 = vmatpush1.bf16.msra.mxu0 %v684
        %759 = vmatprep.subr.bf16.mxu0 0
        %760 = vmatpush1.bf16.msra.mxu0 %v687
        %761 = vmatprep.subr.bf16.mxu0 0
        %762 = vmatpush1.bf16.msra.mxu0 %v690
        %763 = vmatprep.subr.bf16.mxu0 0
        %764 = vmatpush1.bf16.msra.mxu0 0
        %765 = vmatprep.subr.bf16.mxu0 0
        %766 = vmatpush1.bf16.msra.mxu0 0
        %767 = vmatprep.subr.bf16.mxu0 0
        %768 = vmatpush1.bf16.msra.mxu0 0
        %769 = vmatprep.subr.bf16.mxu0 0
        %770 = vmatpush1.bf16.msra.mxu0 0
        %771 = vmatprep.subr.bf16.mxu0 0
        %772 = vmatpush1.bf16.msra.mxu0 0
        %773 = vmatprep.subr.bf16.mxu0 0
        %774 = vmatpush1.bf16.msra.mxu0 0
        %775 = vmatprep.subr.bf16.mxu0 0
        %776 = vmatpush1.bf16.msra.mxu0 0
        %777 = vmatprep.subr.bf16.mxu0 0
        %778 = vmatpush1.bf16.msra.mxu0 0
        %779 = vmatprep.subr.bf16.mxu0 0
        %780 = vmatpush1.bf16.msra.mxu0 0
        %781 = vmatprep.subr.bf16.mxu0 0
        %782 = vmatpush1.bf16.msra.mxu0 0
        %783 = vmatprep.subr.bf16.mxu0 0
        %784 = vmatpush1.bf16.msra.mxu0 0
        %785 = vmatprep.subr.bf16.mxu0 0
        %786 = vmatpush1.bf16.msra.mxu0 0
        %787 = vmatprep.subr.bf16.mxu0 0
        %788 = vmatpush1.bf16.msra.mxu0 0
        %789 = vmatprep.mubr.bf16.mxu0 0
        %790 = vmatmul.mubr.bf16.gmra.mrb[0].mxu0 %v701
        %v791 = vpop.f32.mrb[0].mxu0
        %v792 = vadd.f32 0.0, %v791
        %v793 = vpop.f32.mrb[0].mxu0
        %v794 = vpop.f32.mrb[0].mxu0
        %v795 = vadd.f32 0.0, %v794
        %v796 = vpop.f32.mrb[0].mxu0
        %797 = vmatprep.mubr.bf16.mxu0 0
        %798 = vmatmul.mubr.bf16.gmra.mrb[0].mxu0 %v704
        %v799 = vpop.f32.mrb[0].mxu0
        %v800 = vadd.f32 0.0, %v799
        %v801 = vpop.f32.mrb[0].mxu0
        %v802 = vpop.f32.mrb[0].mxu0
        %v803 = vpop.f32.mrb[0].mxu0
        %804 = vdwg.mxu0
        %v805 = vadd.f32 %v567, %v741
        %v806 = vadd.f32 %v569, %v743
        %v807 = vadd.f32 %v618, %v792
        %v808 = vadd.f32 %v571, %v745
        %v809 = vadd.f32 %v573, %v747
        %v810 = vadd.f32 %v621, %v795
        %v811 = vadd.f32 %v577, %v751
        %v812 = vadd.f32 %v579, %v753
        %v813 = vadd.f32 %v626, %v800
        %v814 = vld [vmem:[%s2] sm:$0x7]
        %v816 = vlaneseq
        %v817 = vshrl.u32 %v816, 7
        %v818 = vsub.s32 0, %v817
        %v819 = vrot.slane %v814, %v818
        %v820 = vlaneseq
        %v821 = vshrl.u32 %v820, 7
        %v822 = vsub.s32 1, %v821
        %v823 = vrot.slane %v814, %v822
        %v824 = vlaneseq
        %v825 = vshrl.u32 %v824, 7
        %v826 = vsub.s32 2, %v825
        %v827 = vrot.slane %v814, %v826
        %v831 = vadd.f32 %v805, %v819
        %v832 = vadd.f32 %v806, %v823
        %v833 = vadd.f32 %v807, %v827
        %v834 = vadd.f32 %v808, %v819
        %v835 = vadd.f32 %v809, %v823
        %v836 = vadd.f32 %v810, %v827
        %v837 = vadd.f32 %v811, %v819
        %v838 = vadd.f32 %v812, %v823
        %v839 = vadd.f32 %v813, %v827
        %v840 = vpack.c.bf16 %v834, %v831
        %v841 = vpack.c.bf16 %v835, %v832
        %v842 = vpack.c.bf16 %v836, %v833
        %v843 = vpack.c.bf16 %v837, %v837
        %v844 = vpack.c.bf16 %v838, %v838
        %v845 = vpack.c.bf16 %v839, %v839
        %v852 = vunpack.c.l.b16 %v840
        %v853 = vunpack.c.l.b16 %v841
        %v854 = vunpack.c.l.b16 %v842
        %v855 = vunpack.c.h.b16 %v840
        %v856 = vunpack.c.h.b16 %v841
        %v857 = vunpack.c.h.b16 %v842
        %v858 = vunpack.c.l.b16 %v843
        %v859 = vunpack.c.l.b16 %v844
        %v860 = vunpack.c.l.b16 %v845
        %v861 = vpack.c.b16 %v853, %v852
        %v862 = vpack.c.b16 %v854, %v854
        %v863 = vpack.c.b16 %v856, %v855
        %v864 = vpack.c.b16 %v857, %v857
        %v865 = vpack.c.b16 %v859, %v858
        %v866 = vpack.c.b16 %v860, %v860
        %873 = vst [vmem:[#allocation3] sm:$0xff] %v861
        %874 = vst [vmem:[#allocation3 + $0x8] sm:$0xf] %v862
        %875 = vst [vmem:[#allocation3 + $0xc] sm:$0xff] %v863
        %876 = vst [vmem:[#allocation3 + $0x14] sm:$0xf] %v864
        %877 = vst [vmem:[#allocation3 + $0x18] sm:$0x11] %v865
        %878 = vst [vmem:[#allocation3 + $0x20] sm:$0x1] %v866
        %v879 = vld [vmem:[#allocation3] sm:$0xff]
        %v880 = vld [vmem:[#allocation3 + $0x8] sm:$0xf]
        %v881 = vld [vmem:[#allocation3 + $0xc] sm:$0xff]
        %v882 = vld [vmem:[#allocation3 + $0x14] sm:$0xf]
        %v883 = vld [vmem:[#allocation4] sm:$0xf]
        %v884 = vld [vmem:[#allocation4 + $0x4] sm:$0xf]
        %v885 = vld [vmem:[#allocation4 + $0x8] sm:$0xf]
        %v886 = vld [vmem:[#allocation4 + $0xc] sm:$0xf]
        %v887 = vld [vmem:[#allocation4 + $0x10] sm:$0xf]
        %v888 = vld [vmem:[#allocation4 + $0x14] sm:$0xf]
        %v889 = vld [vmem:[#allocation4 + $0x18] sm:$0xf]
        %v890 = vld [vmem:[#allocation4 + $0x1c] sm:$0xf]
        %v891 = vld [vmem:[#allocation4 + $0x20] sm:$0xf]
        %v892 = vld [vmem:[#allocation4 + $0x24] sm:$0xf]
        %v893 = vld [vmem:[#allocation4 + $0x28] sm:$0xf]
        %v894 = vld [vmem:[#allocation4 + $0x2c] sm:$0xf]
        %v895 = vld [vmem:[#allocation4 + $0x30] sm:$0xf]
        %v896 = vld [vmem:[#allocation4 + $0x34] sm:$0xf]
        %v897 = vld [vmem:[#allocation4 + $0x38] sm:$0xf]
        %v898 = vld [vmem:[#allocation4 + $0x3c] sm:$0xf]
        %v899 = vld [vmem:[#allocation4 + $0x40] sm:$0xf]
        %v900 = vld [vmem:[#allocation4 + $0x44] sm:$0xf]
        %v901 = vld [vmem:[#allocation4 + $0x48] sm:$0xf]
        %v902 = vld [vmem:[#allocation4 + $0x4c] sm:$0xf]
        %v903 = vld [vmem:[#allocation4 + $0x50] sm:$0xf]
        %v904 = vld [vmem:[#allocation4 + $0x54] sm:$0xf]
        %v905 = vld [vmem:[#allocation4 + $0x58] sm:$0xf]
        %v906 = vld [vmem:[#allocation4 + $0x5c] sm:$0xf]
        %v907 = vld [vmem:[#allocation4 + $0x60] sm:$0xf]
        %v908 = vld [vmem:[#allocation4 + $0x64] sm:$0xf]
        %v909 = vld [vmem:[#allocation4 + $0x68] sm:$0xf]
        %v910 = vld [vmem:[#allocation4 + $0x6c] sm:$0xf]
        %v911 = vld [vmem:[#allocation4 + $0x70] sm:$0xf]
        %v912 = vld [vmem:[#allocation4 + $0x74] sm:$0xf]
        %v913 = vld [vmem:[#allocation4 + $0x78] sm:$0xf]
        %v914 = vld [vmem:[#allocation4 + $0x7c] sm:$0xf]
        %v915 = vld [vmem:[#allocation4 + $0x80] sm:$0xf]
        %v916 = vld [vmem:[#allocation4 + $0x84] sm:$0xf]
        %v917 = vld [vmem:[#allocation4 + $0x88] sm:$0xf]
        %v918 = vld [vmem:[#allocation4 + $0x8c] sm:$0xf]
        %v919 = vld [vmem:[#allocation4 + $0x90] sm:$0xf]
        %v920 = vld [vmem:[#allocation4 + $0x94] sm:$0xf]
        %v921 = vld [vmem:[#allocation4 + $0x98] sm:$0xf]
        %v922 = vld [vmem:[#allocation4 + $0x9c] sm:$0xf]
        %v923 = vld [vmem:[#allocation4 + $0xa0] sm:$0xf]
        %v924 = vld [vmem:[#allocation4 + $0xa4] sm:$0xf]
        %v925 = vld [vmem:[#allocation4 + $0xa8] sm:$0xf]
        %v926 = vld [vmem:[#allocation4 + $0xac] sm:$0xf]
        %v927 = vld [vmem:[#allocation4 + $0xb0] sm:$0xf]
        %v928 = vld [vmem:[#allocation4 + $0xb4] sm:$0xf]
        %v929 = vld [vmem:[#allocation4 + $0xb8] sm:$0xf]
        %v930 = vld [vmem:[#allocation4 + $0xbc] sm:$0xf]
        %v931 = vld [vmem:[#allocation3 + $0x18] sm:$0x11]
        %v932 = vld [vmem:[#allocation3 + $0x20] sm:$0x1]
        %s933 = scalar_lea.vmem [#allocation4], 192
        %v934 = vld [vmem:[%s933] sm:$0xf]
        %v935 = vld [vmem:[%s933 + $0x4] sm:$0xf]
        %v936 = vld [vmem:[%s933 + $0x8] sm:$0xf]
        %v937 = vld [vmem:[%s933 + $0xc] sm:$0xf]
        %v938 = vld [vmem:[%s933 + $0x10] sm:$0xf]
        %v939 = vld [vmem:[%s933 + $0x14] sm:$0xf]
        %v940 = vld [vmem:[%s933 + $0x18] sm:$0xf]
        %v941 = vld [vmem:[%s933 + $0x1c] sm:$0xf]
        %v942 = vld [vmem:[%s933 + $0x20] sm:$0xf]
        %v943 = vld [vmem:[%s933 + $0x24] sm:$0xf]
        %v944 = vld [vmem:[%s933 + $0x28] sm:$0xf]
        %v945 = vld [vmem:[%s933 + $0x2c] sm:$0xf]
        %v946 = vld [vmem:[%s933 + $0x30] sm:$0xf]
        %v947 = vld [vmem:[%s933 + $0x34] sm:$0xf]
        %v948 = vld [vmem:[%s933 + $0x38] sm:$0xf]
        %v949 = vld [vmem:[%s933 + $0x3c] sm:$0xf]
        %v950 = vld [vmem:[%s933 + $0x40] sm:$0xf]
        %v951 = vld [vmem:[%s933 + $0x44] sm:$0xf]
        %v952 = vld [vmem:[%s933 + $0x48] sm:$0xf]
        %v953 = vld [vmem:[%s933 + $0x4c] sm:$0xf]
        %v954 = vld [vmem:[%s933 + $0x50] sm:$0xf]
        %v955 = vld [vmem:[%s933 + $0x54] sm:$0xf]
        %v956 = vld [vmem:[%s933 + $0x58] sm:$0xf]
        %v957 = vld [vmem:[%s933 + $0x5c] sm:$0xf]
        %v958 = vld [vmem:[%s933 + $0x60] sm:$0xf]
        %v959 = vld [vmem:[%s933 + $0x64] sm:$0xf]
        %v960 = vld [vmem:[%s933 + $0x68] sm:$0xf]
        %v961 = vld [vmem:[%s933 + $0x6c] sm:$0xf]
        %v962 = vld [vmem:[%s933 + $0x70] sm:$0xf]
        %v963 = vld [vmem:[%s933 + $0x74] sm:$0xf]
        %v964 = vld [vmem:[%s933 + $0x78] sm:$0xf]
        %v965 = vld [vmem:[%s933 + $0x7c] sm:$0xf]
        %v966 = vld [vmem:[%s933 + $0x80] sm:$0xf]
        %v967 = vld [vmem:[%s933 + $0x84] sm:$0xf]
        %v968 = vld [vmem:[%s933 + $0x88] sm:$0xf]
        %v969 = vld [vmem:[%s933 + $0x8c] sm:$0xf]
        %v970 = vld [vmem:[%s933 + $0x90] sm:$0xf]
        %v971 = vld [vmem:[%s933 + $0x94] sm:$0xf]
        %v972 = vld [vmem:[%s933 + $0x98] sm:$0xf]
        %v973 = vld [vmem:[%s933 + $0x9c] sm:$0xf]
        %v974 = vld [vmem:[%s933 + $0xa0] sm:$0xf]
        %v975 = vld [vmem:[%s933 + $0xa4] sm:$0xf]
        %v976 = vld [vmem:[%s933 + $0xa8] sm:$0xf]
        %v977 = vld [vmem:[%s933 + $0xac] sm:$0xf]
        %v978 = vld [vmem:[%s933 + $0xb0] sm:$0xf]
        %v979 = vld [vmem:[%s933 + $0xb4] sm:$0xf]
        %v980 = vld [vmem:[%s933 + $0xb8] sm:$0xf]
        %v981 = vld [vmem:[%s933 + $0xbc] sm:$0xf]
        %v988 = vunpack.c.l.b16 %v879
        %v989 = vunpack.c.h.b16 %v879
        %v990 = vunpack.c.l.b16 %v880
        %v991 = vunpack.c.l.b16 %v881
        %v992 = vunpack.c.h.b16 %v881
        %v993 = vunpack.c.l.b16 %v882
        %v994 = vunpack.c.l.b16 %v931
        %v995 = vunpack.c.h.b16 %v931
        %v996 = vunpack.c.l.b16 %v932
        %v997 = vpack.c.b16 %v991, %v988
        %v998 = vpack.c.b16 %v992, %v989
        %v999 = vpack.c.b16 %v993, %v990
        %v1000 = vpack.c.b16 %v994, %v994
        %v1001 = vpack.c.b16 %v995, %v995
        %v1002 = vpack.c.b16 %v996, %v996
        %v1004 = vshrl.u32 %v997, 16
        %v1006 = vshll.u32 %v997, 16
        %v1008 = vrot.slane %v1006, 1
        %v1009 = vor.u32 %v1004, %v1008
        %v1011 = vshll.u32 %v1000, 16
        %v1013 = vrot.slane %v1011, 1
        %v1014 = vsel %vm306, %v1009, %v1013
        %v1016 = vshrl.u32 %v998, 16
        %v1018 = vshll.u32 %v998, 16
        %v1020 = vrot.slane %v1018, 1
        %v1021 = vor.u32 %v1016, %v1020
        %v1023 = vshll.u32 %v1001, 16
        %v1025 = vrot.slane %v1023, 1
        %v1026 = vsel %vm306, %v1021, %v1025
        %v1028 = vshrl.u32 %v999, 16
        %v1030 = vshll.u32 %v999, 16
        %v1032 = vrot.slane %v1030, 1
        %v1033 = vor.u32 %v1028, %v1032
        %v1035 = vshll.u32 %v1002, 16
        %v1037 = vrot.slane %v1035, 1
        %v1038 = vsel %vm306, %v1033, %v1037
        %v1090 = vunpack.c.l.b16 %v934
        %v1091 = vunpack.c.l.b16 %v935
        %v1092 = vunpack.c.l.b16 %v936
        %v1093 = vunpack.c.l.b16 %v937
        %v1094 = vunpack.c.l.b16 %v938
        %v1095 = vunpack.c.l.b16 %v939
        %v1096 = vunpack.c.l.b16 %v940
        %v1097 = vunpack.c.l.b16 %v941
        %v1098 = vunpack.c.l.b16 %v942
        %v1099 = vunpack.c.l.b16 %v943
        %v1100 = vunpack.c.l.b16 %v944
        %v1101 = vunpack.c.l.b16 %v945
        %v1102 = vunpack.c.l.b16 %v946
        %v1103 = vunpack.c.l.b16 %v947
        %v1104 = vunpack.c.l.b16 %v948
        %v1105 = vunpack.c.l.b16 %v949
        %v1106 = vunpack.c.l.b16 %v950
        %v1107 = vunpack.c.l.b16 %v951
        %v1108 = vunpack.c.l.b16 %v952
        %v1109 = vunpack.c.l.b16 %v953
        %v1110 = vunpack.c.l.b16 %v954
        %v1111 = vunpack.c.l.b16 %v955
        %v1112 = vunpack.c.l.b16 %v956
        %v1113 = vunpack.c.l.b16 %v957
        %v1114 = vunpack.c.l.b16 %v958
        %v1115 = vunpack.c.l.b16 %v959
        %v1116 = vunpack.c.l.b16 %v960
        %v1117 = vunpack.c.l.b16 %v961
        %v1118 = vunpack.c.l.b16 %v962
        %v1119 = vunpack.c.l.b16 %v963
        %v1120 = vunpack.c.l.b16 %v964
        %v1121 = vunpack.c.l.b16 %v965
        %v1122 = vunpack.c.l.b16 %v966
        %v1123 = vunpack.c.l.b16 %v967
        %v1124 = vunpack.c.l.b16 %v968
        %v1125 = vunpack.c.l.b16 %v969
        %v1126 = vunpack.c.l.b16 %v970
        %v1127 = vunpack.c.l.b16 %v971
        %v1128 = vunpack.c.l.b16 %v972
        %v1129 = vunpack.c.l.b16 %v973
        %v1130 = vunpack.c.l.b16 %v974
        %v1131 = vunpack.c.l.b16 %v975
        %v1132 = vunpack.c.l.b16 %v976
        %v1133 = vunpack.c.l.b16 %v977
        %v1134 = vunpack.c.l.b16 %v978
        %v1135 = vunpack.c.l.b16 %v979
        %v1136 = vunpack.c.l.b16 %v980
        %v1137 = vunpack.c.l.b16 %v981
        %v1138 = vpack.c.b16 %v1091, %v1090
        %v1139 = vpack.c.b16 %v1093, %v1092
        %v1140 = vpack.c.b16 %v1095, %v1094
        %v1141 = vpack.c.b16 %v1097, %v1096
        %v1142 = vpack.c.b16 %v1099, %v1098
        %v1143 = vpack.c.b16 %v1101, %v1100
        %v1144 = vpack.c.b16 %v1103, %v1102
        %v1145 = vpack.c.b16 %v1105, %v1104
        %v1146 = vpack.c.b16 %v1107, %v1106
        %v1147 = vpack.c.b16 %v1109, %v1108
        %v1148 = vpack.c.b16 %v1111, %v1110
        %v1149 = vpack.c.b16 %v1113, %v1112
        %v1150 = vpack.c.b16 %v1115, %v1114
        %v1151 = vpack.c.b16 %v1117, %v1116
        %v1152 = vpack.c.b16 %v1119, %v1118
        %v1153 = vpack.c.b16 %v1121, %v1120
        %v1154 = vpack.c.b16 %v1123, %v1122
        %v1155 = vpack.c.b16 %v1125, %v1124
        %v1156 = vpack.c.b16 %v1127, %v1126
        %v1157 = vpack.c.b16 %v1129, %v1128
        %v1158 = vpack.c.b16 %v1131, %v1130
        %v1159 = vpack.c.b16 %v1133, %v1132
        %v1160 = vpack.c.b16 %v1135, %v1134
        %v1161 = vpack.c.b16 %v1137, %v1136
        %1186 = vmatprep.subr.bf16.mxu0 0
        %1187 = vmatpush1.bf16.msra.mxu0 %v1138
        %1188 = vmatprep.subr.bf16.mxu0 0
        %1189 = vmatpush1.bf16.msra.mxu0 %v1139
        %1190 = vmatprep.subr.bf16.mxu0 0
        %1191 = vmatpush1.bf16.msra.mxu0 %v1140
        %1192 = vmatprep.subr.bf16.mxu0 0
        %1193 = vmatpush1.bf16.msra.mxu0 %v1141
        %1194 = vmatprep.subr.bf16.mxu0 0
        %1195 = vmatpush1.bf16.msra.mxu0 %v1142
        %1196 = vmatprep.subr.bf16.mxu0 0
        %1197 = vmatpush1.bf16.msra.mxu0 %v1143
        %1198 = vmatprep.subr.bf16.mxu0 0
        %1199 = vmatpush1.bf16.msra.mxu0 %v1144
        %1200 = vmatprep.subr.bf16.mxu0 0
        %1201 = vmatpush1.bf16.msra.mxu0 %v1145
        %1202 = vmatprep.subr.bf16.mxu0 0
        %1203 = vmatpush1.bf16.msra.mxu0 %v1146
        %1204 = vmatprep.subr.bf16.mxu0 0
        %1205 = vmatpush1.bf16.msra.mxu0 %v1147
        %1206 = vmatprep.subr.bf16.mxu0 0
        %1207 = vmatpush1.bf16.msra.mxu0 %v1148
        %1208 = vmatprep.subr.bf16.mxu0 0
        %1209 = vmatpush1.bf16.msra.mxu0 %v1149
        %1210 = vmatprep.subr.bf16.mxu0 0
        %1211 = vmatpush1.bf16.msra.mxu0 %v1150
        %1212 = vmatprep.subr.bf16.mxu0 0
        %1213 = vmatpush1.bf16.msra.mxu0 %v1151
        %1214 = vmatprep.subr.bf16.mxu0 0
        %1215 = vmatpush1.bf16.msra.mxu0 %v1152
        %1216 = vmatprep.subr.bf16.mxu0 0
        %1217 = vmatpush1.bf16.msra.mxu0 %v1153
        %1218 = vmatprep.mubr.bf16.mxu0 %v1026
        %1219 = vmatmul.mubr.bf16.gmra.mrb[0].mxu0 %v1014
        %v1220 = vpop.f32.mrb[0].mxu0
        %v1221 = vadd.f32 0.0, %v1220
        %v1222 = vpop.f32.mrb[0].mxu0
        %v1223 = vpop.f32.mrb[0].mxu0
        %v1224 = vadd.f32 0.0, %v1223
        %v1225 = vpop.f32.mrb[0].mxu0
        %1226 = vdwg.mxu0
        %1227 = vmatprep.subr.bf16.mxu0 0
        %1228 = vmatpush1.bf16.msra.mxu0 %v1154
        %1229 = vmatprep.subr.bf16.mxu0 0
        %1230 = vmatpush1.bf16.msra.mxu0 %v1155
        %1231 = vmatprep.subr.bf16.mxu0 0
        %1232 = vmatpush1.bf16.msra.mxu0 %v1156
        %1233 = vmatprep.subr.bf16.mxu0 0
        %1234 = vmatpush1.bf16.msra.mxu0 %v1157
        %1235 = vmatprep.subr.bf16.mxu0 0
        %1236 = vmatpush1.bf16.msra.mxu0 %v1158
        %1237 = vmatprep.subr.bf16.mxu0 0
        %1238 = vmatpush1.bf16.msra.mxu0 %v1159
        %1239 = vmatprep.subr.bf16.mxu0 0
        %1240 = vmatpush1.bf16.msra.mxu0 %v1160
        %1241 = vmatprep.subr.bf16.mxu0 0
        %1242 = vmatpush1.bf16.msra.mxu0 %v1161
        %1243 = vmatprep.subr.bf16.mxu0 0
        %1244 = vmatpush1.bf16.msra.mxu0 0
        %1245 = vmatprep.subr.bf16.mxu0 0
        %1246 = vmatpush1.bf16.msra.mxu0 0
        %1247 = vmatprep.subr.bf16.mxu0 0
        %1248 = vmatpush1.bf16.msra.mxu0 0
        %1249 = vmatprep.subr.bf16.mxu0 0
        %1250 = vmatpush1.bf16.msra.mxu0 0
        %1251 = vmatprep.subr.bf16.mxu0 0
        %1252 = vmatpush1.bf16.msra.mxu0 0
        %1253 = vmatprep.subr.bf16.mxu0 0
        %1254 = vmatpush1.bf16.msra.mxu0 0
        %1255 = vmatprep.subr.bf16.mxu0 0
        %1256 = vmatpush1.bf16.msra.mxu0 0
        %1257 = vmatprep.subr.bf16.mxu0 0
        %1258 = vmatpush1.bf16.msra.mxu0 0
        %1259 = vmatprep.mubr.bf16.mxu0 0
        %1260 = vmatmul.mubr.bf16.gmra.mrb[0].mxu0 %v1038
        %v1261 = vpop.f32.mrb[0].mxu0
        %v1262 = vadd.f32 %v1221, %v1261
        %v1263 = vpop.f32.mrb[0].mxu0
        %v1264 = vpop.f32.mrb[0].mxu0
        %v1265 = vadd.f32 %v1224, %v1264
        %v1266 = vpop.f32.mrb[0].mxu0
        %1267 = vdwg.mxu0
        %v1319 = vunpack.c.l.b16 %v883
        %v1320 = vunpack.c.l.b16 %v884
        %v1321 = vunpack.c.l.b16 %v885
        %v1322 = vunpack.c.l.b16 %v886
        %v1323 = vunpack.c.l.b16 %v887
        %v1324 = vunpack.c.l.b16 %v888
        %v1325 = vunpack.c.l.b16 %v889
        %v1326 = vunpack.c.l.b16 %v890
        %v1327 = vunpack.c.l.b16 %v891
        %v1328 = vunpack.c.l.b16 %v892
        %v1329 = vunpack.c.l.b16 %v893
        %v1330 = vunpack.c.l.b16 %v894
        %v1331 = vunpack.c.l.b16 %v895
        %v1332 = vunpack.c.l.b16 %v896
        %v1333 = vunpack.c.l.b16 %v897
        %v1334 = vunpack.c.l.b16 %v898
        %v1335 = vunpack.c.l.b16 %v899
        %v1336 = vunpack.c.l.b16 %v900
        %v1337 = vunpack.c.l.b16 %v901
        %v1338 = vunpack.c.l.b16 %v902
        %v1339 = vunpack.c.l.b16 %v903
        %v1340 = vunpack.c.l.b16 %v904
        %v1341 = vunpack.c.l.b16 %v905
        %v1342 = vunpack.c.l.b16 %v906
        %v1343 = vunpack.c.l.b16 %v907
        %v1344 = vunpack.c.l.b16 %v908
        %v1345 = vunpack.c.l.b16 %v909
        %v1346 = vunpack.c.l.b16 %v910
        %v1347 = vunpack.c.l.b16 %v911
        %v1348 = vunpack.c.l.b16 %v912
        %v1349 = vunpack.c.l.b16 %v913
        %v1350 = vunpack.c.l.b16 %v914
        %v1351 = vunpack.c.l.b16 %v915
        %v1352 = vunpack.c.l.b16 %v916
        %v1353 = vunpack.c.l.b16 %v917
        %v1354 = vunpack.c.l.b16 %v918
        %v1355 = vunpack.c.l.b16 %v919
        %v1356 = vunpack.c.l.b16 %v920
        %v1357 = vunpack.c.l.b16 %v921
        %v1358 = vunpack.c.l.b16 %v922
        %v1359 = vunpack.c.l.b16 %v923
        %v1360 = vunpack.c.l.b16 %v924
        %v1361 = vunpack.c.l.b16 %v925
        %v1362 = vunpack.c.l.b16 %v926
        %v1363 = vunpack.c.l.b16 %v927
        %v1364 = vunpack.c.l.b16 %v928
        %v1365 = vunpack.c.l.b16 %v929
        %v1366 = vunpack.c.l.b16 %v930
        %v1367 = vpack.c.b16 %v1320, %v1319
        %v1368 = vpack.c.b16 %v1322, %v1321
        %v1369 = vpack.c.b16 %v1324, %v1323
        %v1370 = vpack.c.b16 %v1326, %v1325
        %v1371 = vpack.c.b16 %v1328, %v1327
        %v1372 = vpack.c.b16 %v1330, %v1329
        %v1373 = vpack.c.b16 %v1332, %v1331
        %v1374 = vpack.c.b16 %v1334, %v1333
        %v1375 = vpack.c.b16 %v1336, %v1335
        %v1376 = vpack.c.b16 %v1338, %v1337
        %v1377 = vpack.c.b16 %v1340, %v1339
        %v1378 = vpack.c.b16 %v1342, %v1341
        %v1379 = vpack.c.b16 %v1344, %v1343
        %v1380 = vpack.c.b16 %v1346, %v1345
        %v1381 = vpack.c.b16 %v1348, %v1347
        %v1382 = vpack.c.b16 %v1350, %v1349
        %v1383 = vpack.c.b16 %v1352, %v1351
        %v1384 = vpack.c.b16 %v1354, %v1353
        %v1385 = vpack.c.b16 %v1356, %v1355
        %v1386 = vpack.c.b16 %v1358, %v1357
        %v1387 = vpack.c.b16 %v1360, %v1359
        %v1388 = vpack.c.b16 %v1362, %v1361
        %v1389 = vpack.c.b16 %v1364, %v1363
        %v1390 = vpack.c.b16 %v1366, %v1365
        %1415 = vmatprep.subr.bf16.mxu0 0
        %1416 = vmatpush1.bf16.msra.mxu0 %v1367
        %1417 = vmatprep.subr.bf16.mxu0 0
        %1418 = vmatpush1.bf16.msra.mxu0 %v1368
        %1419 = vmatprep.subr.bf16.mxu0 0
        %1420 = vmatpush1.bf16.msra.mxu0 %v1369
        %1421 = vmatprep.subr.bf16.mxu0 0
        %1422 = vmatpush1.bf16.msra.mxu0 %v1370
        %1423 = vmatprep.subr.bf16.mxu0 0
        %1424 = vmatpush1.bf16.msra.mxu0 %v1371
        %1425 = vmatprep.subr.bf16.mxu0 0
        %1426 = vmatpush1.bf16.msra.mxu0 %v1372
        %1427 = vmatprep.subr.bf16.mxu0 0
        %1428 = vmatpush1.bf16.msra.mxu0 %v1373
        %1429 = vmatprep.subr.bf16.mxu0 0
        %1430 = vmatpush1.bf16.msra.mxu0 %v1374
        %1431 = vmatprep.subr.bf16.mxu0 0
        %1432 = vmatpush1.bf16.msra.mxu0 %v1375
        %1433 = vmatprep.subr.bf16.mxu0 0
        %1434 = vmatpush1.bf16.msra.mxu0 %v1376
        %1435 = vmatprep.subr.bf16.mxu0 0
        %1436 = vmatpush1.bf16.msra.mxu0 %v1377
        %1437 = vmatprep.subr.bf16.mxu0 0
        %1438 = vmatpush1.bf16.msra.mxu0 %v1378
        %1439 = vmatprep.subr.bf16.mxu0 0
        %1440 = vmatpush1.bf16.msra.mxu0 %v1379
        %1441 = vmatprep.subr.bf16.mxu0 0
        %1442 = vmatpush1.bf16.msra.mxu0 %v1380
        %1443 = vmatprep.subr.bf16.mxu0 0
        %1444 = vmatpush1.bf16.msra.mxu0 %v1381
        %1445 = vmatprep.subr.bf16.mxu0 0
        %1446 = vmatpush1.bf16.msra.mxu0 %v1382
        %1447 = vmatprep.mubr.bf16.mxu0 %v998
        %1448 = vmatmul.mubr.bf16.gmra.mrb[0].mxu0 %v997
        %v1449 = vpop.f32.mrb[0].mxu0
        %v1450 = vadd.f32 %v1262, %v1449
        %v1451 = vpop.f32.mrb[0].mxu0
        %v1452 = vpop.f32.mrb[0].mxu0
        %v1453 = vadd.f32 %v1265, %v1452
        %v1454 = vpop.f32.mrb[0].mxu0
        %1455 = vdwg.mxu0
        %1456 = vmatprep.subr.bf16.mxu0 0
        %1457 = vmatpush1.bf16.msra.mxu0 %v1383
        %1458 = vmatprep.subr.bf16.mxu0 0
        %1459 = vmatpush1.bf16.msra.mxu0 %v1384
        %1460 = vmatprep.subr.bf16.mxu0 0
        %1461 = vmatpush1.bf16.msra.mxu0 %v1385
        %1462 = vmatprep.subr.bf16.mxu0 0
        %1463 = vmatpush1.bf16.msra.mxu0 %v1386
        %1464 = vmatprep.subr.bf16.mxu0 0
        %1465 = vmatpush1.bf16.msra.mxu0 %v1387
        %1466 = vmatprep.subr.bf16.mxu0 0
        %1467 = vmatpush1.bf16.msra.mxu0 %v1388
        %1468 = vmatprep.subr.bf16.mxu0 0
        %1469 = vmatpush1.bf16.msra.mxu0 %v1389
        %1470 = vmatprep.subr.bf16.mxu0 0
        %1471 = vmatpush1.bf16.msra.mxu0 %v1390
        %1472 = vmatprep.subr.bf16.mxu0 0
        %1473 = vmatpush1.bf16.msra.mxu0 0
        %1474 = vmatprep.subr.bf16.mxu0 0
        %1475 = vmatpush1.bf16.msra.mxu0 0
        %1476 = vmatprep.subr.bf16.mxu0 0
        %1477 = vmatpush1.bf16.msra.mxu0 0
        %1478 = vmatprep.subr.bf16.mxu0 0
        %1479 = vmatpush1.bf16.msra.mxu0 0
        %1480 = vmatprep.subr.bf16.mxu0 0
        %1481 = vmatpush1.bf16.msra.mxu0 0
        %1482 = vmatprep.subr.bf16.mxu0 0
        %1483 = vmatpush1.bf16.msra.mxu0 0
        %1484 = vmatprep.subr.bf16.mxu0 0
        %1485 = vmatpush1.bf16.msra.mxu0 0
        %1486 = vmatprep.subr.bf16.mxu0 0
        %1487 = vmatpush1.bf16.msra.mxu0 0
        %1488 = vmatprep.mubr.bf16.mxu0 0
        %1489 = vmatmul.mubr.bf16.gmra.mrb[0].mxu0 %v999
        %v1490 = vpop.f32.mrb[0].mxu0
        %v1491 = vadd.f32 %v1450, %v1490
        %v1492 = vpop.f32.mrb[0].mxu0
        %v1493 = vpop.f32.mrb[0].mxu0
        %v1494 = vadd.f32 %v1453, %v1493
        %v1495 = vpop.f32.mrb[0].mxu0
        %1496 = vdwg.mxu0
        %v1497 = vld [vmem:[#allocation3] sm:$0xee]
        %v1498 = vld [vmem:[#allocation3 + $0x8] sm:$0xe]
        %s1499 = scalar_lea.vmem [#allocation4], 384
        %v1500 = vld [vmem:[%s1499] sm:$0xf]
        %v1501 = vld [vmem:[%s1499 + $0x4] sm:$0xf]
        %v1502 = vld [vmem:[%s1499 + $0x8] sm:$0xf]
        %v1503 = vld [vmem:[%s1499 + $0xc] sm:$0xf]
        %v1504 = vld [vmem:[%s1499 + $0x10] sm:$0xf]
        %v1505 = vld [vmem:[%s1499 + $0x14] sm:$0xf]
        %v1506 = vld [vmem:[%s1499 + $0x18] sm:$0xf]
        %v1507 = vld [vmem:[%s1499 + $0x1c] sm:$0xf]
        %v1508 = vld [vmem:[%s1499 + $0x20] sm:$0xf]
        %v1509 = vld [vmem:[%s1499 + $0x24] sm:$0xf]
        %v1510 = vld [vmem:[%s1499 + $0x28] sm:$0xf]
        %v1511 = vld [vmem:[%s1499 + $0x2c] sm:$0xf]
        %v1512 = vld [vmem:[%s1499 + $0x30] sm:$0xf]
        %v1513 = vld [vmem:[%s1499 + $0x34] sm:$0xf]
        %v1514 = vld [vmem:[%s1499 + $0x38] sm:$0xf]
        %v1515 = vld [vmem:[%s1499 + $0x3c] sm:$0xf]
        %v1516 = vld [vmem:[%s1499 + $0x40] sm:$0xf]
        %v1517 = vld [vmem:[%s1499 + $0x44] sm:$0xf]
        %v1518 = vld [vmem:[%s1499 + $0x48] sm:$0xf]
        %v1519 = vld [vmem:[%s1499 + $0x4c] sm:$0xf]
        %v1520 = vld [vmem:[%s1499 + $0x50] sm:$0xf]
        %v1521 = vld [vmem:[%s1499 + $0x54] sm:$0xf]
        %v1522 = vld [vmem:[%s1499 + $0x58] sm:$0xf]
        %v1523 = vld [vmem:[%s1499 + $0x5c] sm:$0xf]
        %v1524 = vld [vmem:[%s1499 + $0x60] sm:$0xf]
        %v1525 = vld [vmem:[%s1499 + $0x64] sm:$0xf]
        %v1526 = vld [vmem:[%s1499 + $0x68] sm:$0xf]
        %v1527 = vld [vmem:[%s1499 + $0x6c] sm:$0xf]
        %v1528 = vld [vmem:[%s1499 + $0x70] sm:$0xf]
        %v1529 = vld [vmem:[%s1499 + $0x74] sm:$0xf]
        %v1530 = vld [vmem:[%s1499 + $0x78] sm:$0xf]
        %v1531 = vld [vmem:[%s1499 + $0x7c] sm:$0xf]
        %v1532 = vld [vmem:[%s1499 + $0x80] sm:$0xf]
        %v1533 = vld [vmem:[%s1499 + $0x84] sm:$0xf]
        %v1534 = vld [vmem:[%s1499 + $0x88] sm:$0xf]
        %v1535 = vld [vmem:[%s1499 + $0x8c] sm:$0xf]
        %v1536 = vld [vmem:[%s1499 + $0x90] sm:$0xf]
        %v1537 = vld [vmem:[%s1499 + $0x94] sm:$0xf]
        %v1538 = vld [vmem:[%s1499 + $0x98] sm:$0xf]
        %v1539 = vld [vmem:[%s1499 + $0x9c] sm:$0xf]
        %v1540 = vld [vmem:[%s1499 + $0xa0] sm:$0xf]
        %v1541 = vld [vmem:[%s1499 + $0xa4] sm:$0xf]
        %v1542 = vld [vmem:[%s1499 + $0xa8] sm:$0xf]
        %v1543 = vld [vmem:[%s1499 + $0xac] sm:$0xf]
        %v1544 = vld [vmem:[%s1499 + $0xb0] sm:$0xf]
        %v1545 = vld [vmem:[%s1499 + $0xb4] sm:$0xf]
        %v1546 = vld [vmem:[%s1499 + $0xb8] sm:$0xf]
        %v1547 = vld [vmem:[%s1499 + $0xbc] sm:$0xf]
        %v1550 = vunpack.c.l.b16 %v1497
        %v1551 = vunpack.c.h.b16 %v1497
        %v1552 = vunpack.c.l.b16 %v1498
        %v1553 = vpack.c.b16 %v991, %v1550
        %v1554 = vpack.c.b16 %v992, %v1551
        %v1555 = vpack.c.b16 %v993, %v1552
        %v1556 = vrot.slane %v1553, 1
        %v1557 = vrot.slane %v1000, 1
        %v1558 = vsel %vm648, %v1556, %v1557
        %v1559 = vrot.slane %v1554, 1
        %v1560 = vrot.slane %v1001, 1
        %v1561 = vsel %vm648, %v1559, %v1560
        %v1562 = vrot.slane %v1555, 1
        %v1563 = vrot.slane %v1002, 1
        %v1564 = vsel %vm648, %v1562, %v1563
        %v1616 = vunpack.c.l.b16 %v1500
        %v1617 = vunpack.c.l.b16 %v1501
        %v1618 = vunpack.c.l.b16 %v1502
        %v1619 = vunpack.c.l.b16 %v1503
        %v1620 = vunpack.c.l.b16 %v1504
        %v1621 = vunpack.c.l.b16 %v1505
        %v1622 = vunpack.c.l.b16 %v1506
        %v1623 = vunpack.c.l.b16 %v1507
        %v1624 = vunpack.c.l.b16 %v1508
        %v1625 = vunpack.c.l.b16 %v1509
        %v1626 = vunpack.c.l.b16 %v1510
        %v1627 = vunpack.c.l.b16 %v1511
        %v1628 = vunpack.c.l.b16 %v1512
        %v1629 = vunpack.c.l.b16 %v1513
        %v1630 = vunpack.c.l.b16 %v1514
        %v1631 = vunpack.c.l.b16 %v1515
        %v1632 = vunpack.c.l.b16 %v1516
        %v1633 = vunpack.c.l.b16 %v1517
        %v1634 = vunpack.c.l.b16 %v1518
        %v1635 = vunpack.c.l.b16 %v1519
        %v1636 = vunpack.c.l.b16 %v1520
        %v1637 = vunpack.c.l.b16 %v1521
        %v1638 = vunpack.c.l.b16 %v1522
        %v1639 = vunpack.c.l.b16 %v1523
        %v1640 = vunpack.c.l.b16 %v1524
        %v1641 = vunpack.c.l.b16 %v1525
        %v1642 = vunpack.c.l.b16 %v1526
        %v1643 = vunpack.c.l.b16 %v1527
        %v1644 = vunpack.c.l.b16 %v1528
        %v1645 = vunpack.c.l.b16 %v1529
        %v1646 = vunpack.c.l.b16 %v1530
        %v1647 = vunpack.c.l.b16 %v1531
        %v1648 = vunpack.c.l.b16 %v1532
        %v1649 = vunpack.c.l.b16 %v1533
        %v1650 = vunpack.c.l.b16 %v1534
        %v1651 = vunpack.c.l.b16 %v1535
        %v1652 = vunpack.c.l.b16 %v1536
        %v1653 = vunpack.c.l.b16 %v1537
        %v1654 = vunpack.c.l.b16 %v1538
        %v1655 = vunpack.c.l.b16 %v1539
        %v1656 = vunpack.c.l.b16 %v1540
        %v1657 = vunpack.c.l.b16 %v1541
        %v1658 = vunpack.c.l.b16 %v1542
        %v1659 = vunpack.c.l.b16 %v1543
        %v1660 = vunpack.c.l.b16 %v1544
        %v1661 = vunpack.c.l.b16 %v1545
        %v1662 = vunpack.c.l.b16 %v1546
        %v1663 = vunpack.c.l.b16 %v1547
        %v1664 = vpack.c.b16 %v1617, %v1616
        %v1665 = vpack.c.b16 %v1619, %v1618
        %v1666 = vpack.c.b16 %v1621, %v1620
        %v1667 = vpack.c.b16 %v1623, %v1622
        %v1668 = vpack.c.b16 %v1625, %v1624
        %v1669 = vpack.c.b16 %v1627, %v1626
        %v1670 = vpack.c.b16 %v1629, %v1628
        %v1671 = vpack.c.b16 %v1631, %v1630
        %v1672 = vpack.c.b16 %v1633, %v1632
        %v1673 = vpack.c.b16 %v1635, %v1634
        %v1674 = vpack.c.b16 %v1637, %v1636
        %v1675 = vpack.c.b16 %v1639, %v1638
        %v1676 = vpack.c.b16 %v1641, %v1640
        %v1677 = vpack.c.b16 %v1643, %v1642
        %v1678 = vpack.c.b16 %v1645, %v1644
        %v1679 = vpack.c.b16 %v1647, %v1646
        %v1680 = vpack.c.b16 %v1649, %v1648
        %v1681 = vpack.c.b16 %v1651, %v1650
        %v1682 = vpack.c.b16 %v1653, %v1652
        %v1683 = vpack.c.b16 %v1655, %v1654
        %v1684 = vpack.c.b16 %v1657, %v1656
        %v1685 = vpack.c.b16 %v1659, %v1658
        %v1686 = vpack.c.b16 %v1661, %v1660
        %v1687 = vpack.c.b16 %v1663, %v1662
        %1712 = vmatprep.subr.bf16.mxu0 0
        %1713 = vmatpush1.bf16.msra.mxu0 %v1664
        %1714 = vmatprep.subr.bf16.mxu0 0
        %1715 = vmatpush1.bf16.msra.mxu0 %v1665
        %1716 = vmatprep.subr.bf16.mxu0 0
        %1717 = vmatpush1.bf16.msra.mxu0 %v1666
        %1718 = vmatprep.subr.bf16.mxu0 0
        %1719 = vmatpush1.bf16.msra.mxu0 %v1667
        %1720 = vmatprep.subr.bf16.mxu0 0
        %1721 = vmatpush1.bf16.msra.mxu0 %v1668
        %1722 = vmatprep.subr.bf16.mxu0 0
        %1723 = vmatpush1.bf16.msra.mxu0 %v1669
        %1724 = vmatprep.subr.bf16.mxu0 0
        %1725 = vmatpush1.bf16.msra.mxu0 %v1670
        %1726 = vmatprep.subr.bf16.mxu0 0
        %1727 = vmatpush1.bf16.msra.mxu0 %v1671
        %1728 = vmatprep.subr.bf16.mxu0 0
        %1729 = vmatpush1.bf16.msra.mxu0 %v1672
        %1730 = vmatprep.subr.bf16.mxu0 0
        %1731 = vmatpush1.bf16.msra.mxu0 %v1673
        %1732 = vmatprep.subr.bf16.mxu0 0
        %1733 = vmatpush1.bf16.msra.mxu0 %v1674
        %1734 = vmatprep.subr.bf16.mxu0 0
        %1735 = vmatpush1.bf16.msra.mxu0 %v1675
        %1736 = vmatprep.subr.bf16.mxu0 0
        %1737 = vmatpush1.bf16.msra.mxu0 %v1676
        %1738 = vmatprep.subr.bf16.mxu0 0
        %1739 = vmatpush1.bf16.msra.mxu0 %v1677
        %1740 = vmatprep.subr.bf16.mxu0 0
        %1741 = vmatpush1.bf16.msra.mxu0 %v1678
        %1742 = vmatprep.subr.bf16.mxu0 0
        %1743 = vmatpush1.bf16.msra.mxu0 %v1679
        %1744 = vmatprep.mubr.bf16.mxu0 %v1561
        %1745 = vmatmul.mubr.bf16.gmra.mrb[0].mxu0 %v1558
        %v1746 = vpop.f32.mrb[0].mxu0
        %v1747 = vadd.f32 0.0, %v1746
        %v1748 = vpop.f32.mrb[0].mxu0
        %v1749 = vpop.f32.mrb[0].mxu0
        %v1750 = vadd.f32 0.0, %v1749
        %v1751 = vpop.f32.mrb[0].mxu0
        %1752 = vdwg.mxu0
        %1753 = vmatprep.subr.bf16.mxu0 0
        %1754 = vmatpush1.bf16.msra.mxu0 %v1680
        %1755 = vmatprep.subr.bf16.mxu0 0
        %1756 = vmatpush1.bf16.msra.mxu0 %v1681
        %1757 = vmatprep.subr.bf16.mxu0 0
        %1758 = vmatpush1.bf16.msra.mxu0 %v1682
        %1759 = vmatprep.subr.bf16.mxu0 0
        %1760 = vmatpush1.bf16.msra.mxu0 %v1683
        %1761 = vmatprep.subr.bf16.mxu0 0
        %1762 = vmatpush1.bf16.msra.mxu0 %v1684
        %1763 = vmatprep.subr.bf16.mxu0 0
        %1764 = vmatpush1.bf16.msra.mxu0 %v1685
        %1765 = vmatprep.subr.bf16.mxu0 0
        %1766 = vmatpush1.bf16.msra.mxu0 %v1686
        %1767 = vmatprep.subr.bf16.mxu0 0
        %1768 = vmatpush1.bf16.msra.mxu0 %v1687
        %1769 = vmatprep.subr.bf16.mxu0 0
        %1770 = vmatpush1.bf16.msra.mxu0 0
        %1771 = vmatprep.subr.bf16.mxu0 0
        %1772 = vmatpush1.bf16.msra.mxu0 0
        %1773 = vmatprep.subr.bf16.mxu0 0
        %1774 = vmatpush1.bf16.msra.mxu0 0
        %1775 = vmatprep.subr.bf16.mxu0 0
        %1776 = vmatpush1.bf16.msra.mxu0 0
        %1777 = vmatprep.subr.bf16.mxu0 0
        %1778 = vmatpush1.bf16.msra.mxu0 0
        %1779 = vmatprep.subr.bf16.mxu0 0
        %1780 = vmatpush1.bf16.msra.mxu0 0
        %1781 = vmatprep.subr.bf16.mxu0 0
        %1782 = vmatpush1.bf16.msra.mxu0 0
        %1783 = vmatprep.subr.bf16.mxu0 0
        %1784 = vmatpush1.bf16.msra.mxu0 0
        %1785 = vmatprep.mubr.bf16.mxu0 0
        %1786 = vmatmul.mubr.bf16.gmra.mrb[0].mxu0 %v1564
        %v1787 = vpop.f32.mrb[0].mxu0
        %v1788 = vadd.f32 %v1747, %v1787
        %v1789 = vpop.f32.mrb[0].mxu0
        %v1790 = vpop.f32.mrb[0].mxu0
        %v1791 = vadd.f32 %v1750, %v1790
        %v1792 = vpop.f32.mrb[0].mxu0
        %1793 = vdwg.mxu0
        %v1794 = vadd.f32 %v1491, %v1788
        %v1795 = vadd.f32 %v1494, %v1791
        %v1796 = vld [vmem:[%s4] sm:$0x1]
        %v1798 = vlaneseq
        %v1799 = vshrl.u32 %v1798, 7
        %v1800 = vsub.s32 0, %v1799
        %v1801 = vrot.slane %v1796, %v1800
        %v1803 = vadd.f32 %v1794, %v1801
        %v1804 = vadd.f32 %v1795, %v1801
        %v1805 = vadd.f32 %v1803, 3.0
        %v1806 = vadd.f32 %v1804, 3.0
        %v1807 = vmax.f32 %v1805, 0.0
        %v1808 = vmax.f32 %v1806, 0.0
        %v1809 = vmin.f32 %v1807, 6.0
        %v1810 = vmin.f32 %v1808, 6.0
        %v1811 = vmul.f32 %v1809, 0.16666667
        %v1812 = vmul.f32 %v1810, 0.16666667
        %1813 = vst [vmem:[%s239] sm:$0xff] %v1811
        %1814 = vst [vmem:[%s239 + $0x8] sm:$0xff] %v1812
        %p1815 = scmp.lt.s32.totalorder %s17, 1
        %s1816 = scalar_select %p1815, %s17, 1
        %s1817 = smul.addr %s1816, 2
        %s1818 = smul.addr %s1817, 8
        %s1819 = scalar_lea.vmem %s5, %s1818
        // Predicated region
        $region45: #{_forward.1} parent=39 // pred_check
          %p1820 = pneg %p145
        $region46: #{_forward.1} parent=39 // pred_check_branch
          %1822 = sbr.rel (%p1820) target = $region48
        $region47: #{_forward.1} parent=39 // pred_region
          _
        $region48: #{_forward.1} parent=39 // pred_fallthru
          _
      $region40: #{_forward.1} parent=5 // pred_fallthru
        _
      %p1823 = scmp.le.s32.totalorder 2, %s12
      // Predicated region
      $region49: #{_forward.1} parent=5 // pred_check
        %p1824 = pneg %p1823
      $region50: #{_forward.1} parent=5 // pred_check_branch
        %1826 = sbr.rel (%p1824) target = $region52
      $region51: #{_forward.1} parent=5 // pred_region
        %s1827 = ssub.s32 %s12, 2
        // Predicated region
        $region53: #{_forward.1} parent=51 // pred_check
          %p1828 = pneg %p151
        $region54: #{_forward.1} parent=51 // pred_check_branch
          %1830 = sbr.rel (%p1828) target = $region56
        $region55: #{_forward.1} parent=51 // pred_region
          %p1831 = scmp.lt.s32.totalorder %s18, 1
          %s1832 = scalar_select %p1831, %s18, 1
          %s1833 = smul.addr %s1832, 2
          %s1834 = smul.addr %s1833, 8
          %s1835 = scalar_lea.vmem %s5, %s1834
        $region56: #{_forward.1} parent=51 // pred_fallthru
          _
      $region52: #{_forward.1} parent=5 // pred_fallthru
        _
    $region6: #{_forward.1} parent=1 // loop_footer
      %s16 = sadd.s32 1, %s12
    $region7: #{_forward.1} parent=1 // loop_footer_branch
      %11 = sbr.rel target = $region3
    $region8: #{_forward.1} parent=1 // loop_exit
      _
    %1836 = vsyncpa [#allocation5], 1
    %s1837 = scalar_lea.sflag [#allocation5], 1
    %1838 = vsyncpa %s1837, 1

// kernel: _forward.1
$region0: #{_forward.1}
  #allocation0 [shape = 'u32[]', space=smem, size = 0x4, offset = 0x4, fixed_abs, tag = 'smem constant byte address 0x4 - core index']
  #allocation1 [shape = 'u32[144,128]{1,0:T(1,128)}', space=vmem, size = 0x12000, scoped, tag = 'internal scratch']
  #allocation2 [shape = 'bf16[20,48]{1,0:T(8,128)(2,1)}', space=vmem, size = 0x1800, scoped, tag = 'scratch operand']
  #allocation3 [shape = 'bf16[18,384]{1,0:T(8,128)(2,1)}', space=vmem, size = 0x4800, scoped, tag = 'scratch operand']
  %s0 = inlined_call_operand.vmem [shape: f32[2,16,48], index: 0, kind: input, shape index: {}]
  %s1 = inlined_call_operand.vmem [shape: bf16[3,48,384], index: 1, kind: input, shape index: {}]
  %s2 = inlined_call_operand.vmem [shape: f32[1,384], index: 2, kind: input, shape index: {}]
  %s3 = inlined_call_operand.hbm [shape: bf16[3,384,128], index: 3, kind: input, shape index: {}]
  %s4 = inlined_call_operand.vmem [shape: f32[1,128], index: 4, kind: input, shape index: {}]
  %s5 = inlined_call_operand.vmem [shape: f32[2,16,128], index: 5, kind: output, shape index: {}]
  %s6 = sld [smem:[#allocation0]]
  $region57: #{_forward.1} parent=0
    _
  %s8 = ssub.s32 1, %s6
  %s9 = scalar_select 0, %s8, %s6
  $region1: #{_forward.1} parent=0
    #allocation4 [shape = 'u8[294912]{0}', space=vmem, size = 0x48000, scoped, tag = 'input window, operand 3, single buffered']
    #allocation5 [shape = 's32[2]{0}', space=sflag, size = 0x8, scoped, tag = 'scoped memory for _forward.1']
    %10 = vsyncpa [#allocation5], 0
    loop: start=0, step=1, limit=4
    $region2: #{_forward.1} parent=1 // loop_pre_header
      _
    $region3: #{_forward.1} parent=1 // loop_header
      %s12 = sphi 0, %s16
      %p13 = scmp.ge.s32.totalorder %s12, 4
      %s22 = sphi 0, %s24
      %s25 = sphi 0, %s22
      %s26 = sphi 0, %s25
      %s42 = sphi 0, %s26
      %s46 = sphi 0, %s46
      %s48 = sphi 0, %s46
      %s49 = sphi 0, %s48
      %s63 = sphi 0, %s49
      %s67 = sphi 0, %s67
      %s69 = sphi 0, %s67
      %s70 = sphi 0, %s69
      %s84 = sphi 0, %s70
      %s88 = sphi 0, %s88
      %s90 = sphi 0, %s88
      %s91 = sphi 0, %s90
      %s105 = sphi 0, %s91
      %s109 = sphi 0, %s109
      %s111 = sphi 0, %s109
      %s112 = sphi 0, %s111
      %s126 = sphi 0, %s112
      %s132 = sphi 0, %s134
      %s135 = sphi 0, %s132
      %s136 = sphi 0, %s135
      %s152 = sphi 0, %s136
    $region4: #{_forward.1} parent=1 // loop_header_branch
      %15 = sbr.rel (%p13) target = $region8
    $region5: #{_forward.1} parent=1 // loop_body
      %s17 = ssub.s32 %s12, 1
      %s18 = ssub.s32 %s12, 2
      %s19 = sadd.s32 %s12, 1
      %s20 = ssub.s32 %s12, %s19
      %p21 = scmp.eq.s32.totalorder %s20, 0
      %s23 = sadd.s32 %s22, 1
      %s24 = scalar_select %p21, %s22, %s23
      %p27 = pneg %p21
      %p28 = scmp.eq.s32.totalorder %s12, 1
      %p29 = por %p27, %p28
      %p30 = scmp.ne.s32.totalorder %s22, %s25
      %p31 = scmp.eq.s32.totalorder %s12, 0
      %p32 = por %p30, %p31
      %p33 = scmp.ne.s32.totalorder %s22, %s25
      %p34 = scmp.eq.s32.totalorder %s17, 1
      %p35 = por %p33, %p34
      %p36 = scmp.ne.s32.totalorder %s25, %s26
      %p37 = scmp.eq.s32.totalorder %s17, 0
      %p38 = por %p36, %p37
      %p39 = scmp.ne.s32.totalorder %s25, %s26
      %p40 = scmp.eq.s32.totalorder %s18, 1
      %p41 = por %p39, %p40
      %p43 = scmp.ne.s32.totalorder %s26, %s42
      %p44 = scmp.eq.s32.totalorder %s18, 0
      %p45 = por %p43, %p44
      %s47 = sadd.s32 %s46, 1
      %p50 = scmp.eq.s32.totalorder %s12, 1
      %p51 = scmp.ne.s32.totalorder %s46, %s48
      %p52 = scmp.eq.s32.totalorder %s12, 0
      %p53 = por %p51, %p52
      %p54 = scmp.ne.s32.totalorder %s46, %s48
      %p55 = scmp.eq.s32.totalorder %s17, 1
      %p56 = por %p54, %p55
      %p57 = scmp.ne.s32.totalorder %s48, %s49
      %p58 = scmp.eq.s32.totalorder %s17, 0
      %p59 = por %p57, %p58
      %p60 = scmp.ne.s32.totalorder %s48, %s49
      %p61 = scmp.eq.s32.totalorder %s18, 1
      %p62 = por %p60, %p61
      %p64 = scmp.ne.s32.totalorder %s49, %s63
      %p65 = scmp.eq.s32.totalorder %s18, 0
      %p66 = por %p64, %p65
      %s68 = sadd.s32 %s67, 1
      %p71 = scmp.eq.s32.totalorder %s12, 1
      %p72 = scmp.ne.s32.totalorder %s67, %s69
      %p73 = scmp.eq.s32.totalorder %s12, 0
      %p74 = por %p72, %p73
      %p75 = scmp.ne.s32.totalorder %s67, %s69
      %p76 = scmp.eq.s32.totalorder %s17, 1
      %p77 = por %p75, %p76
      %p78 = scmp.ne.s32.totalorder %s69, %s70
      %p79 = scmp.eq.s32.totalorder %s17, 0
      %p80 = por %p78, %p79
      %p81 = scmp.ne.s32.totalorder %s69, %s70
      %p82 = scmp.eq.s32.totalorder %s18, 1
      %p83 = por %p81, %p82
      %p85 = scmp.ne.s32.totalorder %s70, %s84
      %p86 = scmp.eq.s32.totalorder %s18, 0
      %p87 = por %p85, %p86
      %s89 = sadd.s32 %s88, 1
      %p92 = scmp.eq.s32.totalorder %s12, 1
      %p93 = scmp.ne.s32.totalorder %s88, %s90
      %p94 = scmp.eq.s32.totalorder %s12, 0
      %p95 = por %p93, %p94
      %p96 = scmp.ne.s32.totalorder %s88, %s90
      %p97 = scmp.eq.s32.totalorder %s17, 1
      %p98 = por %p96, %p97
      %p99 = scmp.ne.s32.totalorder %s90, %s91
      %p100 = scmp.eq.s32.totalorder %s17, 0
      %p101 = por %p99, %p100
      %p102 = scmp.ne.s32.totalorder %s90, %s91
      %p103 = scmp.eq.s32.totalorder %s18, 1
      %p104 = por %p102, %p103
      %p106 = scmp.ne.s32.totalorder %s91, %s105
      %p107 = scmp.eq.s32.totalorder %s18, 0
      %p108 = por %p106, %p107
      %s110 = sadd.s32 %s109, 1
      %p113 = scmp.eq.s32.totalorder %s12, 1
      %p114 = scmp.ne.s32.totalorder %s109, %s111
      %p115 = scmp.eq.s32.totalorder %s12, 0
      %p116 = por %p114, %p115
      %p117 = scmp.ne.s32.totalorder %s109, %s111
      %p118 = scmp.eq.s32.totalorder %s17, 1
      %p119 = por %p117, %p118
      %p120 = scmp.ne.s32.totalorder %s111, %s112
      %p121 = scmp.eq.s32.totalorder %s17, 0
      %p122 = por %p120, %p121
      %p123 = scmp.ne.s32.totalorder %s111, %s112
      %p124 = scmp.eq.s32.totalorder %s18, 1
      %p125 = por %p123, %p124
      %p127 = scmp.ne.s32.totalorder %s112, %s126
      %p128 = scmp.eq.s32.totalorder %s18, 0
      %p129 = por %p127, %p128
      %s130 = ssub.s32 %s12, %s19
      %p131 = scmp.eq.s32.totalorder %s130, 0
      %s133 = sadd.s32 %s132, 1
      %s134 = scalar_select %p131, %s132, %s133
      %p137 = pneg %p131
      %p138 = scmp.eq.s32.totalorder %s12, 1
      %p139 = por %p137, %p138
      %p140 = scmp.ne.s32.totalorder %s132, %s135
      %p141 = scmp.eq.s32.totalorder %s12, 0
      %p142 = por %p140, %p141
      %p143 = scmp.ne.s32.totalorder %s132, %s135
      %p144 = scmp.eq.s32.totalorder %s17, 1
      %p145 = por %p143, %p144
      %p146 = scmp.ne.s32.totalorder %s135, %s136
      %p147 = scmp.eq.s32.totalorder %s17, 0
      %p148 = por %p146, %p147
      %p149 = scmp.ne.s32.totalorder %s135, %s136
      %p150 = scmp.eq.s32.totalorder %s18, 1
      %p151 = por %p149, %p150
      %p153 = scmp.ne.s32.totalorder %s136, %s152
      %p154 = scmp.eq.s32.totalorder %s18, 0
      %p155 = por %p153, %p154
      %p156 = scmp.le.s32.totalorder 1, %s12
      %p157 = scmp.lt.s32.totalorder %s12, 3
      %p158 = pnand %p156, %p157
      %p159 = pneg %p158
      // Predicated region
      $region9: #{_forward.1} parent=5 // pred_check
        _
      $region10: #{_forward.1} parent=5 // pred_check_branch
        %161 = sbr.rel (%p158) target = $region12
      $region11: #{_forward.1} parent=5 // pred_region
        %s162 = ssub.s32 %s12, 1
        // Predicated region
        $region13: #{_forward.1} parent=11 // pred_check
          %p163 = pneg %p59
        $region14: #{_forward.1} parent=11 // pred_check_branch
          %165 = sbr.rel (%p163) target = $region16
        $region15: #{_forward.1} parent=11 // pred_region
          _
        $region16: #{_forward.1} parent=11 // pred_fallthru
          _
        // Predicated region
        $region17: #{_forward.1} parent=11 // pred_check
          %p166 = pneg %p80
        $region18: #{_forward.1} parent=11 // pred_check_branch
          %168 = sbr.rel (%p166) target = $region20
        $region19: #{_forward.1} parent=11 // pred_region
          _
        $region20: #{_forward.1} parent=11 // pred_fallthru
          _
        // Predicated region
        $region21: #{_forward.1} parent=11 // pred_check
          %p169 = pneg %p101
        $region22: #{_forward.1} parent=11 // pred_check_branch
          %171 = sbr.rel (%p169) target = $region24
        $region23: #{_forward.1} parent=11 // pred_region
          %s173 = ssub.s32 9216, 9216
          %174 = vsyncadd [#allocation5], %s173
          %s175 = sshll.u32 [#allocation4], 4
          %s176 = int_to_ptr.vmem [resolvable:$true] %s175
          %181 = dma.hbm_to_vmem [thread:$0]  %s3, 9216, %s176, [#allocation5], 64, 64, 4
        $region24: #{_forward.1} parent=11 // pred_fallthru
          _
        // Predicated region
        $region25: #{_forward.1} parent=11 // pred_check
          %p182 = pneg %p122
        $region26: #{_forward.1} parent=11 // pred_check_branch
          %184 = sbr.rel (%p182) target = $region28
        $region27: #{_forward.1} parent=11 // pred_region
          _
        $region28: #{_forward.1} parent=11 // pred_fallthru
          _
      $region12: #{_forward.1} parent=5 // pred_fallthru
        _
      %p185 = scmp.lt.s32.totalorder %s12, 2
      // Predicated region
      $region29: #{_forward.1} parent=5 // pred_check
        %p186 = pneg %p185
      $region30: #{_forward.1} parent=5 // pred_check_branch
        %188 = sbr.rel (%p186) target = $region32
      $region31: #{_forward.1} parent=5 // pred_region
        // Predicated region
        $region33: #{_forward.1} parent=31 // pred_check
          %p189 = pneg %p32
        $region34: #{_forward.1} parent=31 // pred_check_branch
          %191 = sbr.rel (%p189) target = $region36
        $region35: #{_forward.1} parent=31 // pred_region
          %p192 = scmp.lt.s32.totalorder %s12, 1
          %s193 = scalar_select %p192, %s12, 1
          %s194 = smul.addr %s193, 2
          %s195 = smul.addr %s194, 8
          %s196 = scalar_lea.vmem %s0, %s195
        $region36: #{_forward.1} parent=31 // pred_fallthru
          _
      $region32: #{_forward.1} parent=5 // pred_fallthru
        _
      %p197 = scmp.le.s32.totalorder 1, %s12
      %p198 = scmp.lt.s32.totalorder %s12, 3
      %p199 = pnand %p197, %p198
      %p200 = pneg %p199
      // Predicated region
      $region37: #{_forward.1} parent=5 // pred_check
        _
      $region38: #{_forward.1} parent=5 // pred_check_branch
        %202 = sbr.rel (%p199) target = $region40
      $region39: #{_forward.1} parent=5 // pred_region
        %s203 = ssub.s32 %s12, 1
        // Predicated region
        $region41: #{_forward.1} parent=39 // pred_check
          %p204 = pneg %p101
        $region42: #{_forward.1} parent=39 // pred_check_branch
          %206 = sbr.rel (%p204) target = $region44
        $region43: #{_forward.1} parent=39 // pred_region
          %207 = dma.done [#allocation5], 9216
        $region44: #{_forward.1} parent=39 // pred_fallthru
          _
        %p208 = scmp.lt.s32.totalorder %s17, 1
        %s209 = scalar_select %p208, %s17, 1
        %s210 = smul.addr %s209, 2
        %s211 = smul.addr %s210, 8
        %s212 = scalar_lea.vmem %s0, %s211
        %p213 = pneg %p38
        %p214 = pneg %p35
        %p215 = pneg %p59
        %p216 = pneg %p56
        %p217 = pneg %p80
        %p218 = pneg %p77
        %p219 = pneg %p101
        %p220 = pneg %p98
        %p221 = pneg %p122
        %p222 = pneg %p119
        %p223 = pneg %p148
        %p224 = pneg %p145
        %p225 = scmp.lt.s32.totalorder %s17, 1
        %s226 = scalar_select %p225, %s17, 1
        %s227 = smul.addr %s226, 2
        %s228 = smul.addr %s227, 8
        %s229 = scalar_lea.vmem %s5, %s228
        %p230 = scmp.lt.s32.totalorder %s17, 1
        %s231 = scalar_select %p230, %s17, 1
        %s232 = smul.addr %s231, 2
        %s233 = smul.addr %s232, 8
        %s234 = scalar_lea.vmem %s0, %s233
        %p235 = scmp.lt.s32.totalorder %s17, 1
        %s236 = scalar_select %p235, %s17, 1
        %s237 = smul.addr %s236, 2
        %s238 = smul.addr %s237, 8
        %s239 = scalar_lea.vmem %s5, %s238
        %vm241 = vcmask 385024
        %242 = vst.msk [vmem:[#allocation2] sm:$0x1] %vm241, 0
        %vm243 = vcmask 386049
        %244 = vst.msk [vmem:[#allocation2 + $0x8] sm:$0x2] %vm243, 0
        %v245 = vld [vmem:[%s234] sm:$0xff]
        %v246 = vld [vmem:[%s234 + $0x8] sm:$0xff]
        %v247 = vpack.c.bf16 %v246, %v245
        %v249 = vunpack.c.l.b16 %v247
        %v250 = vunpack.c.h.b16 %v247
        %v251 = vpack.c.b16 %v249, %v249
        %v252 = vpack.c.b16 %v250, %v250
        %vm253 = vcmask 1040384
        %vm254 = vcmask 1044484
        %vm255 = vmor %vm253, %vm254
        %v256 = vrot.slane %v251, 7
        %v257 = vrot.slane %v256, 4
        %v258 = vrot.slane %v252, 7
        %v259 = vsel %vm255, %v257, %v258
        %v260 = vrot.slane %v258, 4
        %vm264 = vcmask 388097
        %265 = vst.msk [vmem:[#allocation2] sm:$0xe] %vm264, %v256
        %vm266 = vcmask 388096
        %267 = vst.msk [vmem:[#allocation2 + $0x4] sm:$0xf] %vm266, %v259
        %268 = vst.msk [vmem:[#allocation2 + $0x8] sm:$0x1] %vm241, %v260
        %v269 = vld [vmem:[#allocation2] sm:$0xf]
        %v270 = vld [vmem:[#allocation2 + $0x4] sm:$0xf]
        %v271 = vld [vmem:[#allocation2 + $0x8] sm:$0x1]
        %v272 = vld [vmem:[%s1] sm:$0xff]
        %v273 = vld [vmem:[%s1 + $0x8] sm:$0xf]
        %v274 = vld [vmem:[%s1 + $0xc] sm:$0xff]
        %v275 = vld [vmem:[%s1 + $0x14] sm:$0xf]
        %v276 = vld [vmem:[%s1 + $0x18] sm:$0xff]
        %v277 = vld [vmem:[%s1 + $0x20] sm:$0xf]
        %v278 = vld [vmem:[%s1 + $0x24] sm:$0xff]
        %v279 = vld [vmem:[%s1 + $0x2c] sm:$0xf]
        %v280 = vld [vmem:[%s1 + $0x30] sm:$0xff]
        %v281 = vld [vmem:[%s1 + $0x38] sm:$0xf]
        %v282 = vld [vmem:[%s1 + $0x3c] sm:$0xff]
        %v283 = vld [vmem:[%s1 + $0x44] sm:$0xf]
        %v284 = vld [vmem:[#allocation2 + $0x8] sm:$0x3]
        %s285 = scalar_lea.vmem %s1, 72
        %v286 = vld [vmem:[%s285] sm:$0xff]
        %v287 = vld [vmem:[%s285 + $0x8] sm:$0xf]
        %v288 = vld [vmem:[%s285 + $0xc] sm:$0xff]
        %v289 = vld [vmem:[%s285 + $0x14] sm:$0xf]
        %v290 = vld [vmem:[%s285 + $0x18] sm:$0xff]
        %v291 = vld [vmem:[%s285 + $0x20] sm:$0xf]
        %v292 = vld [vmem:[%s285 + $0x24] sm:$0xff]
        %v293 = vld [vmem:[%s285 + $0x2c] sm:$0xf]
        %v294 = vld [vmem:[%s285 + $0x30] sm:$0xff]
        %v295 = vld [vmem:[%s285 + $0x38] sm:$0xf]
        %v296 = vld [vmem:[%s285 + $0x3c] sm:$0xff]
        %v297 = vld [vmem:[%s285 + $0x44] sm:$0xf]
        %v301 = vunpack.c.l.b16 %v269
        %v302 = vunpack.c.l.b16 %v270
        %v303 = vunpack.c.l.b16 %v284
        %v304 = vpack.c.b16 %v302, %v301
        %v305 = vpack.c.b16 %v303, %v303
        %vm306 = vsmask.f32 7424
        %v308 = vshrl.u32 %v304, 16
        %v310 = vshll.u32 %v304, 16
        %v312 = vrot.slane %v310, 1
        %v313 = vor.u32 %v308, %v312
        %v315 = vshll.u32 %v305, 16
        %v317 = vrot.slane %v315, 1
        %v318 = vsel %vm306, %v313, %v317
        %v319 = vshrl.u32 %v305, 16
        %v321 = vor.u32 %v319, %v317
        %v334 = vunpack.c.l.b16 %v286
        %v335 = vunpack.c.h.b16 %v286
        %v336 = vunpack.c.l.b16 %v287
        %v337 = vunpack.c.l.b16 %v288
        %v338 = vunpack.c.h.b16 %v288
        %v339 = vunpack.c.l.b16 %v289
        %v340 = vunpack.c.l.b16 %v290
        %v341 = vunpack.c.h.b16 %v290
        %v342 = vunpack.c.l.b16 %v291
        %v343 = vunpack.c.l.b16 %v292
        %v344 = vunpack.c.h.b16 %v292
        %v345 = vunpack.c.l.b16 %v293
        %v346 = vunpack.c.l.b16 %v294
        %v347 = vunpack.c.h.b16 %v294
        %v348 = vunpack.c.l.b16 %v295
        %v349 = vunpack.c.l.b16 %v296
        %v350 = vunpack.c.h.b16 %v296
        %v351 = vunpack.c.l.b16 %v297
        %v352 = vpack.c.b16 %v337, %v334
        %v353 = vpack.c.b16 %v338, %v335
        %v354 = vpack.c.b16 %v339, %v336
        %v355 = vpack.c.b16 %v343, %v340
        %v356 = vpack.c.b16 %v344, %v341
        %v357 = vpack.c.b16 %v345, %v342
        %v358 = vpack.c.b16 %v349, %v346
        %v359 = vpack.c.b16 %v350, %v347
        %v360 = vpack.c.b16 %v351, %v348
        %vm370 = vcmask 392192
        %v372 = vsel %vm370, %v318, 0
        %v375 = vsel %vm370, %v321, 0
        %377 = vmatprep.subr.bf16.mxu0 %v353
        %378 = vmatpush1.bf16.msra.mxu0 %v352
        %379 = vmatprep.subr.bf16.mxu0 %v356
        %380 = vmatpush1.bf16.msra.mxu0 %v355
        %381 = vmatprep.subr.bf16.mxu0 %v359
        %382 = vmatpush1.bf16.msra.mxu0 %v358
        %383 = vmatprep.subr.bf16.mxu0 0
        %384 = vmatpush1.bf16.msra.mxu0 0
        %385 = vmatprep.subr.bf16.mxu0 0
        %386 = vmatpush1.bf16.msra.mxu0 0
        %387 = vmatprep.subr.bf16.mxu0 0
        %388 = vmatpush1.bf16.msra.mxu0 0
        %389 = vmatprep.subr.bf16.mxu0 0
        %390 = vmatpush1.bf16.msra.mxu0 0
        %391 = vmatprep.subr.bf16.mxu0 0
        %392 = vmatpush1.bf16.msra.mxu0 0
        %393 = vmatprep.subr.bf16.mxu0 0
        %394 = vmatpush1.bf16.msra.mxu0 0
        %395 = vmatprep.subr.bf16.mxu0 0
        %396 = vmatpush1.bf16.msra.mxu0 0
        %397 = vmatprep.subr.bf16.mxu0 0
        %398 = vmatpush1.bf16.msra.mxu0 0
        %399 = vmatprep.subr.bf16.mxu0 0
        %400 = vmatpush1.bf16.msra.mxu0 0
        %401 = vmatprep.subr.bf16.mxu0 0
        %402 = vmatpush1.bf16.msra.mxu0 0
        %403 = vmatprep.subr.bf16.mxu0 0
        %404 = vmatpush1.bf16.msra.mxu0 0
        %405 = vmatprep.subr.bf16.mxu0 0
        %406 = vmatpush1.bf16.msra.mxu0 0
        %407 = vmatprep.subr.bf16.mxu0 0
        %408 = vmatpush1.bf16.msra.mxu0 0
        %409 = vmatprep.mubr.bf16.mxu0 0
        %410 = vmatmul.mubr.bf16.gmra.mrb[0].mxu0 %v372
        %v411 = vpop.f32.mrb[0].mxu0
        %v412 = vadd.f32 0.0, %v411
        %v413 = vpop.f32.mrb[0].mxu0
        %v414 = vadd.f32 0.0, %v413
        %v415 = vpop.f32.mrb[0].mxu0
        %v416 = vadd.f32 0.0, %v415
        %v417 = vpop.f32.mrb[0].mxu0
        %v418 = vadd.f32 0.0, %v417
        %419 = vmatprep.mubr.bf16.mxu0 0
        %420 = vmatmul.mubr.bf16.gmra.mrb[0].mxu0 %v375
        %v421 = vpop.f32.mrb[0].mxu0
        %v422 = vadd.f32 0.0, %v421
        %v423 = vpop.f32.mrb[0].mxu0
        %v424 = vadd.f32 0.0, %v423
        %v425 = vpop.f32.mrb[0].mxu0
        %v426 = vpop.f32.mrb[0].mxu0
        %427 = vdwg.mxu0
        %428 = vmatprep.subr.bf16.mxu0 0
        %429 = vmatpush1.bf16.msra.mxu0 %v354
        %430 = vmatprep.subr.bf16.mxu0 0
        %431 = vmatpush1.bf16.msra.mxu0 %v357
        %432 = vmatprep.subr.bf16.mxu0 0
        %433 = vmatpush1.bf16.msra.mxu0 %v360
        %434 = vmatprep.subr.bf16.mxu0 0
        %435 = vmatpush1.bf16.msra.mxu0 0
        %436 = vmatprep.subr.bf16.mxu0 0
        %437 = vmatpush1.bf16.msra.mxu0 0
        %438 = vmatprep.subr.bf16.mxu0 0
        %439 = vmatpush1.bf16.msra.mxu0 0
        %440 = vmatprep.subr.bf16.mxu0 0
        %441 = vmatpush1.bf16.msra.mxu0 0
        %442 = vmatprep.subr.bf16.mxu0 0
        %443 = vmatpush1.bf16.msra.mxu0 0
        %444 = vmatprep.subr.bf16.mxu0 0
        %445 = vmatpush1.bf16.msra.mxu0 0
        %446 = vmatprep.subr.bf16.mxu0 0
        %447 = vmatpush1.bf16.msra.mxu0 0
        %448 = vmatprep.subr.bf16.mxu0 0
        %449 = vmatpush1.bf16.msra.mxu0 0
        %450 = vmatprep.subr.bf16.mxu0 0
        %451 = vmatpush1.bf16.msra.mxu0 0
        %452 = vmatprep.subr.bf16.mxu0 0
        %453 = vmatpush1.bf16.msra.mxu0 0
        %454 = vmatprep.subr.bf16.mxu0 0
        %455 = vmatpush1.bf16.msra.mxu0 0
        %456 = vmatprep.subr.bf16.mxu0 0
        %457 = vmatpush1.bf16.msra.mxu0 0
        %458 = vmatprep.subr.bf16.mxu0 0
        %459 = vmatpush1.bf16.msra.mxu0 0
        %460 = vmatprep.mubr.bf16.mxu0 0
        %461 = vmatmul.mubr.bf16.gmra.mrb[0].mxu0 %v372
        %v462 = vpop.f32.mrb[0].mxu0
        %v463 = vadd.f32 0.0, %v462
        %v464 = vpop.f32.mrb[0].mxu0
        %v465 = vpop.f32.mrb[0].mxu0
        %v466 = vadd.f32 0.0, %v465
        %v467 = vpop.f32.mrb[0].mxu0
        %468 = vmatprep.mubr.bf16.mxu0 0
        %469 = vmatmul.mubr.bf16.gmra.mrb[0].mxu0 %v375
        %v470 = vpop.f32.mrb[0].mxu0
        %v471 = vadd.f32 0.0, %v470
        %v472 = vpop.f32.mrb[0].mxu0
        %v473 = vpop.f32.mrb[0].mxu0
        %v474 = vpop.f32.mrb[0].mxu0
        %475 = vdwg.mxu0
        %v477 = vunpack.c.l.b16 %v271
        %v478 = vpack.c.b16 %v477, %v477
        %v491 = vunpack.c.l.b16 %v272
        %v492 = vunpack.c.h.b16 %v272
        %v493 = vunpack.c.l.b16 %v273
        %v494 = vunpack.c.l.b16 %v274
        %v495 = vunpack.c.h.b16 %v274
        %v496 = vunpack.c.l.b16 %v275
        %v497 = vunpack.c.l.b16 %v276
        %v498 = vunpack.c.h.b16 %v276
        %v499 = vunpack.c.l.b16 %v277
        %v500 = vunpack.c.l.b16 %v278
        %v501 = vunpack.c.h.b16 %v278
        %v502 = vunpack.c.l.b16 %v279
        %v503 = vunpack.c.l.b16 %v280
        %v504 = vunpack.c.h.b16 %v280
        %v505 = vunpack.c.l.b16 %v281
        %v506 = vunpack.c.l.b16 %v282
        %v507 = vunpack.c.h.b16 %v282
        %v508 = vunpack.c.l.b16 %v283
        %v509 = vpack.c.b16 %v494, %v491
        %v510 = vpack.c.b16 %v495, %v492
        %v511 = vpack.c.b16 %v496, %v493
        %v512 = vpack.c.b16 %v500, %v497
        %v513 = vpack.c.b16 %v501, %v498
        %v514 = vpack.c.b16 %v502, %v499
        %v515 = vpack.c.b16 %v506, %v503
        %v516 = vpack.c.b16 %v507, %v504
        %v517 = vpack.c.b16 %v508, %v505
        %v527 = vsel %vm370, %v304, 0
        %v530 = vsel %vm370, %v478, 0
        %532 = vmatprep.subr.bf16.mxu0 %v510
        %533 = vmatpush1.bf16.msra.mxu0 %v509
        %534 = vmatprep.subr.bf16.mxu0 %v513
        %535 = vmatpush1.bf16.msra.mxu0 %v512
        %536 = vmatprep.subr.bf16.mxu0 %v516
        %537 = vmatpush1.bf16.msra.mxu0 %v515
        %538 = vmatprep.subr.bf16.mxu0 0
        %539 = vmatpush1.bf16.msra.mxu0 0
        %540 = vmatprep.subr.bf16.mxu0 0
        %541 = vmatpush1.bf16.msra.mxu0 0
        %542 = vmatprep.subr.bf16.mxu0 0
        %543 = vmatpush1.bf16.msra.mxu0 0
        %544 = vmatprep.subr.bf16.mxu0 0
        %545 = vmatpush1.bf16.msra.mxu0 0
        %546 = vmatprep.subr.bf16.mxu0 0
        %547 = vmatpush1.bf16.msra.mxu0 0
        %548 = vmatprep.subr.bf16.mxu0 0
        %549 = vmatpush1.bf16.msra.mxu0 0
        %550 = vmatprep.subr.bf16.mxu0 0
        %551 = vmatpush1.bf16.msra.mxu0 0
        %552 = vmatprep.subr.bf16.mxu0 0
        %553 = vmatpush1.bf16.msra.mxu0 0
        %554 = vmatprep.subr.bf16.mxu0 0
        %555 = vmatpush1.bf16.msra.mxu0 0
        %556 = vmatprep.subr.bf16.mxu0 0
        %557 = vmatpush1.bf16.msra.mxu0 0
        %558 = vmatprep.subr.bf16.mxu0 0
        %559 = vmatpush1.bf16.msra.mxu0 0
        %560 = vmatprep.subr.bf16.mxu0 0
        %561 = vmatpush1.bf16.msra.mxu0 0
        %562 = vmatprep.subr.bf16.mxu0 0
        %563 = vmatpush1.bf16.msra.mxu0 0
        %564 = vmatprep.mubr.bf16.mxu0 0
        %565 = vmatmul.mubr.bf16.gmra.mrb[0].mxu0 %v527
        %v566 = vpop.f32.mrb[0].mxu0
        %v567 = vadd.f32 %v412, %v566
        %v568 = vpop.f32.mrb[0].mxu0
        %v569 = vadd.f32 %v414, %v568
        %v570 = vpop.f32.mrb[0].mxu0
        %v571 = vadd.f32 %v416, %v570
        %v572 = vpop.f32.mrb[0].mxu0
        %v573 = vadd.f32 %v418, %v572
        %574 = vmatprep.mubr.bf16.mxu0 0
        %575 = vmatmul.mubr.bf16.gmra.mrb[0].mxu0 %v530
        %v576 = vpop.f32.mrb[0].mxu0
        %v577 = vadd.f32 %v422, %v576
        %v578 = vpop.f32.mrb[0].mxu0
        %v579 = vadd.f32 %v424, %v578
        %v580 = vpop.f32.mrb[0].mxu0
        %v581 = vpop.f32.mrb[0].mxu0
        %582 = vdwg.mxu0
        %583 = vmatprep.subr.bf16.mxu0 0
        %584 = vmatpush1.bf16.msra.mxu0 %v511
        %585 = vmatprep.subr.bf16.mxu0 0
        %586 = vmatpush1.bf16.msra.mxu0 %v514
        %587 = vmatprep.subr.bf16.mxu0 0
        %588 = vmatpush1.bf16.msra.mxu0 %v517
        %589 = vmatprep.subr.bf16.mxu0 0
        %590 = vmatpush1.bf16.msra.mxu0 0
        %591 = vmatprep.subr.bf16.mxu0 0
        %592 = vmatpush1.bf16.msra.mxu0 0
        %593 = vmatprep.subr.bf16.mxu0 0
        %594 = vmatpush1.bf16.msra.mxu0 0
        %595 = vmatprep.subr.bf16.mxu0 0
        %596 = vmatpush1.bf16.msra.mxu0 0
        %597 = vmatprep.subr.bf16.mxu0 0
        %598 = vmatpush1.bf16.msra.mxu0 0
        %599 = vmatprep.subr.bf16.mxu0 0
        %600 = vmatpush1.bf16.msra.mxu0 0
        %601 = vmatprep.subr.bf16.mxu0 0
        %602 = vmatpush1.bf16.msra.mxu0 0
        %603 = vmatprep.subr.bf16.mxu0 0
        %604 = vmatpush1.bf16.msra.mxu0 0
        %605 = vmatprep.subr.bf16.mxu0 0
        %606 = vmatpush1.bf16.msra.mxu0 0
        %607 = vmatprep.subr.bf16.mxu0 0
        %608 = vmatpush1.bf16.msra.mxu0 0
        %609 = vmatprep.subr.bf16.mxu0 0
        %610 = vmatpush1.bf16.msra.mxu0 0
        %611 = vmatprep.subr.bf16.mxu0 0
        %612 = vmatpush1.bf16.msra.mxu0 0
        %613 = vmatprep.subr.bf16.mxu0 0
        %614 = vmatpush1.bf16.msra.mxu0 0
        %615 = vmatprep.mubr.bf16.mxu0 0
        %616 = vmatmul.mubr.bf16.gmra.mrb[0].mxu0 %v527
        %v617 = vpop.f32.mrb[0].mxu0
        %v618 = vadd.f32 %v463, %v617
        %v619 = vpop.f32.mrb[0].mxu0
        %v620 = vpop.f32.mrb[0].mxu0
        %v621 = vadd.f32 %v466, %v620
        %v622 = vpop.f32.mrb[0].mxu0
        %623 = vmatprep.mubr.bf16.mxu0 0
        %624 = vmatmul.mubr.bf16.gmra.mrb[0].mxu0 %v530
        %v625 = vpop.f32.mrb[0].mxu0
        %v626 = vadd.f32 %v471, %v625
        %v627 = vpop.f32.mrb[0].mxu0
        %v628 = vpop.f32.mrb[0].mxu0
        %v629 = vpop.f32.mrb[0].mxu0
        %630 = vdwg.mxu0
        %v631 = vld [vmem:[#allocation2] sm:$0xe]
        %s632 = scalar_lea.vmem %s1, 144
        %v633 = vld [vmem:[%s632] sm:$0xff]
        %v634 = vld [vmem:[%s632 + $0x8] sm:$0xf]
        %v635 = vld [vmem:[%s632 + $0xc] sm:$0xff]
        %v636 = vld [vmem:[%s632 + $0x14] sm:$0xf]
        %v637 = vld [vmem:[%s632 + $0x18] sm:$0xff]
        %v638 = vld [vmem:[%s632 + $0x20] sm:$0xf]
        %v639 = vld [vmem:[%s632 + $0x24] sm:$0xff]
        %v640 = vld [vmem:[%s632 + $0x2c] sm:$0xf]
        %v641 = vld [vmem:[%s632 + $0x30] sm:$0xff]
        %v642 = vld [vmem:[%s632 + $0x38] sm:$0xf]
        %v643 = vld [vmem:[%s632 + $0x3c] sm:$0xff]
        %v644 = vld [vmem:[%s632 + $0x44] sm:$0xf]
        %v646 = vunpack.c.l.b16 %v631
        %v647 = vpack.c.b16 %v302, %v646
        %vm648 = vcmask 1046528
        %v649 = vrot.slane %v647, 1
        %v650 = vrot.slane %v305, 1
        %v651 = vsel %vm648, %v649, %v650
        %v664 = vunpack.c.l.b16 %v633
        %v665 = vunpack.c.h.b16 %v633
        %v666 = vunpack.c.l.b16 %v634
        %v667 = vunpack.c.l.b16 %v635
        %v668 = vunpack.c.h.b16 %v635
        %v669 = vunpack.c.l.b16 %v636
        %v670 = vunpack.c.l.b16 %v637
        %v671 = vunpack.c.h.b16 %v637
        %v672 = vunpack.c.l.b16 %v638
        %v673 = vunpack.c.l.b16 %v639
        %v674 = vunpack.c.h.b16 %v639
        %v675 = vunpack.c.l.b16 %v640
        %v676 = vunpack.c.l.b16 %v641
        %v677 = vunpack.c.h.b16 %v641
        %v678 = vunpack.c.l.b16 %v642
        %v679 = vunpack.c.l.b16 %v643
        %v680 = vunpack.c.h.b16 %v643
        %v681 = vunpack.c.l.b16 %v644
        %v682 = vpack.c.b16 %v667, %v664
        %v683 = vpack.c.b16 %v668, %v665
        %v684 = vpack.c.b16 %v669, %v666
        %v685 = vpack.c.b16 %v673, %v670
        %v686 = vpack.c.b16 %v674, %v671
        %v687 = vpack.c.b16 %v675, %v672
        %v688 = vpack.c.b16 %v679, %v676
        %v689 = vpack.c.b16 %v680, %v677
        %v690 = vpack.c.b16 %v681, %v678
        %v701 = vsel %vm370, %v651, 0
        %v704 = vsel %vm370, %v650, 0
        %706 = vmatprep.subr.bf16.mxu0 %v683
        %707 = vmatpush1.bf16.msra.mxu0 %v682
        %708 = vmatprep.subr.bf16.mxu0 %v686
        %709 = vmatpush1.bf16.msra.mxu0 %v685
        %710 = vmatprep.subr.bf16.mxu0 %v689
        %711 = vmatpush1.bf16.msra.mxu0 %v688
        %712 = vmatprep.subr.bf16.mxu0 0
        %713 = vmatpush1.bf16.msra.mxu0 0
        %714 = vmatprep.subr.bf16.mxu0 0
        %715 = vmatpush1.bf16.msra.mxu0 0
        %716 = vmatprep.subr.bf16.mxu0 0
        %717 = vmatpush1.bf16.msra.mxu0 0
        %718 = vmatprep.subr.bf16.mxu0 0
        %719 = vmatpush1.bf16.msra.mxu0 0
        %720 = vmatprep.subr.bf16.mxu0 0
        %721 = vmatpush1.bf16.msra.mxu0 0
        %722 = vmatprep.subr.bf16.mxu0 0
        %723 = vmatpush1.bf16.msra.mxu0 0
        %724 = vmatprep.subr.bf16.mxu0 0
        %725 = vmatpush1.bf16.msra.mxu0 0
        %726 = vmatprep.subr.bf16.mxu0 0
        %727 = vmatpush1.bf16.msra.mxu0 0
        %728 = vmatprep.subr.bf16.mxu0 0
        %729 = vmatpush1.bf16.msra.mxu0 0
        %730 = vmatprep.subr.bf16.mxu0 0
        %731 = vmatpush1.bf16.msra.mxu0 0
        %732 = vmatprep.subr.bf16.mxu0 0
        %733 = vmatpush1.bf16.msra.mxu0 0
        %734 = vmatprep.subr.bf16.mxu0 0
        %735 = vmatpush1.bf16.msra.mxu0 0
        %736 = vmatprep.subr.bf16.mxu0 0
        %737 = vmatpush1.bf16.msra.mxu0 0
        %738 = vmatprep.mubr.bf16.mxu0 0
        %739 = vmatmul.mubr.bf16.gmra.mrb[0].mxu0 %v701
        %v740 = vpop.f32.mrb[0].mxu0
        %v741 = vadd.f32 0.0, %v740
        %v742 = vpop.f32.mrb[0].mxu0
        %v743 = vadd.f32 0.0, %v742
        %v744 = vpop.f32.mrb[0].mxu0
        %v745 = vadd.f32 0.0, %v744
        %v746 = vpop.f32.mrb[0].mxu0
        %v747 = vadd.f32 0.0, %v746
        %748 = vmatprep.mubr.bf16.mxu0 0
        %749 = vmatmul.mubr.bf16.gmra.mrb[0].mxu0 %v704
        %v750 = vpop.f32.mrb[0].mxu0
        %v751 = vadd.f32 0.0, %v750
        %v752 = vpop.f32.mrb[0].mxu0
        %v753 = vadd.f32 0.0, %v752
        %v754 = vpop.f32.mrb[0].mxu0
        %v755 = vpop.f32.mrb[0].mxu0
        %756 = vdwg.mxu0
        %757 = vmatprep.subr.bf16.mxu0 0
        %758 = vmatpush1.bf16.msra.mxu0 %v684
        %759 = vmatprep.subr.bf16.mxu0 0
        %760 = vmatpush1.bf16.msra.mxu0 %v687
        %761 = vmatprep.subr.bf16.mxu0 0
        %762 = vmatpush1.bf16.msra.mxu0 %v690
        %763 = vmatprep.subr.bf16.mxu0 0
        %764 = vmatpush1.bf16.msra.mxu0 0
        %765 = vmatprep.subr.bf16.mxu0 0
        %766 = vmatpush1.bf16.msra.mxu0 0
        %767 = vmatprep.subr.bf16.mxu0 0
        %768 = vmatpush1.bf16.msra.mxu0 0
        %769 = vmatprep.subr.bf16.mxu0 0
        %770 = vmatpush1.bf16.msra.mxu0 0
        %771 = vmatprep.subr.bf16.mxu0 0
        %772 = vmatpush1.bf16.msra.mxu0 0
        %773 = vmatprep.subr.bf16.mxu0 0
        %774 = vmatpush1.bf16.msra.mxu0 0
        %775 = vmatprep.subr.bf16.mxu0 0
        %776 = vmatpush1.bf16.msra.mxu0 0
        %777 = vmatprep.subr.bf16.mxu0 0
        %778 = vmatpush1.bf16.msra.mxu0 0
        %779 = vmatprep.subr.bf16.mxu0 0
        %780 = vmatpush1.bf16.msra.mxu0 0
        %781 = vmatprep.subr.bf16.mxu0 0
        %782 = vmatpush1.bf16.msra.mxu0 0
        %783 = vmatprep.subr.bf16.mxu0 0
        %784 = vmatpush1.bf16.msra.mxu0 0
        %785 = vmatprep.subr.bf16.mxu0 0
        %786 = vmatpush1.bf16.msra.mxu0 0
        %787 = vmatprep.subr.bf16.mxu0 0
        %788 = vmatpush1.bf16.msra.mxu0 0
        %789 = vmatprep.mubr.bf16.mxu0 0
        %790 = vmatmul.mubr.bf16.gmra.mrb[0].mxu0 %v701
        %v791 = vpop.f32.mrb[0].mxu0
        %v792 = vadd.f32 0.0, %v791
        %v793 = vpop.f32.mrb[0].mxu0
        %v794 = vpop.f32.mrb[0].mxu0
        %v795 = vadd.f32 0.0, %v794
        %v796 = vpop.f32.mrb[0].mxu0
        %797 = vmatprep.mubr.bf16.mxu0 0
        %798 = vmatmul.mubr.bf16.gmra.mrb[0].mxu0 %v704
        %v799 = vpop.f32.mrb[0].mxu0
        %v800 = vadd.f32 0.0, %v799
        %v801 = vpop.f32.mrb[0].mxu0
        %v802 = vpop.f32.mrb[0].mxu0
        %v803 = vpop.f32.mrb[0].mxu0
        %804 = vdwg.mxu0
        %v805 = vadd.f32 %v567, %v741
        %v806 = vadd.f32 %v569, %v743
        %v807 = vadd.f32 %v618, %v792
        %v808 = vadd.f32 %v571, %v745
        %v809 = vadd.f32 %v573, %v747
        %v810 = vadd.f32 %v621, %v795
        %v811 = vadd.f32 %v577, %v751
        %v812 = vadd.f32 %v579, %v753
        %v813 = vadd.f32 %v626, %v800
        %v814 = vld [vmem:[%s2] sm:$0x7]
        %v816 = vlaneseq
        %v817 = vshrl.u32 %v816, 7
        %v818 = vsub.s32 0, %v817
        %v819 = vrot.slane %v814, %v818
        %v820 = vlaneseq
        %v821 = vshrl.u32 %v820, 7
        %v822 = vsub.s32 1, %v821
        %v823 = vrot.slane %v814, %v822
        %v824 = vlaneseq
        %v825 = vshrl.u32 %v824, 7
        %v826 = vsub.s32 2, %v825
        %v827 = vrot.slane %v814, %v826
        %v831 = vadd.f32 %v805, %v819
        %v832 = vadd.f32 %v806, %v823
        %v833 = vadd.f32 %v807, %v827
        %v834 = vadd.f32 %v808, %v819
        %v835 = vadd.f32 %v809, %v823
        %v836 = vadd.f32 %v810, %v827
        %v837 = vadd.f32 %v811, %v819
        %v838 = vadd.f32 %v812, %v823
        %v839 = vadd.f32 %v813, %v827
        %v840 = vpack.c.bf16 %v834, %v831
        %v841 = vpack.c.bf16 %v835, %v832
        %v842 = vpack.c.bf16 %v836, %v833
        %v843 = vpack.c.bf16 %v837, %v837
        %v844 = vpack.c.bf16 %v838, %v838
        %v845 = vpack.c.bf16 %v839, %v839
        %v852 = vunpack.c.l.b16 %v840
        %v853 = vunpack.c.l.b16 %v841
        %v854 = vunpack.c.l.b16 %v842
        %v855 = vunpack.c.h.b16 %v840
        %v856 = vunpack.c.h.b16 %v841
        %v857 = vunpack.c.h.b16 %v842
        %v858 = vunpack.c.l.b16 %v843
        %v859 = vunpack.c.l.b16 %v844
        %v860 = vunpack.c.l.b16 %v845
        %v861 = vpack.c.b16 %v853, %v852
        %v862 = vpack.c.b16 %v854, %v854
        %v863 = vpack.c.b16 %v856, %v855
        %v864 = vpack.c.b16 %v857, %v857
        %v865 = vpack.c.b16 %v859, %v858
        %v866 = vpack.c.b16 %v860, %v860
        %873 = vst [vmem:[#allocation3] sm:$0xff] %v861
        %874 = vst [vmem:[#allocation3 + $0x8] sm:$0xf] %v862
        %875 = vst [vmem:[#allocation3 + $0xc] sm:$0xff] %v863
        %876 = vst [vmem:[#allocation3 + $0x14] sm:$0xf] %v864
        %877 = vst [vmem:[#allocation3 + $0x18] sm:$0x11] %v865
        %878 = vst [vmem:[#allocation3 + $0x20] sm:$0x1] %v866
        %v879 = vld [vmem:[#allocation3] sm:$0xff]
        %v880 = vld [vmem:[#allocation3 + $0x8] sm:$0xf]
        %v881 = vld [vmem:[#allocation3 + $0xc] sm:$0xff]
        %v882 = vld [vmem:[#allocation3 + $0x14] sm:$0xf]
        %v883 = vld [vmem:[#allocation4] sm:$0xf]
        %v884 = vld [vmem:[#allocation4 + $0x4] sm:$0xf]
        %v885 = vld [vmem:[#allocation4 + $0x8] sm:$0xf]
        %v886 = vld [vmem:[#allocation4 + $0xc] sm:$0xf]
        %v887 = vld [vmem:[#allocation4 + $0x10] sm:$0xf]
        %v888 = vld [vmem:[#allocation4 + $0x14] sm:$0xf]
        %v889 = vld [vmem:[#allocation4 + $0x18] sm:$0xf]
        %v890 = vld [vmem:[#allocation4 + $0x1c] sm:$0xf]
        %v891 = vld [vmem:[#allocation4 + $0x20] sm:$0xf]
        %v892 = vld [vmem:[#allocation4 + $0x24] sm:$0xf]
        %v893 = vld [vmem:[#allocation4 + $0x28] sm:$0xf]
        %v894 = vld [vmem:[#allocation4 + $0x2c] sm:$0xf]
        %v895 = vld [vmem:[#allocation4 + $0x30] sm:$0xf]
        %v896 = vld [vmem:[#allocation4 + $0x34] sm:$0xf]
        %v897 = vld [vmem:[#allocation4 + $0x38] sm:$0xf]
        %v898 = vld [vmem:[#allocation4 + $0x3c] sm:$0xf]
        %v899 = vld [vmem:[#allocation4 + $0x40] sm:$0xf]
        %v900 = vld [vmem:[#allocation4 + $0x44] sm:$0xf]
        %v901 = vld [vmem:[#allocation4 + $0x48] sm:$0xf]
        %v902 = vld [vmem:[#allocation4 + $0x4c] sm:$0xf]
        %v903 = vld [vmem:[#allocation4 + $0x50] sm:$0xf]
        %v904 = vld [vmem:[#allocation4 + $0x54] sm:$0xf]
        %v905 = vld [vmem:[#allocation4 + $0x58] sm:$0xf]
        %v906 = vld [vmem:[#allocation4 + $0x5c] sm:$0xf]
        %v907 = vld [vmem:[#allocation4 + $0x60] sm:$0xf]
        %v908 = vld [vmem:[#allocation4 + $0x64] sm:$0xf]
        %v909 = vld [vmem:[#allocation4 + $0x68] sm:$0xf]
        %v910 = vld [vmem:[#allocation4 + $0x6c] sm:$0xf]
        %v911 = vld [vmem:[#allocation4 + $0x70] sm:$0xf]
        %v912 = vld [vmem:[#allocation4 + $0x74] sm:$0xf]
        %v913 = vld [vmem:[#allocation4 + $0x78] sm:$0xf]
        %v914 = vld [vmem:[#allocation4 + $0x7c] sm:$0xf]
        %v915 = vld [vmem:[#allocation4 + $0x80] sm:$0xf]
        %v916 = vld [vmem:[#allocation4 + $0x84] sm:$0xf]
        %v917 = vld [vmem:[#allocation4 + $0x88] sm:$0xf]
        %v918 = vld [vmem:[#allocation4 + $0x8c] sm:$0xf]
        %v919 = vld [vmem:[#allocation4 + $0x90] sm:$0xf]
        %v920 = vld [vmem:[#allocation4 + $0x94] sm:$0xf]
        %v921 = vld [vmem:[#allocation4 + $0x98] sm:$0xf]
        %v922 = vld [vmem:[#allocation4 + $0x9c] sm:$0xf]
        %v923 = vld [vmem:[#allocation4 + $0xa0] sm:$0xf]
        %v924 = vld [vmem:[#allocation4 + $0xa4] sm:$0xf]
        %v925 = vld [vmem:[#allocation4 + $0xa8] sm:$0xf]
        %v926 = vld [vmem:[#allocation4 + $0xac] sm:$0xf]
        %v927 = vld [vmem:[#allocation4 + $0xb0] sm:$0xf]
        %v928 = vld [vmem:[#allocation4 + $0xb4] sm:$0xf]
        %v929 = vld [vmem:[#allocation4 + $0xb8] sm:$0xf]
        %v930 = vld [vmem:[#allocation4 + $0xbc] sm:$0xf]
        %v931 = vld [vmem:[#allocation3 + $0x18] sm:$0x11]
        %v932 = vld [vmem:[#allocation3 + $0x20] sm:$0x1]
        %s933 = scalar_lea.vmem [#allocation4], 192
        %v934 = vld [vmem:[%s933] sm:$0xf]
        %v935 = vld [vmem:[%s933 + $0x4] sm:$0xf]
        %v936 = vld [vmem:[%s933 + $0x8] sm:$0xf]
        %v937 = vld [vmem:[%s933 + $0xc] sm:$0xf]
        %v938 = vld [vmem:[%s933 + $0x10] sm:$0xf]
        %v939 = vld [vmem:[%s933 + $0x14] sm:$0xf]
        %v940 = vld [vmem:[%s933 + $0x18] sm:$0xf]
        %v941 = vld [vmem:[%s933 + $0x1c] sm:$0xf]
        %v942 = vld [vmem:[%s933 + $0x20] sm:$0xf]
        %v943 = vld [vmem:[%s933 + $0x24] sm:$0xf]
        %v944 = vld [vmem:[%s933 + $0x28] sm:$0xf]
        %v945 = vld [vmem:[%s933 + $0x2c] sm:$0xf]
        %v946 = vld [vmem:[%s933 + $0x30] sm:$0xf]
        %v947 = vld [vmem:[%s933 + $0x34] sm:$0xf]
        %v948 = vld [vmem:[%s933 + $0x38] sm:$0xf]
        %v949 = vld [vmem:[%s933 + $0x3c] sm:$0xf]
        %v950 = vld [vmem:[%s933 + $0x40] sm:$0xf]
        %v951 = vld [vmem:[%s933 + $0x44] sm:$0xf]
        %v952 = vld [vmem:[%s933 + $0x48] sm:$0xf]
        %v953 = vld [vmem:[%s933 + $0x4c] sm:$0xf]
        %v954 = vld [vmem:[%s933 + $0x50] sm:$0xf]
        %v955 = vld [vmem:[%s933 + $0x54] sm:$0xf]
        %v956 = vld [vmem:[%s933 + $0x58] sm:$0xf]
        %v957 = vld [vmem:[%s933 + $0x5c] sm:$0xf]
        %v958 = vld [vmem:[%s933 + $0x60] sm:$0xf]
        %v959 = vld [vmem:[%s933 + $0x64] sm:$0xf]
        %v960 = vld [vmem:[%s933 + $0x68] sm:$0xf]
        %v961 = vld [vmem:[%s933 + $0x6c] sm:$0xf]
        %v962 = vld [vmem:[%s933 + $0x70] sm:$0xf]
        %v963 = vld [vmem:[%s933 + $0x74] sm:$0xf]
        %v964 = vld [vmem:[%s933 + $0x78] sm:$0xf]
        %v965 = vld [vmem:[%s933 + $0x7c] sm:$0xf]
        %v966 = vld [vmem:[%s933 + $0x80] sm:$0xf]
        %v967 = vld [vmem:[%s933 + $0x84] sm:$0xf]
        %v968 = vld [vmem:[%s933 + $0x88] sm:$0xf]
        %v969 = vld [vmem:[%s933 + $0x8c] sm:$0xf]
        %v970 = vld [vmem:[%s933 + $0x90] sm:$0xf]
        %v971 = vld [vmem:[%s933 + $0x94] sm:$0xf]
        %v972 = vld [vmem:[%s933 + $0x98] sm:$0xf]
        %v973 = vld [vmem:[%s933 + $0x9c] sm:$0xf]
        %v974 = vld [vmem:[%s933 + $0xa0] sm:$0xf]
        %v975 = vld [vmem:[%s933 + $0xa4] sm:$0xf]
        %v976 = vld [vmem:[%s933 + $0xa8] sm:$0xf]
        %v977 = vld [vmem:[%s933 + $0xac] sm:$0xf]
        %v978 = vld [vmem:[%s933 + $0xb0] sm:$0xf]
        %v979 = vld [vmem:[%s933 + $0xb4] sm:$0xf]
        %v980 = vld [vmem:[%s933 + $0xb8] sm:$0xf]
        %v981 = vld [vmem:[%s933 + $0xbc] sm:$0xf]
        %v988 = vunpack.c.l.b16 %v879
        %v989 = vunpack.c.h.b16 %v879
        %v990 = vunpack.c.l.b16 %v880
        %v991 = vunpack.c.l.b16 %v881
        %v992 = vunpack.c.h.b16 %v881
        %v993 = vunpack.c.l.b16 %v882
        %v994 = vunpack.c.l.b16 %v931
        %v995 = vunpack.c.h.b16 %v931
        %v996 = vunpack.c.l.b16 %v932
        %v997 = vpack.c.b16 %v991, %v988
        %v998 = vpack.c.b16 %v992, %v989
        %v999 = vpack.c.b16 %v993, %v990
        %v1000 = vpack.c.b16 %v994, %v994
        %v1001 = vpack.c.b16 %v995, %v995
        %v1002 = vpack.c.b16 %v996, %v996
        %v1004 = vshrl.u32 %v997, 16
        %v1006 = vshll.u32 %v997, 16
        %v1008 = vrot.slane %v1006, 1
        %v1009 = vor.u32 %v1004, %v1008
        %v1011 = vshll.u32 %v1000, 16
        %v1013 = vrot.slane %v1011, 1
        %v1014 = vsel %vm306, %v1009, %v1013
        %v1016 = vshrl.u32 %v998, 16
        %v1018 = vshll.u32 %v998, 16
        %v1020 = vrot.slane %v1018, 1
        %v1021 = vor.u32 %v1016, %v1020
        %v1023 = vshll.u32 %v1001, 16
        %v1025 = vrot.slane %v1023, 1
        %v1026 = vsel %vm306, %v1021, %v1025
        %v1028 = vshrl.u32 %v999, 16
        %v1030 = vshll.u32 %v999, 16
        %v1032 = vrot.slane %v1030, 1
        %v1033 = vor.u32 %v1028, %v1032
        %v1035 = vshll.u32 %v1002, 16
        %v1037 = vrot.slane %v1035, 1
        %v1038 = vsel %vm306, %v1033, %v1037
        %v1090 = vunpack.c.l.b16 %v934
        %v1091 = vunpack.c.l.b16 %v935
        %v1092 = vunpack.c.l.b16 %v936
        %v1093 = vunpack.c.l.b16 %v937
        %v1094 = vunpack.c.l.b16 %v938
        %v1095 = vunpack.c.l.b16 %v939
        %v1096 = vunpack.c.l.b16 %v940
        %v1097 = vunpack.c.l.b16 %v941
        %v1098 = vunpack.c.l.b16 %v942
        %v1099 = vunpack.c.l.b16 %v943
        %v1100 = vunpack.c.l.b16 %v944
        %v1101 = vunpack.c.l.b16 %v945
        %v1102 = vunpack.c.l.b16 %v946
        %v1103 = vunpack.c.l.b16 %v947
        %v1104 = vunpack.c.l.b16 %v948
        %v1105 = vunpack.c.l.b16 %v949
        %v1106 = vunpack.c.l.b16 %v950
        %v1107 = vunpack.c.l.b16 %v951
        %v1108 = vunpack.c.l.b16 %v952
        %v1109 = vunpack.c.l.b16 %v953
        %v1110 = vunpack.c.l.b16 %v954
        %v1111 = vunpack.c.l.b16 %v955
        %v1112 = vunpack.c.l.b16 %v956
        %v1113 = vunpack.c.l.b16 %v957
        %v1114 = vunpack.c.l.b16 %v958
        %v1115 = vunpack.c.l.b16 %v959
        %v1116 = vunpack.c.l.b16 %v960
        %v1117 = vunpack.c.l.b16 %v961
        %v1118 = vunpack.c.l.b16 %v962
        %v1119 = vunpack.c.l.b16 %v963
        %v1120 = vunpack.c.l.b16 %v964
        %v1121 = vunpack.c.l.b16 %v965
        %v1122 = vunpack.c.l.b16 %v966
        %v1123 = vunpack.c.l.b16 %v967
        %v1124 = vunpack.c.l.b16 %v968
        %v1125 = vunpack.c.l.b16 %v969
        %v1126 = vunpack.c.l.b16 %v970
        %v1127 = vunpack.c.l.b16 %v971
        %v1128 = vunpack.c.l.b16 %v972
        %v1129 = vunpack.c.l.b16 %v973
        %v1130 = vunpack.c.l.b16 %v974
        %v1131 = vunpack.c.l.b16 %v975
        %v1132 = vunpack.c.l.b16 %v976
        %v1133 = vunpack.c.l.b16 %v977
        %v1134 = vunpack.c.l.b16 %v978
        %v1135 = vunpack.c.l.b16 %v979
        %v1136 = vunpack.c.l.b16 %v980
        %v1137 = vunpack.c.l.b16 %v981
        %v1138 = vpack.c.b16 %v1091, %v1090
        %v1139 = vpack.c.b16 %v1093, %v1092
        %v1140 = vpack.c.b16 %v1095, %v1094
        %v1141 = vpack.c.b16 %v1097, %v1096
        %v1142 = vpack.c.b16 %v1099, %v1098
        %v1143 = vpack.c.b16 %v1101, %v1100
        %v1144 = vpack.c.b16 %v1103, %v1102
        %v1145 = vpack.c.b16 %v1105, %v1104
        %v1146 = vpack.c.b16 %v1107, %v1106
        %v1147 = vpack.c.b16 %v1109, %v1108
        %v1148 = vpack.c.b16 %v1111, %v1110
        %v1149 = vpack.c.b16 %v1113, %v1112
        %v1150 = vpack.c.b16 %v1115, %v1114
        %v1151 = vpack.c.b16 %v1117, %v1116
        %v1152 = vpack.c.b16 %v1119, %v1118
        %v1153 = vpack.c.b16 %v1121, %v1120
        %v1154 = vpack.c.b16 %v1123, %v1122
        %v1155 = vpack.c.b16 %v1125, %v1124
        %v1156 = vpack.c.b16 %v1127, %v1126
        %v1157 = vpack.c.b16 %v1129, %v1128
        %v1158 = vpack.c.b16 %v1131, %v1130
        %v1159 = vpack.c.b16 %v1133, %v1132
        %v1160 = vpack.c.b16 %v1135, %v1134
        %v1161 = vpack.c.b16 %v1137, %v1136
        %1186 = vmatprep.subr.bf16.mxu0 0
        %1187 = vmatpush1.bf16.msra.mxu0 %v1138
        %1188 = vmatprep.subr.bf16.mxu0 0
        %1189 = vmatpush1.bf16.msra.mxu0 %v1139
        %1190 = vmatprep.subr.bf16.mxu0 0
        %1191 = vmatpush1.bf16.msra.mxu0 %v1140
        %1192 = vmatprep.subr.bf16.mxu0 0
        %1193 = vmatpush1.bf16.msra.mxu0 %v1141
        %1194 = vmatprep.subr.bf16.mxu0 0
        %1195 = vmatpush1.bf16.msra.mxu0 %v1142
        %1196 = vmatprep.subr.bf16.mxu0 0
        %1197 = vmatpush1.bf16.msra.mxu0 %v1143
        %1198 = vmatprep.subr.bf16.mxu0 0
        %1199 = vmatpush1.bf16.msra.mxu0 %v1144
        %1200 = vmatprep.subr.bf16.mxu0 0
        %1201 = vmatpush1.bf16.msra.mxu0 %v1145
        %1202 = vmatprep.subr.bf16.mxu0 0
        %1203 = vmatpush1.bf16.msra.mxu0 %v1146
        %1204 = vmatprep.subr.bf16.mxu0 0
        %1205 = vmatpush1.bf16.msra.mxu0 %v1147
        %1206 = vmatprep.subr.bf16.mxu0 0
        %1207 = vmatpush1.bf16.msra.mxu0 %v1148
        %1208 = vmatprep.subr.bf16.mxu0 0
        %1209 = vmatpush1.bf16.msra.mxu0 %v1149
        %1210 = vmatprep.subr.bf16.mxu0 0
        %1211 = vmatpush1.bf16.msra.mxu0 %v1150
        %1212 = vmatprep.subr.bf16.mxu0 0
        %1213 = vmatpush1.bf16.msra.mxu0 %v1151
        %1214 = vmatprep.subr.bf16.mxu0 0
        %1215 = vmatpush1.bf16.msra.mxu0 %v1152
        %1216 = vmatprep.subr.bf16.mxu0 0
        %1217 = vmatpush1.bf16.msra.mxu0 %v1153
        %1218 = vmatprep.mubr.bf16.mxu0 %v1026
        %1219 = vmatmul.mubr.bf16.gmra.mrb[0].mxu0 %v1014
        %v1220 = vpop.f32.mrb[0].mxu0
        %v1221 = vadd.f32 0.0, %v1220
        %v1222 = vpop.f32.mrb[0].mxu0
        %v1223 = vpop.f32.mrb[0].mxu0
        %v1224 = vadd.f32 0.0, %v1223
        %v1225 = vpop.f32.mrb[0].mxu0
        %1226 = vdwg.mxu0
        %1227 = vmatprep.subr.bf16.mxu0 0
        %1228 = vmatpush1.bf16.msra.mxu0 %v1154
        %1229 = vmatprep.subr.bf16.mxu0 0
        %1230 = vmatpush1.bf16.msra.mxu0 %v1155
        %1231 = vmatprep.subr.bf16.mxu0 0
        %1232 = vmatpush1.bf16.msra.mxu0 %v1156
        %1233 = vmatprep.subr.bf16.mxu0 0
        %1234 = vmatpush1.bf16.msra.mxu0 %v1157
        %1235 = vmatprep.subr.bf16.mxu0 0
        %1236 = vmatpush1.bf16.msra.mxu0 %v1158
        %1237 = vmatprep.subr.bf16.mxu0 0
        %1238 = vmatpush1.bf16.msra.mxu0 %v1159
        %1239 = vmatprep.subr.bf16.mxu0 0
        %1240 = vmatpush1.bf16.msra.mxu0 %v1160
        %1241 = vmatprep.subr.bf16.mxu0 0
        %1242 = vmatpush1.bf16.msra.mxu0 %v1161
        %1243 = vmatprep.subr.bf16.mxu0 0
        %1244 = vmatpush1.bf16.msra.mxu0 0
        %1245 = vmatprep.subr.bf16.mxu0 0
        %1246 = vmatpush1.bf16.msra.mxu0 0
        %1247 = vmatprep.subr.bf16.mxu0 0
        %1248 = vmatpush1.bf16.msra.mxu0 0
        %1249 = vmatprep.subr.bf16.mxu0 0
        %1250 = vmatpush1.bf16.msra.mxu0 0
        %1251 = vmatprep.subr.bf16.mxu0 0
        %1252 = vmatpush1.bf16.msra.mxu0 0
        %1253 = vmatprep.subr.bf16.mxu0 0
        %1254 = vmatpush1.bf16.msra.mxu0 0
        %1255 = vmatprep.subr.bf16.mxu0 0
        %1256 = vmatpush1.bf16.msra.mxu0 0
        %1257 = vmatprep.subr.bf16.mxu0 0
        %1258 = vmatpush1.bf16.msra.mxu0 0
        %1259 = vmatprep.mubr.bf16.mxu0 0
        %1260 = vmatmul.mubr.bf16.gmra.mrb[0].mxu0 %v1038
        %v1261 = vpop.f32.mrb[0].mxu0
        %v1262 = vadd.f32 %v1221, %v1261
        %v1263 = vpop.f32.mrb[0].mxu0
        %v1264 = vpop.f32.mrb[0].mxu0
        %v1265 = vadd.f32 %v1224, %v1264
        %v1266 = vpop.f32.mrb[0].mxu0
        %1267 = vdwg.mxu0
        %v1319 = vunpack.c.l.b16 %v883
        %v1320 = vunpack.c.l.b16 %v884
        %v1321 = vunpack.c.l.b16 %v885
        %v1322 = vunpack.c.l.b16 %v886
        %v1323 = vunpack.c.l.b16 %v887
        %v1324 = vunpack.c.l.b16 %v888
        %v1325 = vunpack.c.l.b16 %v889
        %v1326 = vunpack.c.l.b16 %v890
        %v1327 = vunpack.c.l.b16 %v891
        %v1328 = vunpack.c.l.b16 %v892
        %v1329 = vunpack.c.l.b16 %v893
        %v1330 = vunpack.c.l.b16 %v894
        %v1331 = vunpack.c.l.b16 %v895
        %v1332 = vunpack.c.l.b16 %v896
        %v1333 = vunpack.c.l.b16 %v897
        %v1334 = vunpack.c.l.b16 %v898
        %v1335 = vunpack.c.l.b16 %v899
        %v1336 = vunpack.c.l.b16 %v900
        %v1337 = vunpack.c.l.b16 %v901
        %v1338 = vunpack.c.l.b16 %v902
        %v1339 = vunpack.c.l.b16 %v903
        %v1340 = vunpack.c.l.b16 %v904
        %v1341 = vunpack.c.l.b16 %v905
        %v1342 = vunpack.c.l.b16 %v906
        %v1343 = vunpack.c.l.b16 %v907
        %v1344 = vunpack.c.l.b16 %v908
        %v1345 = vunpack.c.l.b16 %v909
        %v1346 = vunpack.c.l.b16 %v910
        %v1347 = vunpack.c.l.b16 %v911
        %v1348 = vunpack.c.l.b16 %v912
        %v1349 = vunpack.c.l.b16 %v913
        %v1350 = vunpack.c.l.b16 %v914
        %v1351 = vunpack.c.l.b16 %v915
        %v1352 = vunpack.c.l.b16 %v916
        %v1353 = vunpack.c.l.b16 %v917
        %v1354 = vunpack.c.l.b16 %v918
        %v1355 = vunpack.c.l.b16 %v919
        %v1356 = vunpack.c.l.b16 %v920
        %v1357 = vunpack.c.l.b16 %v921
        %v1358 = vunpack.c.l.b16 %v922
        %v1359 = vunpack.c.l.b16 %v923
        %v1360 = vunpack.c.l.b16 %v924
        %v1361 = vunpack.c.l.b16 %v925
        %v1362 = vunpack.c.l.b16 %v926
        %v1363 = vunpack.c.l.b16 %v927
        %v1364 = vunpack.c.l.b16 %v928
        %v1365 = vunpack.c.l.b16 %v929
        %v1366 = vunpack.c.l.b16 %v930
        %v1367 = vpack.c.b16 %v1320, %v1319
        %v1368 = vpack.c.b16 %v1322, %v1321
        %v1369 = vpack.c.b16 %v1324, %v1323
        %v1370 = vpack.c.b16 %v1326, %v1325
        %v1371 = vpack.c.b16 %v1328, %v1327
        %v1372 = vpack.c.b16 %v1330, %v1329
        %v1373 = vpack.c.b16 %v1332, %v1331
        %v1374 = vpack.c.b16 %v1334, %v1333
        %v1375 = vpack.c.b16 %v1336, %v1335
        %v1376 = vpack.c.b16 %v1338, %v1337
        %v1377 = vpack.c.b16 %v1340, %v1339
        %v1378 = vpack.c.b16 %v1342, %v1341
        %v1379 = vpack.c.b16 %v1344, %v1343
        %v1380 = vpack.c.b16 %v1346, %v1345
        %v1381 = vpack.c.b16 %v1348, %v1347
        %v1382 = vpack.c.b16 %v1350, %v1349
        %v1383 = vpack.c.b16 %v1352, %v1351
        %v1384 = vpack.c.b16 %v1354, %v1353
        %v1385 = vpack.c.b16 %v1356, %v1355
        %v1386 = vpack.c.b16 %v1358, %v1357
        %v1387 = vpack.c.b16 %v1360, %v1359
        %v1388 = vpack.c.b16 %v1362, %v1361
        %v1389 = vpack.c.b16 %v1364, %v1363
        %v1390 = vpack.c.b16 %v1366, %v1365
        %1415 = vmatprep.subr.bf16.mxu0 0
        %1416 = vmatpush1.bf16.msra.mxu0 %v1367
        %1417 = vmatprep.subr.bf16.mxu0 0
        %1418 = vmatpush1.bf16.msra.mxu0 %v1368
        %1419 = vmatprep.subr.bf16.mxu0 0
        %1420 = vmatpush1.bf16.msra.mxu0 %v1369
        %1421 = vmatprep.subr.bf16.mxu0 0
        %1422 = vmatpush1.bf16.msra.mxu0 %v1370
        %1423 = vmatprep.subr.bf16.mxu0 0
        %1424 = vmatpush1.bf16.msra.mxu0 %v1371
        %1425 = vmatprep.subr.bf16.mxu0 0
        %1426 = vmatpush1.bf16.msra.mxu0 %v1372
        %1427 = vmatprep.subr.bf16.mxu0 0
        %1428 = vmatpush1.bf16.msra.mxu0 %v1373
        %1429 = vmatprep.subr.bf16.mxu0 0
        %1430 = vmatpush1.bf16.msra.mxu0 %v1374
        %1431 = vmatprep.subr.bf16.mxu0 0
        %1432 = vmatpush1.bf16.msra.mxu0 %v1375
        %1433 = vmatprep.subr.bf16.mxu0 0
        %1434 = vmatpush1.bf16.msra.mxu0 %v1376
        %1435 = vmatprep.subr.bf16.mxu0 0
        %1436 = vmatpush1.bf16.msra.mxu0 %v1377
        %1437 = vmatprep.subr.bf16.mxu0 0
        %1438 = vmatpush1.bf16.msra.mxu0 %v1378
        %1439 = vmatprep.subr.bf16.mxu0 0
        %1440 = vmatpush1.bf16.msra.mxu0 %v1379
        %1441 = vmatprep.subr.bf16.mxu0 0
        %1442 = vmatpush1.bf16.msra.mxu0 %v1380
        %1443 = vmatprep.subr.bf16.mxu0 0
        %1444 = vmatpush1.bf16.msra.mxu0 %v1381
        %1445 = vmatprep.subr.bf16.mxu0 0
        %1446 = vmatpush1.bf16.msra.mxu0 %v1382
        %1447 = vmatprep.mubr.bf16.mxu0 %v998
        %1448 = vmatmul.mubr.bf16.gmra.mrb[0].mxu0 %v997
        %v1449 = vpop.f32.mrb[0].mxu0
        %v1450 = vadd.f32 %v1262, %v1449
        %v1451 = vpop.f32.mrb[0].mxu0
        %v1452 = vpop.f32.mrb[0].mxu0
        %v1453 = vadd.f32 %v1265, %v1452
        %v1454 = vpop.f32.mrb[0].mxu0
        %1455 = vdwg.mxu0
        %1456 = vmatprep.subr.bf16.mxu0 0
        %1457 = vmatpush1.bf16.msra.mxu0 %v1383
        %1458 = vmatprep.subr.bf16.mxu0 0
        %1459 = vmatpush1.bf16.msra.mxu0 %v1384
        %1460 = vmatprep.subr.bf16.mxu0 0
        %1461 = vmatpush1.bf16.msra.mxu0 %v1385
        %1462 = vmatprep.subr.bf16.mxu0 0
        %1463 = vmatpush1.bf16.msra.mxu0 %v1386
        %1464 = vmatprep.subr.bf16.mxu0 0
        %1465 = vmatpush1.bf16.msra.mxu0 %v1387
        %1466 = vmatprep.subr.bf16.mxu0 0
        %1467 = vmatpush1.bf16.msra.mxu0 %v1388
        %1468 = vmatprep.subr.bf16.mxu0 0
        %1469 = vmatpush1.bf16.msra.mxu0 %v1389
        %1470 = vmatprep.subr.bf16.mxu0 0
        %1471 = vmatpush1.bf16.msra.mxu0 %v1390
        %1472 = vmatprep.subr.bf16.mxu0 0
        %1473 = vmatpush1.bf16.msra.mxu0 0
        %1474 = vmatprep.subr.bf16.mxu0 0
        %1475 = vmatpush1.bf16.msra.mxu0 0
        %1476 = vmatprep.subr.bf16.mxu0 0
        %1477 = vmatpush1.bf16.msra.mxu0 0
        %1478 = vmatprep.subr.bf16.mxu0 0
        %1479 = vmatpush1.bf16.msra.mxu0 0
        %1480 = vmatprep.subr.bf16.mxu0 0
        %1481 = vmatpush1.bf16.msra.mxu0 0
        %1482 = vmatprep.subr.bf16.mxu0 0
        %1483 = vmatpush1.bf16.msra.mxu0 0
        %1484 = vmatprep.subr.bf16.mxu0 0
        %1485 = vmatpush1.bf16.msra.mxu0 0
        %1486 = vmatprep.subr.bf16.mxu0 0
        %1487 = vmatpush1.bf16.msra.mxu0 0
        %1488 = vmatprep.mubr.bf16.mxu0 0
        %1489 = vmatmul.mubr.bf16.gmra.mrb[0].mxu0 %v999
        %v1490 = vpop.f32.mrb[0].mxu0
        %v1491 = vadd.f32 %v1450, %v1490
        %v1492 = vpop.f32.mrb[0].mxu0
        %v1493 = vpop.f32.mrb[0].mxu0
        %v1494 = vadd.f32 %v1453, %v1493
        %v1495 = vpop.f32.mrb[0].mxu0
        %1496 = vdwg.mxu0
        %v1497 = vld [vmem:[#allocation3] sm:$0xee]
        %v1498 = vld [vmem:[#allocation3 + $0x8] sm:$0xe]
        %s1499 = scalar_lea.vmem [#allocation4], 384
        %v1500 = vld [vmem:[%s1499] sm:$0xf]
        %v1501 = vld [vmem:[%s1499 + $0x4] sm:$0xf]
        %v1502 = vld [vmem:[%s1499 + $0x8] sm:$0xf]
        %v1503 = vld [vmem:[%s1499 + $0xc] sm:$0xf]
        %v1504 = vld [vmem:[%s1499 + $0x10] sm:$0xf]
        %v1505 = vld [vmem:[%s1499 + $0x14] sm:$0xf]
        %v1506 = vld [vmem:[%s1499 + $0x18] sm:$0xf]
        %v1507 = vld [vmem:[%s1499 + $0x1c] sm:$0xf]
        %v1508 = vld [vmem:[%s1499 + $0x20] sm:$0xf]
        %v1509 = vld [vmem:[%s1499 + $0x24] sm:$0xf]
        %v1510 = vld [vmem:[%s1499 + $0x28] sm:$0xf]
        %v1511 = vld [vmem:[%s1499 + $0x2c] sm:$0xf]
        %v1512 = vld [vmem:[%s1499 + $0x30] sm:$0xf]
        %v1513 = vld [vmem:[%s1499 + $0x34] sm:$0xf]
        %v1514 = vld [vmem:[%s1499 + $0x38] sm:$0xf]
        %v1515 = vld [vmem:[%s1499 + $0x3c] sm:$0xf]
        %v1516 = vld [vmem:[%s1499 + $0x40] sm:$0xf]
        %v1517 = vld [vmem:[%s1499 + $0x44] sm:$0xf]
        %v1518 = vld [vmem:[%s1499 + $0x48] sm:$0xf]
        %v1519 = vld [vmem:[%s1499 + $0x4c] sm:$0xf]
        %v1520 = vld [vmem:[%s1499 + $0x50] sm:$0xf]
        %v1521 = vld [vmem:[%s1499 + $0x54] sm:$0xf]
        %v1522 = vld [vmem:[%s1499 + $0x58] sm:$0xf]
        %v1523 = vld [vmem:[%s1499 + $0x5c] sm:$0xf]
        %v1524 = vld [vmem:[%s1499 + $0x60] sm:$0xf]
        %v1525 = vld [vmem:[%s1499 + $0x64] sm:$0xf]
        %v1526 = vld [vmem:[%s1499 + $0x68] sm:$0xf]
        %v1527 = vld [vmem:[%s1499 + $0x6c] sm:$0xf]
        %v1528 = vld [vmem:[%s1499 + $0x70] sm:$0xf]
        %v1529 = vld [vmem:[%s1499 + $0x74] sm:$0xf]
        %v1530 = vld [vmem:[%s1499 + $0x78] sm:$0xf]
        %v1531 = vld [vmem:[%s1499 + $0x7c] sm:$0xf]
        %v1532 = vld [vmem:[%s1499 + $0x80] sm:$0xf]
        %v1533 = vld [vmem:[%s1499 + $0x84] sm:$0xf]
        %v1534 = vld [vmem:[%s1499 + $0x88] sm:$0xf]
        %v1535 = vld [vmem:[%s1499 + $0x8c] sm:$0xf]
        %v1536 = vld [vmem:[%s1499 + $0x90] sm:$0xf]
        %v1537 = vld [vmem:[%s1499 + $0x94] sm:$0xf]
        %v1538 = vld [vmem:[%s1499 + $0x98] sm:$0xf]
        %v1539 = vld [vmem:[%s1499 + $0x9c] sm:$0xf]
        %v1540 = vld [vmem:[%s1499 + $0xa0] sm:$0xf]
        %v1541 = vld [vmem:[%s1499 + $0xa4] sm:$0xf]
        %v1542 = vld [vmem:[%s1499 + $0xa8] sm:$0xf]
        %v1543 = vld [vmem:[%s1499 + $0xac] sm:$0xf]
        %v1544 = vld [vmem:[%s1499 + $0xb0] sm:$0xf]
        %v1545 = vld [vmem:[%s1499 + $0xb4] sm:$0xf]
        %v1546 = vld [vmem:[%s1499 + $0xb8] sm:$0xf]
        %v1547 = vld [vmem:[%s1499 + $0xbc] sm:$0xf]
        %v1550 = vunpack.c.l.b16 %v1497
        %v1551 = vunpack.c.h.b16 %v1497
        %v1552 = vunpack.c.l.b16 %v1498
        %v1553 = vpack.c.b16 %v991, %v1550
        %v1554 = vpack.c.b16 %v992, %v1551
        %v1555 = vpack.c.b16 %v993, %v1552
        %v1556 = vrot.slane %v1553, 1
        %v1557 = vrot.slane %v1000, 1
        %v1558 = vsel %vm648, %v1556, %v1557
        %v1559 = vrot.slane %v1554, 1
        %v1560 = vrot.slane %v1001, 1
        %v1561 = vsel %vm648, %v1559, %v1560
        %v1562 = vrot.slane %v1555, 1
        %v1563 = vrot.slane %v1002, 1
        %v1564 = vsel %vm648, %v1562, %v1563
        %v1616 = vunpack.c.l.b16 %v1500
        %v1617 = vunpack.c.l.b16 %v1501
        %v1618 = vunpack.c.l.b16 %v1502
        %v1619 = vunpack.c.l.b16 %v1503
        %v1620 = vunpack.c.l.b16 %v1504
        %v1621 = vunpack.c.l.b16 %v1505
        %v1622 = vunpack.c.l.b16 %v1506
        %v1623 = vunpack.c.l.b16 %v1507
        %v1624 = vunpack.c.l.b16 %v1508
        %v1625 = vunpack.c.l.b16 %v1509
        %v1626 = vunpack.c.l.b16 %v1510
        %v1627 = vunpack.c.l.b16 %v1511
        %v1628 = vunpack.c.l.b16 %v1512
        %v1629 = vunpack.c.l.b16 %v1513
        %v1630 = vunpack.c.l.b16 %v1514
        %v1631 = vunpack.c.l.b16 %v1515
        %v1632 = vunpack.c.l.b16 %v1516
        %v1633 = vunpack.c.l.b16 %v1517
        %v1634 = vunpack.c.l.b16 %v1518
        %v1635 = vunpack.c.l.b16 %v1519
        %v1636 = vunpack.c.l.b16 %v1520
        %v1637 = vunpack.c.l.b16 %v1521
        %v1638 = vunpack.c.l.b16 %v1522
        %v1639 = vunpack.c.l.b16 %v1523
        %v1640 = vunpack.c.l.b16 %v1524
        %v1641 = vunpack.c.l.b16 %v1525
        %v1642 = vunpack.c.l.b16 %v1526
        %v1643 = vunpack.c.l.b16 %v1527
        %v1644 = vunpack.c.l.b16 %v1528
        %v1645 = vunpack.c.l.b16 %v1529
        %v1646 = vunpack.c.l.b16 %v1530
        %v1647 = vunpack.c.l.b16 %v1531
        %v1648 = vunpack.c.l.b16 %v1532
        %v1649 = vunpack.c.l.b16 %v1533
        %v1650 = vunpack.c.l.b16 %v1534
        %v1651 = vunpack.c.l.b16 %v1535
        %v1652 = vunpack.c.l.b16 %v1536
        %v1653 = vunpack.c.l.b16 %v1537
        %v1654 = vunpack.c.l.b16 %v1538
        %v1655 = vunpack.c.l.b16 %v1539
        %v1656 = vunpack.c.l.b16 %v1540
        %v1657 = vunpack.c.l.b16 %v1541
        %v1658 = vunpack.c.l.b16 %v1542
        %v1659 = vunpack.c.l.b16 %v1543
        %v1660 = vunpack.c.l.b16 %v1544
        %v1661 = vunpack.c.l.b16 %v1545
        %v1662 = vunpack.c.l.b16 %v1546
        %v1663 = vunpack.c.l.b16 %v1547
        %v1664 = vpack.c.b16 %v1617, %v1616
        %v1665 = vpack.c.b16 %v1619, %v1618
        %v1666 = vpack.c.b16 %v1621, %v1620
        %v1667 = vpack.c.b16 %v1623, %v1622
        %v1668 = vpack.c.b16 %v1625, %v1624
        %v1669 = vpack.c.b16 %v1627, %v1626
        %v1670 = vpack.c.b16 %v1629, %v1628
        %v1671 = vpack.c.b16 %v1631, %v1630
        %v1672 = vpack.c.b16 %v1633, %v1632
        %v1673 = vpack.c.b16 %v1635, %v1634
        %v1674 = vpack.c.b16 %v1637, %v1636
        %v1675 = vpack.c.b16 %v1639, %v1638
        %v1676 = vpack.c.b16 %v1641, %v1640
        %v1677 = vpack.c.b16 %v1643, %v1642
        %v1678 = vpack.c.b16 %v1645, %v1644
        %v1679 = vpack.c.b16 %v1647, %v1646
        %v1680 = vpack.c.b16 %v1649, %v1648
        %v1681 = vpack.c.b16 %v1651, %v1650
        %v1682 = vpack.c.b16 %v1653, %v1652
        %v1683 = vpack.c.b16 %v1655, %v1654
        %v1684 = vpack.c.b16 %v1657, %v1656
        %v1685 = vpack.c.b16 %v1659, %v1658
        %v1686 = vpack.c.b16 %v1661, %v1660
        %v1687 = vpack.c.b16 %v1663, %v1662
        %1712 = vmatprep.subr.bf16.mxu0 0
        %1713 = vmatpush1.bf16.msra.mxu0 %v1664
        %1714 = vmatprep.subr.bf16.mxu0 0
        %1715 = vmatpush1.bf16.msra.mxu0 %v1665
        %1716 = vmatprep.subr.bf16.mxu0 0
        %1717 = vmatpush1.bf16.msra.mxu0 %v1666
        %1718 = vmatprep.subr.bf16.mxu0 0
        %1719 = vmatpush1.bf16.msra.mxu0 %v1667
        %1720 = vmatprep.subr.bf16.mxu0 0
        %1721 = vmatpush1.bf16.msra.mxu0 %v1668
        %1722 = vmatprep.subr.bf16.mxu0 0
        %1723 = vmatpush1.bf16.msra.mxu0 %v1669
        %1724 = vmatprep.subr.bf16.mxu0 0
        %1725 = vmatpush1.bf16.msra.mxu0 %v1670
        %1726 = vmatprep.subr.bf16.mxu0 0
        %1727 = vmatpush1.bf16.msra.mxu0 %v1671
        %1728 = vmatprep.subr.bf16.mxu0 0
        %1729 = vmatpush1.bf16.msra.mxu0 %v1672
        %1730 = vmatprep.subr.bf16.mxu0 0
        %1731 = vmatpush1.bf16.msra.mxu0 %v1673
        %1732 = vmatprep.subr.bf16.mxu0 0
        %1733 = vmatpush1.bf16.msra.mxu0 %v1674
        %1734 = vmatprep.subr.bf16.mxu0 0
        %1735 = vmatpush1.bf16.msra.mxu0 %v1675
        %1736 = vmatprep.subr.bf16.mxu0 0
        %1737 = vmatpush1.bf16.msra.mxu0 %v1676
        %1738 = vmatprep.subr.bf16.mxu0 0
        %1739 = vmatpush1.bf16.msra.mxu0 %v1677
        %1740 = vmatprep.subr.bf16.mxu0 0
        %1741 = vmatpush1.bf16.msra.mxu0 %v1678
        %1742 = vmatprep.subr.bf16.mxu0 0
        %1743 = vmatpush1.bf16.msra.mxu0 %v1679
        %1744 = vmatprep.mubr.bf16.mxu0 %v1561
        %1745 = vmatmul.mubr.bf16.gmra.mrb[0].mxu0 %v1558
        %v1746 = vpop.f32.mrb[0].mxu0
        %v1747 = vadd.f32 0.0, %v1746
        %v1748 = vpop.f32.mrb[0].mxu0
        %v1749 = vpop.f32.mrb[0].mxu0
        %v1750 = vadd.f32 0.0, %v1749
        %v1751 = vpop.f32.mrb[0].mxu0
        %1752 = vdwg.mxu0
        %1753 = vmatprep.subr.bf16.mxu0 0
        %1754 = vmatpush1.bf16.msra.mxu0 %v1680
        %1755 = vmatprep.subr.bf16.mxu0 0
        %1756 = vmatpush1.bf16.msra.mxu0 %v1681
        %1757 = vmatprep.subr.bf16.mxu0 0
        %1758 = vmatpush1.bf16.msra.mxu0 %v1682
        %1759 = vmatprep.subr.bf16.mxu0 0
        %1760 = vmatpush1.bf16.msra.mxu0 %v1683
        %1761 = vmatprep.subr.bf16.mxu0 0
        %1762 = vmatpush1.bf16.msra.mxu0 %v1684
        %1763 = vmatprep.subr.bf16.mxu0 0
        %1764 = vmatpush1.bf16.msra.mxu0 %v1685
        %1765 = vmatprep.subr.bf16.mxu0 0
        %1766 = vmatpush1.bf16.msra.mxu0 %v1686
        %1767 = vmatprep.subr.bf16.mxu0 0
        %1768 = vmatpush1.bf16.msra.mxu0 %v1687
        %1769 = vmatprep.subr.bf16.mxu0 0
        %1770 = vmatpush1.bf16.msra.mxu0 0
        %1771 = vmatprep.subr.bf16.mxu0 0
        %1772 = vmatpush1.bf16.msra.mxu0 0
        %1773 = vmatprep.subr.bf16.mxu0 0
        %1774 = vmatpush1.bf16.msra.mxu0 0
        %1775 = vmatprep.subr.bf16.mxu0 0
        %1776 = vmatpush1.bf16.msra.mxu0 0
        %1777 = vmatprep.subr.bf16.mxu0 0
        %1778 = vmatpush1.bf16.msra.mxu0 0
        %1779 = vmatprep.subr.bf16.mxu0 0
        %1780 = vmatpush1.bf16.msra.mxu0 0
        %1781 = vmatprep.subr.bf16.mxu0 0
        %1782 = vmatpush1.bf16.msra.mxu0 0
        %1783 = vmatprep.subr.bf16.mxu0 0
        %1784 = vmatpush1.bf16.msra.mxu0 0
        %1785 = vmatprep.mubr.bf16.mxu0 0
        %1786 = vmatmul.mubr.bf16.gmra.mrb[0].mxu0 %v1564
        %v1787 = vpop.f32.mrb[0].mxu0
        %v1788 = vadd.f32 %v1747, %v1787
        %v1789 = vpop.f32.mrb[0].mxu0
        %v1790 = vpop.f32.mrb[0].mxu0
        %v1791 = vadd.f32 %v1750, %v1790
        %v1792 = vpop.f32.mrb[0].mxu0
        %1793 = vdwg.mxu0
        %v1794 = vadd.f32 %v1491, %v1788
        %v1795 = vadd.f32 %v1494, %v1791
        %v1796 = vld [vmem:[%s4] sm:$0x1]
        %v1798 = vlaneseq
        %v1799 = vshrl.u32 %v1798, 7
        %v1800 = vsub.s32 0, %v1799
        %v1801 = vrot.slane %v1796, %v1800
        %v1803 = vadd.f32 %v1794, %v1801
        %v1804 = vadd.f32 %v1795, %v1801
        %v1805 = vadd.f32 %v1803, 3.0
        %v1806 = vadd.f32 %v1804, 3.0
        %v1807 = vmax.f32 %v1805, 0.0
        %v1808 = vmax.f32 %v1806, 0.0
        %v1809 = vmin.f32 %v1807, 6.0
        %v1810 = vmin.f32 %v1808, 6.0
        %v1811 = vmul.f32 %v1809, 0.16666667
        %v1812 = vmul.f32 %v1810, 0.16666667
        %1813 = vst [vmem:[%s239] sm:$0xff] %v1811
        %1814 = vst [vmem:[%s239 + $0x8] sm:$0xff] %v1812
        %p1815 = scmp.lt.s32.totalorder %s17, 1
        %s1816 = scalar_select %p1815, %s17, 1
        %s1817 = smul.addr %s1816, 2
        %s1818 = smul.addr %s1817, 8
        %s1819 = scalar_lea.vmem %s5, %s1818
        // Predicated region
        $region45: #{_forward.1} parent=39 // pred_check
          %p1820 = pneg %p145
        $region46: #{_forward.1} parent=39 // pred_check_branch
          %1822 = sbr.rel (%p1820) target = $region48
        $region47: #{_forward.1} parent=39 // pred_region
          _
        $region48: #{_forward.1} parent=39 // pred_fallthru
          _
      $region40: #{_forward.1} parent=5 // pred_fallthru
        _
      %p1823 = scmp.le.s32.totalorder 2, %s12
      // Predicated region
      $region49: #{_forward.1} parent=5 // pred_check
        %p1824 = pneg %p1823
      $region50: #{_forward.1} parent=5 // pred_check_branch
        %1826 = sbr.rel (%p1824) target = $region52
      $region51: #{_forward.1} parent=5 // pred_region
        %s1827 = ssub.s32 %s12, 2
        // Predicated region
        $region53: #{_forward.1} parent=51 // pred_check
          %p1828 = pneg %p151
        $region54: #{_forward.1} parent=51 // pred_check_branch
          %1830 = sbr.rel (%p1828) target = $region56
        $region55: #{_forward.1} parent=51 // pred_region
          %p1831 = scmp.lt.s32.totalorder %s18, 1
          %s1832 = scalar_select %p1831, %s18, 1
          %s1833 = smul.addr %s1832, 2
          %s1834 = smul.addr %s1833, 8
          %s1835 = scalar_lea.vmem %s5, %s1834
        $region56: #{_forward.1} parent=51 // pred_fallthru
          _
      $region52: #{_forward.1} parent=5 // pred_fallthru
        _
    $region6: #{_forward.1} parent=1 // loop_footer
      %s16 = sadd.s32 1, %s12
    $region7: #{_forward.1} parent=1 // loop_footer_branch
      %11 = sbr.rel target = $region3
    $region8: #{_forward.1} parent=1 // loop_exit
      _
    %1836 = vsyncpa [#allocation5], 1
    %s1837 = scalar_lea.sflag [#allocation5], 1
    %1838 = vsyncpa %s1837, 1

</llo_original>
